<compile_context>
chip_gen: v7x
topology: tpu7x:2x2x1
jax: 0.10.0
libtpu: 0.0.40
codegen_flags: <defaults>
</compile_context>

<pallas_src>
import jax
import jax.numpy as jnp
import numpy as np
from jax.experimental import pallas as pl
from jax.experimental.pallas import tpu as pltpu

# ------------------------- model dimensions (small, synthetic) -------------------------
B = 2          # batch size
K = 4          # top_k (= n_docs)
SR = 8         # rerank sequence length
S = 16         # generator context sequence length
T = 8          # target sequence length
H = 128        # hidden size
VR = 64        # rerank vocab (synthetic)
V = 256        # generator vocab (synthetic)
PAD_ID = 0     # MT5 pad token id


# ------------------------- fused kernel (single invocation, whole batch) ----------------
def re2g_kernel(remb_t_ref, rr_ids_ref, wc_ref, bc_ref,
                emb_ref, ctx_ids_ref, ctx_msk_ref, dec_ref,
                wlm_ref, blm_ref, tgt_ref,
                genlg_ref, raglp_ref, doc_ref, loss_ref):
    f32 = jnp.float32
    BK = B * K

    # -------- Rerank: embedding gather + mean-pool fused as a counts matmul (docs on LANES)
    ids_rT = rr_ids_ref[...]                                        # (SR, BK) int32
    sub_vr = jax.lax.broadcasted_iota(jnp.int32, (VR, BK), 0)
    counts_t = jnp.zeros((VR, BK), f32)
    for t in range(SR):                                             # SR=8, unrolled
        counts_t = counts_t + (sub_vr == ids_rT[t:t + 1, :]).astype(f32)
    # pooled^T = emb^T @ counts / SR   -> (H, BK)
    pooled_rT = jnp.dot(remb_t_ref[...], counts_t,
                        preferred_element_type=f32) * (1.0 / SR)
    cls_t = jnp.dot(wc_ref[...], pooled_rT, preferred_element_type=f32)   # (2, BK)
    l0 = cls_t[0:1, :] + bc_ref[0]                                  # bias from SMEM scalars
    l1 = cls_t[1:2, :] + bc_ref[1]
    m01 = jnp.maximum(l0, l1)
    s1 = l1 - (m01 + jnp.log(jnp.exp(l0 - m01) + jnp.exp(l1 - m01)))      # (1, BK) class-1 lp

    doc_rows = []
    for b in range(B):
        s1_b = s1[:, b * K:(b + 1) * K]                             # (1, K) lane slice
        mb = jnp.max(s1_b, axis=-1, keepdims=True)
        lse_b = mb + jnp.log(jnp.sum(jnp.exp(s1_b - mb), axis=-1, keepdims=True))
        dl_b = s1_b - lse_b                                         # (1, K) doc log-probs
        doc_rows.append(dl_b)
        doc_ref[b:b + 1, :] = dl_b                                  # lane-dense (B, K) output

    # -------- Generator: gather + masked-mean pool fused as a weighted-counts matmul -----
    ids_c = ctx_ids_ref[...]                                        # (BK, S) int32
    msk = ctx_msk_ref[...]                                          # (BK, S) f32
    lane_v = jax.lax.broadcasted_iota(jnp.int32, (BK, V), 1)
    wcounts = jnp.zeros((BK, V), f32)
    for s in range(S):                                              # S=16, unrolled
        wcounts = wcounts + (ids_c[:, s:s + 1] == lane_v).astype(f32) * msk[:, s:s + 1]
    denom = jnp.maximum(jnp.sum(msk, axis=-1, keepdims=True), 1.0)  # (BK, 1)
    pooled_c = jnp.dot(wcounts, emb_ref[...], preferred_element_type=f32) / denom   # (BK, H)

    # hidden for the whole batch -> ONE (B*K*T, H) @ (H, V) LM-head matmul on the MXU
    dec = dec_ref[...]                                              # (B, T, H)
    hidden = jnp.tanh(dec[:, None, :, :]
                      + pooled_c.reshape(B, K, H)[:, :, None, :])   # (B, K, T, H)
    h2 = hidden.reshape(B * K * T, H)                               # leading-dim collapse
    logits = jnp.dot(h2.astype(jnp.bfloat16), wlm_ref[...],
                     preferred_element_type=f32) + blm_ref[...]     # (B*K*T, V) f32
    genlg_ref[...] = logits                                         # lane-dense, unmasked vst

    # -------- RAG-token marginalisation (streamed over the K docs) + pad-masked NLL ------
    # doc_rows are already log-softmaxed; the reference's second log_softmax is a no-op.
    lane_1v = jax.lax.broadcasted_iota(jnp.int32, (1, V), 1)
    for b in range(B):
        dl_b = doc_rows[b]                                          # (1, K)

        def term(k, b=b, dl_b=dl_b):
            lg = logits[(b * K + k) * T:(b * K + k + 1) * T, :]     # (T, V), 8-row aligned
            mx = jnp.max(lg, axis=-1, keepdims=True)
            lse = mx + jnp.log(jnp.sum(jnp.exp(lg - mx), axis=-1, keepdims=True))
            return (lg - lse) + dl_b[:, k:k + 1]                    # (T, V) + (1, 1)

        run_max = term(0)
        run_sum = jnp.ones_like(run_max)
        for k in range(1, K):                                       # K=4, unrolled
            x = term(k)
            nm = jnp.maximum(run_max, x)
            run_sum = run_sum * jnp.exp(run_max - nm) + jnp.exp(x - nm)
            run_max = nm
        rag_b = run_max + jnp.log(run_sum)                          # (T, V)
        raglp_ref[b] = rag_b

        # NLL gather: target ids are SMEM scalars -> free scalar broadcast, no narrow DMAs.
        acc = jnp.zeros((1, 1), f32)
        for t in range(T):
            tv = tgt_ref[b * T + t]                                 # SMEM scalar
            row = rag_b[t:t + 1, :]                                 # (1, V)
            ll_t = jnp.sum(jnp.where(lane_1v == tv, row, 0.0),
                           axis=-1, keepdims=True)                  # (1, 1)
            acc = acc + ll_t * jnp.where(tv == PAD_ID, 0.0, 1.0)
        loss_ref[:, b:b + 1] = -acc                                 # lane-dense (1, B) output


# ------------------------- pallas_call wrapper -------------------------------------------
def re2g_fused_call(remb_t, rr_ids_t, w_cls_t, b_cls, gen_emb,
                    ctx_ids, ctx_msk, dec_emb, w_lm_bf16, b_lm, target_flat):
    vmem = pl.BlockSpec(memory_space=pltpu.MemorySpace.VMEM)
    smem = pl.BlockSpec(memory_space=pltpu.MemorySpace.SMEM)
    cost = pl.CostEstimate(
        flops=5_000_000,            # dominated by the (64,128)@(128,256) LM-head matmul
        transcendentals=60_000,     # tanh + softmax/logsumexp exps/logs
        bytes_accessed=330_000,     # ~240 KiB in (tables+weights+ids), ~82 KiB out
    )
    return pl.pallas_call(
        re2g_kernel,
        out_shape=(
            jax.ShapeDtypeStruct((B * K * T, V), jnp.float32),   # generator logits
            jax.ShapeDtypeStruct((B, T, V), jnp.float32),        # rag log-probs
            jax.ShapeDtypeStruct((B, K), jnp.float32),           # doc scores (lane-dense)
            jax.ShapeDtypeStruct((1, B), jnp.float32),           # per-sample NLL loss
        ),
        in_specs=[vmem,   # rerank_emb^T   (H, VR)
                  vmem,   # rerank ids^T   (SR, B*K)
                  vmem,   # w_cls^T        (2, H)
                  smem,   # b_cls          (2,)
                  vmem,   # gen_emb        (V, H)
                  vmem,   # context ids    (B*K, S)
                  vmem,   # context mask   (B*K, S)
                  vmem,   # decoder emb    (B, T, H)
                  vmem,   # w_lm bf16      (H, V)
                  vmem,   # b_lm           (1, V)
                  smem],  # target ids     (B*T,)
        out_specs=(vmem, vmem, vmem, vmem),
        cost_estimate=cost,
    )(remb_t, rr_ids_t, w_cls_t, b_cls, gen_emb,
      ctx_ids, ctx_msk, dec_emb, w_lm_bf16, b_lm, target_flat)


# ------------------------- Re2G forward (glue in plain JAX) ------------------------------
def re2g_forward(params, rerank_input_ids, input_ids, attention_mask, label_ids):
    # TODO(synk): pretrained XLMRoberta / MT5 stacks replaced by synthetic embedding +
    #             pooling encoders; rerank head / RAG-token marginalisation / NLL are exact.
    # Decoder token embeddings are tiny (8 KiB) -> gathered here; the big context/rerank
    # gathers are fused into the kernel's counts matmuls.
    dec_emb = params["gen_emb"][label_ids]                           # (B, T, H)
    # target = labels shifted left with pad appended (RagTokenForGeneration.get_nll)
    target = jnp.concatenate(
        [label_ids[:, 1:], jnp.full((B, 1), PAD_ID, label_ids.dtype)], axis=1)

    gen_lg, rag_lp, doc, loss = re2g_fused_call(
        params["rerank_emb"].T,                       # (H, VR)
        rerank_input_ids.T.astype(jnp.int32),         # (SR, B*K)  docs on lanes
        params["w_cls"].T,                            # (2, H)
        params["b_cls"].reshape(2),                   # (2,)  -> SMEM scalars
        params["gen_emb"],                            # (V, H)
        input_ids.astype(jnp.int32),                  # (B*K, S)   lane-dense
        attention_mask.astype(jnp.float32),           # (B*K, S)   lane-dense
        dec_emb,                                      # (B, T, H)
        params["w_lm"].astype(jnp.bfloat16),          # (H, V) bf16 MXU operand
        params["b_lm"],                               # (1, V)
        target.reshape(B * T).astype(jnp.int32),      # (B*T,) -> SMEM scalars
    )
    return {"loss": loss[0],
            "logits": gen_lg.reshape(B * K, T, V),
            "rag_logprobs": rag_lp,
            "doc_scores": doc}


# ------------------------- pure-JAX reference for verification ---------------------------
def re2g_reference(params, rerank_input_ids, input_ids, attention_mask, label_ids):
    remb = params["rerank_emb"][rerank_input_ids]
    pooled = remb.mean(axis=1)
    cls_logits = pooled @ params["w_cls"] + params["b_cls"][0]
    s = jax.nn.log_softmax(cls_logits, axis=-1)[:, 1]
    doc_scores = jax.nn.log_softmax(s.reshape(B, K), axis=-1)

    ctx_emb = params["gen_emb"][input_ids]
    msk = attention_mask.astype(jnp.float32)[..., None]
    ctx = (ctx_emb * msk).sum(1) / jnp.maximum(msk.sum(1), 1.0)
    dec = params["gen_emb"][jnp.repeat(label_ids, K, axis=0)]
    hidden = jnp.tanh(dec + ctx[:, None, :])
    gen_lg = hidden @ params["w_lm"] + params["b_lm"][0]

    seq_lp = jax.nn.log_softmax(gen_lg, -1).reshape(B, K, T, V)
    doc_lp = jax.nn.log_softmax(doc_scores, -1)
    rag_lp = jax.nn.logsumexp(seq_lp + doc_lp[:, :, None, None], axis=1)
    target = jnp.concatenate(
        [label_ids[:, 1:], jnp.full((B, 1), PAD_ID, label_ids.dtype)], axis=1)
    ll = jnp.take_along_axis(rag_lp, target[..., None], axis=-1)[..., 0]
    ll = jnp.where(target == PAD_ID, 0.0, ll)
    return {"loss": -ll.sum(1), "doc_scores": doc_scores, "rag_logprobs": rag_lp}


# ------------------------- main -----------------------------------------------------------
if __name__ == "__main__":
    key = jax.random.PRNGKey(0)
    k = jax.random.split(key, 9)

    params = {
        "rerank_emb": 0.05 * jax.random.normal(k[0], (VR, H), jnp.float32),
        "w_cls":      0.05 * jax.random.normal(k[1], (H, 2), jnp.float32),
        "b_cls":      0.05 * jax.random.normal(k[2], (1, 2), jnp.float32),
        "gen_emb":    0.05 * jax.random.normal(k[3], (V, H), jnp.float32),
        "w_lm":       0.05 * jax.random.normal(k[4], (H, V), jnp.float32),
        "b_lm":       0.05 * jax.random.normal(k[5], (1, V), jnp.float32),
    }

    rerank_input_ids = jax.random.randint(k[6], (B * K, SR), 1, VR, jnp.int32)
    input_ids = jax.random.randint(k[7], (B * K, S), 1, V, jnp.int32)
    attention_mask = (jax.lax.broadcasted_iota(jnp.int32, (B * K, S), 1) < 12).astype(jnp.int32)
    label_ids = jax.random.randint(k[8], (B, T), 1, V, jnp.int32)
    label_ids = label_ids.at[:, -2:].set(PAD_ID)   # trailing padding on targets

    out = re2g_forward(params, rerank_input_ids, input_ids, attention_mask, label_ids)
    jax.block_until_ready(out)

    ref = re2g_reference(params, rerank_input_ids, input_ids, attention_mask, label_ids)
    np.testing.assert_allclose(np.asarray(out["doc_scores"]), np.asarray(ref["doc_scores"]),
                               rtol=2e-3, atol=2e-3)
    np.testing.assert_allclose(np.asarray(out["rag_logprobs"]), np.asarray(ref["rag_logprobs"]),
                               rtol=2e-3, atol=2e-3)
    np.testing.assert_allclose(np.asarray(out["loss"]), np.asarray(ref["loss"]),
                               rtol=2e-3, atol=2e-3)

    print("KERNEL_OK")
</pallas_src>

<mosaic_0001>
module attributes {stable_mosaic.version = 11 : i64} {
  func.func @re2g_kernel(%arg0: memref<128x64xf32, #tpu.memory_space<vmem>>, %arg1: memref<8x8xi32, #tpu.memory_space<vmem>>, %arg2: memref<2x128xf32, #tpu.memory_space<vmem>>, %arg3: memref<2xf32, #tpu.memory_space<smem>>, %arg4: memref<256x128xf32, #tpu.memory_space<vmem>>, %arg5: memref<8x16xi32, #tpu.memory_space<vmem>>, %arg6: memref<8x16xf32, #tpu.memory_space<vmem>>, %arg7: memref<2x8x128xf32, #tpu.memory_space<vmem>>, %arg8: memref<128x256xbf16, #tpu.memory_space<vmem>>, %arg9: memref<1x256xf32, #tpu.memory_space<vmem>>, %arg10: memref<16xi32, #tpu.memory_space<smem>>, %arg11: memref<64x256xf32, #tpu.memory_space<vmem>>, %arg12: memref<2x8x256xf32, #tpu.memory_space<vmem>>, %arg13: memref<2x4xf32, #tpu.memory_space<vmem>>, %arg14: memref<1x2xf32, #tpu.memory_space<vmem>>) attributes {dimension_semantics = [], scalar_prefetch = 0 : i64, scratch_operands = 0 : i64, tpu.core_type = #tpu.core_type<tc>} {
    %c0 = arith.constant 0 : index
    %c0_0 = arith.constant 0 : index
    %0 = vector.load %arg1[%c0, %c0_0] : memref<8x8xi32, #tpu.memory_space<vmem>>, vector<8x8xi32>
    %1 = tpu.iota {dimensions = array<i32: 0>} : vector<64x8xi32>
    %cst = arith.constant 0.000000e+00 : f32
    %2 = vector.broadcast %cst : f32 to vector<64x8xf32>
    %3 = vector.extract_strided_slice %0 {offsets = [0, 0], sizes = [1, 8], strides = [1, 1]} : vector<8x8xi32> to vector<1x8xi32>
    %4 = vector.broadcast %3 : vector<1x8xi32> to vector<64x8xi32>
    %5 = arith.cmpi eq, %1, %4 : vector<64x8xi32>
    %6 = arith.extui %5 : vector<64x8xi1> to vector<64x8xi32>
    %7 = arith.sitofp %6 : vector<64x8xi32> to vector<64x8xf32>
    %8 = arith.addf %2, %7 : vector<64x8xf32>
    %9 = vector.extract_strided_slice %0 {offsets = [1, 0], sizes = [1, 8], strides = [1, 1]} : vector<8x8xi32> to vector<1x8xi32>
    %10 = vector.broadcast %9 : vector<1x8xi32> to vector<64x8xi32>
    %11 = arith.cmpi eq, %1, %10 : vector<64x8xi32>
    %12 = arith.extui %11 : vector<64x8xi1> to vector<64x8xi32>
    %13 = arith.sitofp %12 : vector<64x8xi32> to vector<64x8xf32>
    %14 = arith.addf %8, %13 : vector<64x8xf32>
    %15 = vector.extract_strided_slice %0 {offsets = [2, 0], sizes = [1, 8], strides = [1, 1]} : vector<8x8xi32> to vector<1x8xi32>
    %16 = vector.broadcast %15 : vector<1x8xi32> to vector<64x8xi32>
    %17 = arith.cmpi eq, %1, %16 : vector<64x8xi32>
    %18 = arith.extui %17 : vector<64x8xi1> to vector<64x8xi32>
    %19 = arith.sitofp %18 : vector<64x8xi32> to vector<64x8xf32>
    %20 = arith.addf %14, %19 : vector<64x8xf32>
    %21 = vector.extract_strided_slice %0 {offsets = [3, 0], sizes = [1, 8], strides = [1, 1]} : vector<8x8xi32> to vector<1x8xi32>
    %22 = vector.broadcast %21 : vector<1x8xi32> to vector<64x8xi32>
    %23 = arith.cmpi eq, %1, %22 : vector<64x8xi32>
    %24 = arith.extui %23 : vector<64x8xi1> to vector<64x8xi32>
    %25 = arith.sitofp %24 : vector<64x8xi32> to vector<64x8xf32>
    %26 = arith.addf %20, %25 : vector<64x8xf32>
    %27 = vector.extract_strided_slice %0 {offsets = [4, 0], sizes = [1, 8], strides = [1, 1]} : vector<8x8xi32> to vector<1x8xi32>
    %28 = vector.broadcast %27 : vector<1x8xi32> to vector<64x8xi32>
    %29 = arith.cmpi eq, %1, %28 : vector<64x8xi32>
    %30 = arith.extui %29 : vector<64x8xi1> to vector<64x8xi32>
    %31 = arith.sitofp %30 : vector<64x8xi32> to vector<64x8xf32>
    %32 = arith.addf %26, %31 : vector<64x8xf32>
    %33 = vector.extract_strided_slice %0 {offsets = [5, 0], sizes = [1, 8], strides = [1, 1]} : vector<8x8xi32> to vector<1x8xi32>
    %34 = vector.broadcast %33 : vector<1x8xi32> to vector<64x8xi32>
    %35 = arith.cmpi eq, %1, %34 : vector<64x8xi32>
    %36 = arith.extui %35 : vector<64x8xi1> to vector<64x8xi32>
    %37 = arith.sitofp %36 : vector<64x8xi32> to vector<64x8xf32>
    %38 = arith.addf %32, %37 : vector<64x8xf32>
    %39 = vector.extract_strided_slice %0 {offsets = [6, 0], sizes = [1, 8], strides = [1, 1]} : vector<8x8xi32> to vector<1x8xi32>
    %40 = vector.broadcast %39 : vector<1x8xi32> to vector<64x8xi32>
    %41 = arith.cmpi eq, %1, %40 : vector<64x8xi32>
    %42 = arith.extui %41 : vector<64x8xi1> to vector<64x8xi32>
    %43 = arith.sitofp %42 : vector<64x8xi32> to vector<64x8xf32>
    %44 = arith.addf %38, %43 : vector<64x8xf32>
    %45 = vector.extract_strided_slice %0 {offsets = [7, 0], sizes = [1, 8], strides = [1, 1]} : vector<8x8xi32> to vector<1x8xi32>
    %46 = vector.broadcast %45 : vector<1x8xi32> to vector<64x8xi32>
    %47 = arith.cmpi eq, %1, %46 : vector<64x8xi32>
    %48 = arith.extui %47 : vector<64x8xi1> to vector<64x8xi32>
    %49 = arith.sitofp %48 : vector<64x8xi32> to vector<64x8xf32>
    %50 = arith.addf %44, %49 : vector<64x8xf32>
    %c0_1 = arith.constant 0 : index
    %c0_2 = arith.constant 0 : index
    %51 = vector.load %arg0[%c0_1, %c0_2] : memref<128x64xf32, #tpu.memory_space<vmem>>, vector<128x64xf32>
    %cst_3 = arith.constant dense<0.000000e+00> : vector<128x8xf32>
    %52 = tpu.matmul %51, %50, %cst_3 {dimension_numbers = #tpu.dot_dimension_numbers<[1], [0], [0], [1], [0, 0, 1, 1], [], []>} : vector<128x64xf32>, vector<64x8xf32>, vector<128x8xf32> -> vector<128x8xf32>
    %cst_4 = arith.constant 1.250000e-01 : f32
    %53 = vector.broadcast %cst_4 : f32 to vector<128x8xf32>
    %54 = arith.mulf %52, %53 : vector<128x8xf32>
    %c0_5 = arith.constant 0 : index
    %c0_6 = arith.constant 0 : index
    %55 = vector.load %arg2[%c0_5, %c0_6] : memref<2x128xf32, #tpu.memory_space<vmem>>, vector<2x128xf32>
    %cst_7 = arith.constant dense<0.000000e+00> : vector<2x8xf32>
    %56 = tpu.matmul %55, %54, %cst_7 {dimension_numbers = #tpu.dot_dimension_numbers<[1], [0], [0], [1], [0, 0, 1, 1], [], []>} : vector<2x128xf32>, vector<128x8xf32>, vector<2x8xf32> -> vector<2x8xf32>
    %57 = vector.extract_strided_slice %56 {offsets = [0, 0], sizes = [1, 8], strides = [1, 1]} : vector<2x8xf32> to vector<1x8xf32>
    %c0_8 = arith.constant 0 : index
    %58 = memref.load %arg3[%c0_8] : memref<2xf32, #tpu.memory_space<smem>>
    %59 = vector.broadcast %58 : f32 to vector<1x8xf32>
    %60 = arith.addf %57, %59 : vector<1x8xf32>
    %61 = vector.extract_strided_slice %56 {offsets = [1, 0], sizes = [1, 8], strides = [1, 1]} : vector<2x8xf32> to vector<1x8xf32>
    %c1 = arith.constant 1 : index
    %62 = memref.load %arg3[%c1] : memref<2xf32, #tpu.memory_space<smem>>
    %63 = vector.broadcast %62 : f32 to vector<1x8xf32>
    %64 = arith.addf %61, %63 : vector<1x8xf32>
    %65 = arith.maximumf %60, %64 : vector<1x8xf32>
    %66 = arith.subf %60, %65 : vector<1x8xf32>
    %67 = math.exp %66 : vector<1x8xf32>
    %68 = arith.subf %64, %65 : vector<1x8xf32>
    %69 = math.exp %68 : vector<1x8xf32>
    %70 = arith.addf %67, %69 : vector<1x8xf32>
    %71 = math.log %70 : vector<1x8xf32>
    %72 = arith.addf %65, %71 : vector<1x8xf32>
    %73 = arith.subf %64, %72 : vector<1x8xf32>
    %74 = vector.extract_strided_slice %73 {offsets = [0, 0], sizes = [1, 4], strides = [1, 1]} : vector<1x8xf32> to vector<1x4xf32>
    %cst_9 = arith.constant dense<0xFF800000> : vector<1xf32>
    %75 = vector.multi_reduction <maximumf>, %74, %cst_9 [1] : vector<1x4xf32> to vector<1xf32>
    %76 = vector.shape_cast %75 : vector<1xf32> to vector<1x1xf32>
    %77 = vector.broadcast %76 : vector<1x1xf32> to vector<1x4xf32>
    %78 = arith.subf %74, %77 : vector<1x4xf32>
    %79 = math.exp %78 : vector<1x4xf32>
    %cst_10 = arith.constant dense<0.000000e+00> : vector<1xf32>
    %80 = vector.multi_reduction <add>, %79, %cst_10 [1] : vector<1x4xf32> to vector<1xf32>
    %81 = vector.shape_cast %80 : vector<1xf32> to vector<1x1xf32>
    %82 = math.log %81 : vector<1x1xf32>
    %83 = arith.addf %76, %82 : vector<1x1xf32>
    %84 = vector.broadcast %83 : vector<1x1xf32> to vector<1x4xf32>
    %85 = arith.subf %74, %84 : vector<1x4xf32>
    %c0_11 = arith.constant 0 : index
    %c0_12 = arith.constant 0 : index
    %86 = vector.load %arg13[%c0_11, %c0_12] : memref<2x4xf32, #tpu.memory_space<vmem>>, vector<1x4xf32>
    tpu.vector_store %arg13[%c0_11, %c0_12], %85 {strides = array<i32>} : memref<2x4xf32, #tpu.memory_space<vmem>>, vector<1x4xf32>,
    %87 = vector.extract_strided_slice %73 {offsets = [0, 4], sizes = [1, 4], strides = [1, 1]} : vector<1x8xf32> to vector<1x4xf32>
    %cst_13 = arith.constant dense<0xFF800000> : vector<1xf32>
    %88 = vector.multi_reduction <maximumf>, %87, %cst_13 [1] : vector<1x4xf32> to vector<1xf32>
    %89 = vector.shape_cast %88 : vector<1xf32> to vector<1x1xf32>
    %90 = vector.broadcast %89 : vector<1x1xf32> to vector<1x4xf32>
    %91 = arith.subf %87, %90 : vector<1x4xf32>
    %92 = math.exp %91 : vector<1x4xf32>
    %cst_14 = arith.constant dense<0.000000e+00> : vector<1xf32>
    %93 = vector.multi_reduction <add>, %92, %cst_14 [1] : vector<1x4xf32> to vector<1xf32>
    %94 = vector.shape_cast %93 : vector<1xf32> to vector<1x1xf32>
    %95 = math.log %94 : vector<1x1xf32>
    %96 = arith.addf %89, %95 : vector<1x1xf32>
    %97 = vector.broadcast %96 : vector<1x1xf32> to vector<1x4xf32>
    %98 = arith.subf %87, %97 : vector<1x4xf32>
    %c1_15 = arith.constant 1 : index
    %c0_16 = arith.constant 0 : index
    %99 = vector.load %arg13[%c1_15, %c0_16] : memref<2x4xf32, #tpu.memory_space<vmem>>, vector<1x4xf32>
    tpu.vector_store %arg13[%c1_15, %c0_16], %98 {strides = array<i32>} : memref<2x4xf32, #tpu.memory_space<vmem>>, vector<1x4xf32>,
    %c0_17 = arith.constant 0 : index
    %c0_18 = arith.constant 0 : index
    %100 = vector.load %arg5[%c0_17, %c0_18] : memref<8x16xi32, #tpu.memory_space<vmem>>, vector<8x16xi32>
    %c0_19 = arith.constant 0 : index
    %c0_20 = arith.constant 0 : index
    %101 = vector.load %arg6[%c0_19, %c0_20] : memref<8x16xf32, #tpu.memory_space<vmem>>, vector<8x16xf32>
    %102 = tpu.iota {dimensions = array<i32: 1>} : vector<8x256xi32>
    %cst_21 = arith.constant 0.000000e+00 : f32
    %103 = vector.broadcast %cst_21 : f32 to vector<8x256xf32>
    %104 = vector.extract_strided_slice %100 {offsets = [0, 0], sizes = [8, 1], strides = [1, 1]} : vector<8x16xi32> to vector<8x1xi32>
    %105 = vector.broadcast %104 : vector<8x1xi32> to vector<8x256xi32>
    %106 = arith.cmpi eq, %105, %102 : vector<8x256xi32>
    %107 = arith.extui %106 : vector<8x256xi1> to vector<8x256xi32>
    %108 = arith.sitofp %107 : vector<8x256xi32> to vector<8x256xf32>
    %109 = vector.extract_strided_slice %101 {offsets = [0, 0], sizes = [8, 1], strides = [1, 1]} : vector<8x16xf32> to vector<8x1xf32>
    %110 = vector.broadcast %109 : vector<8x1xf32> to vector<8x256xf32>
    %111 = arith.mulf %108, %110 : vector<8x256xf32>
    %112 = arith.addf %103, %111 : vector<8x256xf32>
    %113 = vector.extract_strided_slice %100 {offsets = [0, 1], sizes = [8, 1], strides = [1, 1]} : vector<8x16xi32> to vector<8x1xi32>
    %114 = vector.broadcast %113 : vector<8x1xi32> to vector<8x256xi32>
    %115 = arith.cmpi eq, %114, %102 : vector<8x256xi32>
    %116 = arith.extui %115 : vector<8x256xi1> to vector<8x256xi32>
    %117 = arith.sitofp %116 : vector<8x256xi32> to vector<8x256xf32>
    %118 = vector.extract_strided_slice %101 {offsets = [0, 1], sizes = [8, 1], strides = [1, 1]} : vector<8x16xf32> to vector<8x1xf32>
    %119 = vector.broadcast %118 : vector<8x1xf32> to vector<8x256xf32>
    %120 = arith.mulf %117, %119 : vector<8x256xf32>
    %121 = arith.addf %112, %120 : vector<8x256xf32>
    %122 = vector.extract_strided_slice %100 {offsets = [0, 2], sizes = [8, 1], strides = [1, 1]} : vector<8x16xi32> to vector<8x1xi32>
    %123 = vector.broadcast %122 : vector<8x1xi32> to vector<8x256xi32>
    %124 = arith.cmpi eq, %123, %102 : vector<8x256xi32>
    %125 = arith.extui %124 : vector<8x256xi1> to vector<8x256xi32>
    %126 = arith.sitofp %125 : vector<8x256xi32> to vector<8x256xf32>
    %127 = vector.extract_strided_slice %101 {offsets = [0, 2], sizes = [8, 1], strides = [1, 1]} : vector<8x16xf32> to vector<8x1xf32>
    %128 = vector.broadcast %127 : vector<8x1xf32> to vector<8x256xf32>
    %129 = arith.mulf %126, %128 : vector<8x256xf32>
    %130 = arith.addf %121, %129 : vector<8x256xf32>
    %131 = vector.extract_strided_slice %100 {offsets = [0, 3], sizes = [8, 1], strides = [1, 1]} : vector<8x16xi32> to vector<8x1xi32>
    %132 = vector.broadcast %131 : vector<8x1xi32> to vector<8x256xi32>
    %133 = arith.cmpi eq, %132, %102 : vector<8x256xi32>
    %134 = arith.extui %133 : vector<8x256xi1> to vector<8x256xi32>
    %135 = arith.sitofp %134 : vector<8x256xi32> to vector<8x256xf32>
    %136 = vector.extract_strided_slice %101 {offsets = [0, 3], sizes = [8, 1], strides = [1, 1]} : vector<8x16xf32> to vector<8x1xf32>
    %137 = vector.broadcast %136 : vector<8x1xf32> to vector<8x256xf32>
    %138 = arith.mulf %135, %137 : vector<8x256xf32>
    %139 = arith.addf %130, %138 : vector<8x256xf32>
    %140 = vector.extract_strided_slice %100 {offsets = [0, 4], sizes = [8, 1], strides = [1, 1]} : vector<8x16xi32> to vector<8x1xi32>
    %141 = vector.broadcast %140 : vector<8x1xi32> to vector<8x256xi32>
    %142 = arith.cmpi eq, %141, %102 : vector<8x256xi32>
    %143 = arith.extui %142 : vector<8x256xi1> to vector<8x256xi32>
    %144 = arith.sitofp %143 : vector<8x256xi32> to vector<8x256xf32>
    %145 = vector.extract_strided_slice %101 {offsets = [0, 4], sizes = [8, 1], strides = [1, 1]} : vector<8x16xf32> to vector<8x1xf32>
    %146 = vector.broadcast %145 : vector<8x1xf32> to vector<8x256xf32>
    %147 = arith.mulf %144, %146 : vector<8x256xf32>
    %148 = arith.addf %139, %147 : vector<8x256xf32>
    %149 = vector.extract_strided_slice %100 {offsets = [0, 5], sizes = [8, 1], strides = [1, 1]} : vector<8x16xi32> to vector<8x1xi32>
    %150 = vector.broadcast %149 : vector<8x1xi32> to vector<8x256xi32>
    %151 = arith.cmpi eq, %150, %102 : vector<8x256xi32>
    %152 = arith.extui %151 : vector<8x256xi1> to vector<8x256xi32>
    %153 = arith.sitofp %152 : vector<8x256xi32> to vector<8x256xf32>
    %154 = vector.extract_strided_slice %101 {offsets = [0, 5], sizes = [8, 1], strides = [1, 1]} : vector<8x16xf32> to vector<8x1xf32>
    %155 = vector.broadcast %154 : vector<8x1xf32> to vector<8x256xf32>
    %156 = arith.mulf %153, %155 : vector<8x256xf32>
    %157 = arith.addf %148, %156 : vector<8x256xf32>
    %158 = vector.extract_strided_slice %100 {offsets = [0, 6], sizes = [8, 1], strides = [1, 1]} : vector<8x16xi32> to vector<8x1xi32>
    %159 = vector.broadcast %158 : vector<8x1xi32> to vector<8x256xi32>
    %160 = arith.cmpi eq, %159, %102 : vector<8x256xi32>
    %161 = arith.extui %160 : vector<8x256xi1> to vector<8x256xi32>
    %162 = arith.sitofp %161 : vector<8x256xi32> to vector<8x256xf32>
    %163 = vector.extract_strided_slice %101 {offsets = [0, 6], sizes = [8, 1], strides = [1, 1]} : vector<8x16xf32> to vector<8x1xf32>
    %164 = vector.broadcast %163 : vector<8x1xf32> to vector<8x256xf32>
    %165 = arith.mulf %162, %164 : vector<8x256xf32>
    %166 = arith.addf %157, %165 : vector<8x256xf32>
    %167 = vector.extract_strided_slice %100 {offsets = [0, 7], sizes = [8, 1], strides = [1, 1]} : vector<8x16xi32> to vector<8x1xi32>
    %168 = vector.broadcast %167 : vector<8x1xi32> to vector<8x256xi32>
    %169 = arith.cmpi eq, %168, %102 : vector<8x256xi32>
    %170 = arith.extui %169 : vector<8x256xi1> to vector<8x256xi32>
    %171 = arith.sitofp %170 : vector<8x256xi32> to vector<8x256xf32>
    %172 = vector.extract_strided_slice %101 {offsets = [0, 7], sizes = [8, 1], strides = [1, 1]} : vector<8x16xf32> to vector<8x1xf32>
    %173 = vector.broadcast %172 : vector<8x1xf32> to vector<8x256xf32>
    %174 = arith.mulf %171, %173 : vector<8x256xf32>
    %175 = arith.addf %166, %174 : vector<8x256xf32>
    %176 = vector.extract_strided_slice %100 {offsets = [0, 8], sizes = [8, 1], strides = [1, 1]} : vector<8x16xi32> to vector<8x1xi32>
    %177 = vector.broadcast %176 : vector<8x1xi32> to vector<8x256xi32>
    %178 = arith.cmpi eq, %177, %102 : vector<8x256xi32>
    %179 = arith.extui %178 : vector<8x256xi1> to vector<8x256xi32>
    %180 = arith.sitofp %179 : vector<8x256xi32> to vector<8x256xf32>
    %181 = vector.extract_strided_slice %101 {offsets = [0, 8], sizes = [8, 1], strides = [1, 1]} : vector<8x16xf32> to vector<8x1xf32>
    %182 = vector.broadcast %181 : vector<8x1xf32> to vector<8x256xf32>
    %183 = arith.mulf %180, %182 : vector<8x256xf32>
    %184 = arith.addf %175, %183 : vector<8x256xf32>
    %185 = vector.extract_strided_slice %100 {offsets = [0, 9], sizes = [8, 1], strides = [1, 1]} : vector<8x16xi32> to vector<8x1xi32>
    %186 = vector.broadcast %185 : vector<8x1xi32> to vector<8x256xi32>
    %187 = arith.cmpi eq, %186, %102 : vector<8x256xi32>
    %188 = arith.extui %187 : vector<8x256xi1> to vector<8x256xi32>
    %189 = arith.sitofp %188 : vector<8x256xi32> to vector<8x256xf32>
    %190 = vector.extract_strided_slice %101 {offsets = [0, 9], sizes = [8, 1], strides = [1, 1]} : vector<8x16xf32> to vector<8x1xf32>
    %191 = vector.broadcast %190 : vector<8x1xf32> to vector<8x256xf32>
    %192 = arith.mulf %189, %191 : vector<8x256xf32>
    %193 = arith.addf %184, %192 : vector<8x256xf32>
    %194 = vector.extract_strided_slice %100 {offsets = [0, 10], sizes = [8, 1], strides = [1, 1]} : vector<8x16xi32> to vector<8x1xi32>
    %195 = vector.broadcast %194 : vector<8x1xi32> to vector<8x256xi32>
    %196 = arith.cmpi eq, %195, %102 : vector<8x256xi32>
    %197 = arith.extui %196 : vector<8x256xi1> to vector<8x256xi32>
    %198 = arith.sitofp %197 : vector<8x256xi32> to vector<8x256xf32>
    %199 = vector.extract_strided_slice %101 {offsets = [0, 10], sizes = [8, 1], strides = [1, 1]} : vector<8x16xf32> to vector<8x1xf32>
    %200 = vector.broadcast %199 : vector<8x1xf32> to vector<8x256xf32>
    %201 = arith.mulf %198, %200 : vector<8x256xf32>
    %202 = arith.addf %193, %201 : vector<8x256xf32>
    %203 = vector.extract_strided_slice %100 {offsets = [0, 11], sizes = [8, 1], strides = [1, 1]} : vector<8x16xi32> to vector<8x1xi32>
    %204 = vector.broadcast %203 : vector<8x1xi32> to vector<8x256xi32>
    %205 = arith.cmpi eq, %204, %102 : vector<8x256xi32>
    %206 = arith.extui %205 : vector<8x256xi1> to vector<8x256xi32>
    %207 = arith.sitofp %206 : vector<8x256xi32> to vector<8x256xf32>
    %208 = vector.extract_strided_slice %101 {offsets = [0, 11], sizes = [8, 1], strides = [1, 1]} : vector<8x16xf32> to vector<8x1xf32>
    %209 = vector.broadcast %208 : vector<8x1xf32> to vector<8x256xf32>
    %210 = arith.mulf %207, %209 : vector<8x256xf32>
    %211 = arith.addf %202, %210 : vector<8x256xf32>
    %212 = vector.extract_strided_slice %100 {offsets = [0, 12], sizes = [8, 1], strides = [1, 1]} : vector<8x16xi32> to vector<8x1xi32>
    %213 = vector.broadcast %212 : vector<8x1xi32> to vector<8x256xi32>
    %214 = arith.cmpi eq, %213, %102 : vector<8x256xi32>
    %215 = arith.extui %214 : vector<8x256xi1> to vector<8x256xi32>
    %216 = arith.sitofp %215 : vector<8x256xi32> to vector<8x256xf32>
    %217 = vector.extract_strided_slice %101 {offsets = [0, 12], sizes = [8, 1], strides = [1, 1]} : vector<8x16xf32> to vector<8x1xf32>
    %218 = vector.broadcast %217 : vector<8x1xf32> to vector<8x256xf32>
    %219 = arith.mulf %216, %218 : vector<8x256xf32>
    %220 = arith.addf %211, %219 : vector<8x256xf32>
    %221 = vector.extract_strided_slice %100 {offsets = [0, 13], sizes = [8, 1], strides = [1, 1]} : vector<8x16xi32> to vector<8x1xi32>
    %222 = vector.broadcast %221 : vector<8x1xi32> to vector<8x256xi32>
    %223 = arith.cmpi eq, %222, %102 : vector<8x256xi32>
    %224 = arith.extui %223 : vector<8x256xi1> to vector<8x256xi32>
    %225 = arith.sitofp %224 : vector<8x256xi32> to vector<8x256xf32>
    %226 = vector.extract_strided_slice %101 {offsets = [0, 13], sizes = [8, 1], strides = [1, 1]} : vector<8x16xf32> to vector<8x1xf32>
    %227 = vector.broadcast %226 : vector<8x1xf32> to vector<8x256xf32>
    %228 = arith.mulf %225, %227 : vector<8x256xf32>
    %229 = arith.addf %220, %228 : vector<8x256xf32>
    %230 = vector.extract_strided_slice %100 {offsets = [0, 14], sizes = [8, 1], strides = [1, 1]} : vector<8x16xi32> to vector<8x1xi32>
    %231 = vector.broadcast %230 : vector<8x1xi32> to vector<8x256xi32>
    %232 = arith.cmpi eq, %231, %102 : vector<8x256xi32>
    %233 = arith.extui %232 : vector<8x256xi1> to vector<8x256xi32>
    %234 = arith.sitofp %233 : vector<8x256xi32> to vector<8x256xf32>
    %235 = vector.extract_strided_slice %101 {offsets = [0, 14], sizes = [8, 1], strides = [1, 1]} : vector<8x16xf32> to vector<8x1xf32>
    %236 = vector.broadcast %235 : vector<8x1xf32> to vector<8x256xf32>
    %237 = arith.mulf %234, %236 : vector<8x256xf32>
    %238 = arith.addf %229, %237 : vector<8x256xf32>
    %239 = vector.extract_strided_slice %100 {offsets = [0, 15], sizes = [8, 1], strides = [1, 1]} : vector<8x16xi32> to vector<8x1xi32>
    %240 = vector.broadcast %239 : vector<8x1xi32> to vector<8x256xi32>
    %241 = arith.cmpi eq, %240, %102 : vector<8x256xi32>
    %242 = arith.extui %241 : vector<8x256xi1> to vector<8x256xi32>
    %243 = arith.sitofp %242 : vector<8x256xi32> to vector<8x256xf32>
    %244 = vector.extract_strided_slice %101 {offsets = [0, 15], sizes = [8, 1], strides = [1, 1]} : vector<8x16xf32> to vector<8x1xf32>
    %245 = vector.broadcast %244 : vector<8x1xf32> to vector<8x256xf32>
    %246 = arith.mulf %243, %245 : vector<8x256xf32>
    %247 = arith.addf %238, %246 : vector<8x256xf32>
    %cst_22 = arith.constant dense<0.000000e+00> : vector<8xf32>
    %248 = vector.multi_reduction <add>, %101, %cst_22 [1] : vector<8x16xf32> to vector<8xf32>
    %249 = vector.shape_cast %248 : vector<8xf32> to vector<8x1xf32>
    %cst_23 = arith.constant 1.000000e+00 : f32
    %250 = vector.broadcast %cst_23 : f32 to vector<8x1xf32>
    %251 = arith.maximumf %249, %250 : vector<8x1xf32>
    %c0_24 = arith.constant 0 : index
    %c0_25 = arith.constant 0 : index
    %252 = vector.load %arg4[%c0_24, %c0_25] : memref<256x128xf32, #tpu.memory_space<vmem>>, vector<256x128xf32>
    %cst_26 = arith.constant dense<0.000000e+00> : vector<8x128xf32>
    %253 = tpu.matmul %247, %252, %cst_26 {dimension_numbers = #tpu.dot_dimension_numbers<[1], [0], [0], [1], [0, 0, 1, 1], [], []>} : vector<8x256xf32>, vector<256x128xf32>, vector<8x128xf32> -> vector<8x128xf32>
    %254 = vector.broadcast %251 : vector<8x1xf32> to vector<8x128xf32>
    %255 = arith.divf %253, %254 : vector<8x128xf32>
    %c0_27 = arith.constant 0 : index
    %c0_28 = arith.constant 0 : index
    %c0_29 = arith.constant 0 : index
    %256 = vector.load %arg7[%c0_27, %c0_28, %c0_29] : memref<2x8x128xf32, #tpu.memory_space<vmem>>, vector<2x8x128xf32>
    %257 = vector.shape_cast %256 : vector<2x8x128xf32> to vector<2x1x8x128xf32>
    %258 = vector.shape_cast %255 : vector<8x128xf32> to vector<2x4x128xf32>
    %259 = vector.shape_cast %258 : vector<2x4x128xf32> to vector<2x4x1x128xf32>
    %260 = vector.broadcast %257 : vector<2x1x8x128xf32> to vector<2x4x8x128xf32>
    %261 = vector.broadcast %259 : vector<2x4x1x128xf32> to vector<2x4x8x128xf32>
    %262 = arith.addf %260, %261 : vector<2x4x8x128xf32>
    %263 = math.tanh %262 : vector<2x4x8x128xf32>
    %264 = vector.shape_cast %263 : vector<2x4x8x128xf32> to vector<64x128xf32>
    %265 = arith.truncf %264 : vector<64x128xf32> to vector<64x128xbf16>
    %c0_30 = arith.constant 0 : index
    %c0_31 = arith.constant 0 : index
    %266 = vector.load %arg8[%c0_30, %c0_31] : memref<128x256xbf16, #tpu.memory_space<vmem>>, vector<128x256xbf16>
    %cst_32 = arith.constant dense<0.000000e+00> : vector<64x256xf32>
    %267 = tpu.matmul %265, %266, %cst_32 {dimension_numbers = #tpu.dot_dimension_numbers<[1], [0], [0], [1], [0, 0, 1, 1], [], []>} : vector<64x128xbf16>, vector<128x256xbf16>, vector<64x256xf32> -> vector<64x256xf32>
    %c0_33 = arith.constant 0 : index
    %c0_34 = arith.constant 0 : index
    %268 = vector.load %arg9[%c0_33, %c0_34] : memref<1x256xf32, #tpu.memory_space<vmem>>, vector<1x256xf32>
    %269 = vector.broadcast %268 : vector<1x256xf32> to vector<64x256xf32>
    %270 = arith.addf %267, %269 : vector<64x256xf32>
    %c0_35 = arith.constant 0 : index
    %c0_36 = arith.constant 0 : index
    %271 = vector.load %arg11[%c0_35, %c0_36] : memref<64x256xf32, #tpu.memory_space<vmem>>, vector<64x256xf32>
    tpu.vector_store %arg11[%c0_35, %c0_36], %270 {strides = array<i32>} : memref<64x256xf32, #tpu.memory_space<vmem>>, vector<64x256xf32>,
    %272 = tpu.iota {dimensions = array<i32: 1>} : vector<1x256xi32>
    %273 = vector.extract_strided_slice %270 {offsets = [0, 0], sizes = [8, 256], strides = [1, 1]} : vector<64x256xf32> to vector<8x256xf32>
    %cst_37 = arith.constant dense<0xFF800000> : vector<8xf32>
    %274 = vector.multi_reduction <maximumf>, %273, %cst_37 [1] : vector<8x256xf32> to vector<8xf32>
    %275 = vector.shape_cast %274 : vector<8xf32> to vector<8x1xf32>
    %276 = vector.broadcast %275 : vector<8x1xf32> to vector<8x256xf32>
    %277 = arith.subf %273, %276 : vector<8x256xf32>
    %278 = math.exp %277 : vector<8x256xf32>
    %cst_38 = arith.constant dense<0.000000e+00> : vector<8xf32>
    %279 = vector.multi_reduction <add>, %278, %cst_38 [1] : vector<8x256xf32> to vector<8xf32>
    %280 = vector.shape_cast %279 : vector<8xf32> to vector<8x1xf32>
    %281 = math.log %280 : vector<8x1xf32>
    %282 = arith.addf %275, %281 : vector<8x1xf32>
    %283 = vector.broadcast %282 : vector<8x1xf32> to vector<8x256xf32>
    %284 = arith.subf %273, %283 : vector<8x256xf32>
    %285 = vector.extract_strided_slice %85 {offsets = [0, 0], sizes = [1, 1], strides = [1, 1]} : vector<1x4xf32> to vector<1x1xf32>
    %286 = vector.broadcast %285 : vector<1x1xf32> to vector<8x256xf32>
    %287 = arith.addf %284, %286 : vector<8x256xf32>
    %cst_39 = arith.constant 1.000000e+00 : f32
    %288 = vector.broadcast %cst_39 : f32 to vector<8x256xf32>
    %289 = vector.extract_strided_slice %270 {offsets = [8, 0], sizes = [8, 256], strides = [1, 1]} : vector<64x256xf32> to vector<8x256xf32>
    %cst_40 = arith.constant dense<0xFF800000> : vector<8xf32>
    %290 = vector.multi_reduction <maximumf>, %289, %cst_40 [1] : vector<8x256xf32> to vector<8xf32>
    %291 = vector.shape_cast %290 : vector<8xf32> to vector<8x1xf32>
    %292 = vector.broadcast %291 : vector<8x1xf32> to vector<8x256xf32>
    %293 = arith.subf %289, %292 : vector<8x256xf32>
    %294 = math.exp %293 : vector<8x256xf32>
    %cst_41 = arith.constant dense<0.000000e+00> : vector<8xf32>
    %295 = vector.multi_reduction <add>, %294, %cst_41 [1] : vector<8x256xf32> to vector<8xf32>
    %296 = vector.shape_cast %295 : vector<8xf32> to vector<8x1xf32>
    %297 = math.log %296 : vector<8x1xf32>
    %298 = arith.addf %291, %297 : vector<8x1xf32>
    %299 = vector.broadcast %298 : vector<8x1xf32> to vector<8x256xf32>
    %300 = arith.subf %289, %299 : vector<8x256xf32>
    %301 = vector.extract_strided_slice %85 {offsets = [0, 1], sizes = [1, 1], strides = [1, 1]} : vector<1x4xf32> to vector<1x1xf32>
    %302 = vector.broadcast %301 : vector<1x1xf32> to vector<8x256xf32>
    %303 = arith.addf %300, %302 : vector<8x256xf32>
    %304 = arith.maximumf %287, %303 : vector<8x256xf32>
    %305 = arith.subf %287, %304 : vector<8x256xf32>
    %306 = math.exp %305 : vector<8x256xf32>
    %307 = arith.mulf %288, %306 : vector<8x256xf32>
    %308 = arith.subf %303, %304 : vector<8x256xf32>
    %309 = math.exp %308 : vector<8x256xf32>
    %310 = arith.addf %307, %309 : vector<8x256xf32>
    %311 = vector.extract_strided_slice %270 {offsets = [16, 0], sizes = [8, 256], strides = [1, 1]} : vector<64x256xf32> to vector<8x256xf32>
    %cst_42 = arith.constant dense<0xFF800000> : vector<8xf32>
    %312 = vector.multi_reduction <maximumf>, %311, %cst_42 [1] : vector<8x256xf32> to vector<8xf32>
    %313 = vector.shape_cast %312 : vector<8xf32> to vector<8x1xf32>
    %314 = vector.broadcast %313 : vector<8x1xf32> to vector<8x256xf32>
    %315 = arith.subf %311, %314 : vector<8x256xf32>
    %316 = math.exp %315 : vector<8x256xf32>
    %cst_43 = arith.constant dense<0.000000e+00> : vector<8xf32>
    %317 = vector.multi_reduction <add>, %316, %cst_43 [1] : vector<8x256xf32> to vector<8xf32>
    %318 = vector.shape_cast %317 : vector<8xf32> to vector<8x1xf32>
    %319 = math.log %318 : vector<8x1xf32>
    %320 = arith.addf %313, %319 : vector<8x1xf32>
    %321 = vector.broadcast %320 : vector<8x1xf32> to vector<8x256xf32>
    %322 = arith.subf %311, %321 : vector<8x256xf32>
    %323 = vector.extract_strided_slice %85 {offsets = [0, 2], sizes = [1, 1], strides = [1, 1]} : vector<1x4xf32> to vector<1x1xf32>
    %324 = vector.broadcast %323 : vector<1x1xf32> to vector<8x256xf32>
    %325 = arith.addf %322, %324 : vector<8x256xf32>
    %326 = arith.maximumf %304, %325 : vector<8x256xf32>
    %327 = arith.subf %304, %326 : vector<8x256xf32>
    %328 = math.exp %327 : vector<8x256xf32>
    %329 = arith.mulf %310, %328 : vector<8x256xf32>
    %330 = arith.subf %325, %326 : vector<8x256xf32>
    %331 = math.exp %330 : vector<8x256xf32>
    %332 = arith.addf %329, %331 : vector<8x256xf32>
    %333 = vector.extract_strided_slice %270 {offsets = [24, 0], sizes = [8, 256], strides = [1, 1]} : vector<64x256xf32> to vector<8x256xf32>
    %cst_44 = arith.constant dense<0xFF800000> : vector<8xf32>
    %334 = vector.multi_reduction <maximumf>, %333, %cst_44 [1] : vector<8x256xf32> to vector<8xf32>
    %335 = vector.shape_cast %334 : vector<8xf32> to vector<8x1xf32>
    %336 = vector.broadcast %335 : vector<8x1xf32> to vector<8x256xf32>
    %337 = arith.subf %333, %336 : vector<8x256xf32>
    %338 = math.exp %337 : vector<8x256xf32>
    %cst_45 = arith.constant dense<0.000000e+00> : vector<8xf32>
    %339 = vector.multi_reduction <add>, %338, %cst_45 [1] : vector<8x256xf32> to vector<8xf32>
    %340 = vector.shape_cast %339 : vector<8xf32> to vector<8x1xf32>
    %341 = math.log %340 : vector<8x1xf32>
    %342 = arith.addf %335, %341 : vector<8x1xf32>
    %343 = vector.broadcast %342 : vector<8x1xf32> to vector<8x256xf32>
    %344 = arith.subf %333, %343 : vector<8x256xf32>
    %345 = vector.extract_strided_slice %85 {offsets = [0, 3], sizes = [1, 1], strides = [1, 1]} : vector<1x4xf32> to vector<1x1xf32>
    %346 = vector.broadcast %345 : vector<1x1xf32> to vector<8x256xf32>
    %347 = arith.addf %344, %346 : vector<8x256xf32>
    %348 = arith.maximumf %326, %347 : vector<8x256xf32>
    %349 = arith.subf %326, %348 : vector<8x256xf32>
    %350 = math.exp %349 : vector<8x256xf32>
    %351 = arith.mulf %332, %350 : vector<8x256xf32>
    %352 = arith.subf %347, %348 : vector<8x256xf32>
    %353 = math.exp %352 : vector<8x256xf32>
    %354 = arith.addf %351, %353 : vector<8x256xf32>
    %355 = math.log %354 : vector<8x256xf32>
    %356 = arith.addf %348, %355 : vector<8x256xf32>
    %c0_46 = arith.constant 0 : index
    %c0_47 = arith.constant 0 : index
    %c0_48 = arith.constant 0 : index
    %357 = vector.load %arg12[%c0_46, %c0_47, %c0_48] : memref<2x8x256xf32, #tpu.memory_space<vmem>>, vector<1x8x256xf32>
    %358 = vector.shape_cast %357 : vector<1x8x256xf32> to vector<8x256xf32>
    %359 = vector.shape_cast %356 : vector<8x256xf32> to vector<1x8x256xf32>
    tpu.vector_store %arg12[%c0_46, %c0_47, %c0_48], %359 {strides = array<i32>} : memref<2x8x256xf32, #tpu.memory_space<vmem>>, vector<1x8x256xf32>,
    %cst_49 = arith.constant 0.000000e+00 : f32
    %360 = vector.broadcast %cst_49 : f32 to vector<1x1xf32>
    %c0_50 = arith.constant 0 : index
    %361 = memref.load %arg10[%c0_50] : memref<16xi32, #tpu.memory_space<smem>>
    %362 = vector.extract_strided_slice %356 {offsets = [0, 0], sizes = [1, 256], strides = [1, 1]} : vector<8x256xf32> to vector<1x256xf32>
    %363 = vector.broadcast %361 : i32 to vector<1x256xi32>
    %364 = arith.cmpi eq, %272, %363 : vector<1x256xi32>
    %cst_51 = arith.constant 0.000000e+00 : f32
    %365 = vector.broadcast %cst_51 : f32 to vector<1x256xf32>
    %366 = arith.select %364, %362, %365 : vector<1x256xi1>, vector<1x256xf32>
    %cst_52 = arith.constant dense<0.000000e+00> : vector<1xf32>
    %367 = vector.multi_reduction <add>, %366, %cst_52 [1] : vector<1x256xf32> to vector<1xf32>
    %368 = vector.shape_cast %367 : vector<1xf32> to vector<1x1xf32>
    %c0_i32 = arith.constant 0 : i32
    %369 = arith.cmpi eq, %361, %c0_i32 : i32
    %cst_53 = arith.constant 0.000000e+00 : f32
    %cst_54 = arith.constant 1.000000e+00 : f32
    %370 = arith.select %369, %cst_53, %cst_54 : f32
    %371 = vector.broadcast %370 : f32 to vector<1x1xf32>
    %372 = arith.mulf %368, %371 : vector<1x1xf32>
    %373 = arith.addf %360, %372 : vector<1x1xf32>
    %c1_55 = arith.constant 1 : index
    %374 = memref.load %arg10[%c1_55] : memref<16xi32, #tpu.memory_space<smem>>
    %375 = vector.extract_strided_slice %356 {offsets = [1, 0], sizes = [1, 256], strides = [1, 1]} : vector<8x256xf32> to vector<1x256xf32>
    %376 = vector.broadcast %374 : i32 to vector<1x256xi32>
    %377 = arith.cmpi eq, %272, %376 : vector<1x256xi32>
    %cst_56 = arith.constant 0.000000e+00 : f32
    %378 = vector.broadcast %cst_56 : f32 to vector<1x256xf32>
    %379 = arith.select %377, %375, %378 : vector<1x256xi1>, vector<1x256xf32>
    %cst_57 = arith.constant dense<0.000000e+00> : vector<1xf32>
    %380 = vector.multi_reduction <add>, %379, %cst_57 [1] : vector<1x256xf32> to vector<1xf32>
    %381 = vector.shape_cast %380 : vector<1xf32> to vector<1x1xf32>
    %c0_i32_58 = arith.constant 0 : i32
    %382 = arith.cmpi eq, %374, %c0_i32_58 : i32
    %cst_59 = arith.constant 0.000000e+00 : f32
    %cst_60 = arith.constant 1.000000e+00 : f32
    %383 = arith.select %382, %cst_59, %cst_60 : f32
    %384 = vector.broadcast %383 : f32 to vector<1x1xf32>
    %385 = arith.mulf %381, %384 : vector<1x1xf32>
    %386 = arith.addf %373, %385 : vector<1x1xf32>
    %c2 = arith.constant 2 : index
    %387 = memref.load %arg10[%c2] : memref<16xi32, #tpu.memory_space<smem>>
    %388 = vector.extract_strided_slice %356 {offsets = [2, 0], sizes = [1, 256], strides = [1, 1]} : vector<8x256xf32> to vector<1x256xf32>
    %389 = vector.broadcast %387 : i32 to vector<1x256xi32>
    %390 = arith.cmpi eq, %272, %389 : vector<1x256xi32>
    %cst_61 = arith.constant 0.000000e+00 : f32
    %391 = vector.broadcast %cst_61 : f32 to vector<1x256xf32>
    %392 = arith.select %390, %388, %391 : vector<1x256xi1>, vector<1x256xf32>
    %cst_62 = arith.constant dense<0.000000e+00> : vector<1xf32>
    %393 = vector.multi_reduction <add>, %392, %cst_62 [1] : vector<1x256xf32> to vector<1xf32>
    %394 = vector.shape_cast %393 : vector<1xf32> to vector<1x1xf32>
    %c0_i32_63 = arith.constant 0 : i32
    %395 = arith.cmpi eq, %387, %c0_i32_63 : i32
    %cst_64 = arith.constant 0.000000e+00 : f32
    %cst_65 = arith.constant 1.000000e+00 : f32
    %396 = arith.select %395, %cst_64, %cst_65 : f32
    %397 = vector.broadcast %396 : f32 to vector<1x1xf32>
    %398 = arith.mulf %394, %397 : vector<1x1xf32>
    %399 = arith.addf %386, %398 : vector<1x1xf32>
    %c3 = arith.constant 3 : index
    %400 = memref.load %arg10[%c3] : memref<16xi32, #tpu.memory_space<smem>>
    %401 = vector.extract_strided_slice %356 {offsets = [3, 0], sizes = [1, 256], strides = [1, 1]} : vector<8x256xf32> to vector<1x256xf32>
    %402 = vector.broadcast %400 : i32 to vector<1x256xi32>
    %403 = arith.cmpi eq, %272, %402 : vector<1x256xi32>
    %cst_66 = arith.constant 0.000000e+00 : f32
    %404 = vector.broadcast %cst_66 : f32 to vector<1x256xf32>
    %405 = arith.select %403, %401, %404 : vector<1x256xi1>, vector<1x256xf32>
    %cst_67 = arith.constant dense<0.000000e+00> : vector<1xf32>
    %406 = vector.multi_reduction <add>, %405, %cst_67 [1] : vector<1x256xf32> to vector<1xf32>
    %407 = vector.shape_cast %406 : vector<1xf32> to vector<1x1xf32>
    %c0_i32_68 = arith.constant 0 : i32
    %408 = arith.cmpi eq, %400, %c0_i32_68 : i32
    %cst_69 = arith.constant 0.000000e+00 : f32
    %cst_70 = arith.constant 1.000000e+00 : f32
    %409 = arith.select %408, %cst_69, %cst_70 : f32
    %410 = vector.broadcast %409 : f32 to vector<1x1xf32>
    %411 = arith.mulf %407, %410 : vector<1x1xf32>
    %412 = arith.addf %399, %411 : vector<1x1xf32>
    %c4 = arith.constant 4 : index
    %413 = memref.load %arg10[%c4] : memref<16xi32, #tpu.memory_space<smem>>
    %414 = vector.extract_strided_slice %356 {offsets = [4, 0], sizes = [1, 256], strides = [1, 1]} : vector<8x256xf32> to vector<1x256xf32>
    %415 = vector.broadcast %413 : i32 to vector<1x256xi32>
    %416 = arith.cmpi eq, %272, %415 : vector<1x256xi32>
    %cst_71 = arith.constant 0.000000e+00 : f32
    %417 = vector.broadcast %cst_71 : f32 to vector<1x256xf32>
    %418 = arith.select %416, %414, %417 : vector<1x256xi1>, vector<1x256xf32>
    %cst_72 = arith.constant dense<0.000000e+00> : vector<1xf32>
    %419 = vector.multi_reduction <add>, %418, %cst_72 [1] : vector<1x256xf32> to vector<1xf32>
    %420 = vector.shape_cast %419 : vector<1xf32> to vector<1x1xf32>
    %c0_i32_73 = arith.constant 0 : i32
    %421 = arith.cmpi eq, %413, %c0_i32_73 : i32
    %cst_74 = arith.constant 0.000000e+00 : f32
    %cst_75 = arith.constant 1.000000e+00 : f32
    %422 = arith.select %421, %cst_74, %cst_75 : f32
    %423 = vector.broadcast %422 : f32 to vector<1x1xf32>
    %424 = arith.mulf %420, %423 : vector<1x1xf32>
    %425 = arith.addf %412, %424 : vector<1x1xf32>
    %c5 = arith.constant 5 : index
    %426 = memref.load %arg10[%c5] : memref<16xi32, #tpu.memory_space<smem>>
    %427 = vector.extract_strided_slice %356 {offsets = [5, 0], sizes = [1, 256], strides = [1, 1]} : vector<8x256xf32> to vector<1x256xf32>
    %428 = vector.broadcast %426 : i32 to vector<1x256xi32>
    %429 = arith.cmpi eq, %272, %428 : vector<1x256xi32>
    %cst_76 = arith.constant 0.000000e+00 : f32
    %430 = vector.broadcast %cst_76 : f32 to vector<1x256xf32>
    %431 = arith.select %429, %427, %430 : vector<1x256xi1>, vector<1x256xf32>
    %cst_77 = arith.constant dense<0.000000e+00> : vector<1xf32>
    %432 = vector.multi_reduction <add>, %431, %cst_77 [1] : vector<1x256xf32> to vector<1xf32>
    %433 = vector.shape_cast %432 : vector<1xf32> to vector<1x1xf32>
    %c0_i32_78 = arith.constant 0 : i32
    %434 = arith.cmpi eq, %426, %c0_i32_78 : i32
    %cst_79 = arith.constant 0.000000e+00 : f32
    %cst_80 = arith.constant 1.000000e+00 : f32
    %435 = arith.select %434, %cst_79, %cst_80 : f32
    %436 = vector.broadcast %435 : f32 to vector<1x1xf32>
    %437 = arith.mulf %433, %436 : vector<1x1xf32>
    %438 = arith.addf %425, %437 : vector<1x1xf32>
    %c6 = arith.constant 6 : index
    %439 = memref.load %arg10[%c6] : memref<16xi32, #tpu.memory_space<smem>>
    %440 = vector.extract_strided_slice %356 {offsets = [6, 0], sizes = [1, 256], strides = [1, 1]} : vector<8x256xf32> to vector<1x256xf32>
    %441 = vector.broadcast %439 : i32 to vector<1x256xi32>
    %442 = arith.cmpi eq, %272, %441 : vector<1x256xi32>
    %cst_81 = arith.constant 0.000000e+00 : f32
    %443 = vector.broadcast %cst_81 : f32 to vector<1x256xf32>
    %444 = arith.select %442, %440, %443 : vector<1x256xi1>, vector<1x256xf32>
    %cst_82 = arith.constant dense<0.000000e+00> : vector<1xf32>
    %445 = vector.multi_reduction <add>, %444, %cst_82 [1] : vector<1x256xf32> to vector<1xf32>
    %446 = vector.shape_cast %445 : vector<1xf32> to vector<1x1xf32>
    %c0_i32_83 = arith.constant 0 : i32
    %447 = arith.cmpi eq, %439, %c0_i32_83 : i32
    %cst_84 = arith.constant 0.000000e+00 : f32
    %cst_85 = arith.constant 1.000000e+00 : f32
    %448 = arith.select %447, %cst_84, %cst_85 : f32
    %449 = vector.broadcast %448 : f32 to vector<1x1xf32>
    %450 = arith.mulf %446, %449 : vector<1x1xf32>
    %451 = arith.addf %438, %450 : vector<1x1xf32>
    %c7 = arith.constant 7 : index
    %452 = memref.load %arg10[%c7] : memref<16xi32, #tpu.memory_space<smem>>
    %453 = vector.extract_strided_slice %356 {offsets = [7, 0], sizes = [1, 256], strides = [1, 1]} : vector<8x256xf32> to vector<1x256xf32>
    %454 = vector.broadcast %452 : i32 to vector<1x256xi32>
    %455 = arith.cmpi eq, %272, %454 : vector<1x256xi32>
    %cst_86 = arith.constant 0.000000e+00 : f32
    %456 = vector.broadcast %cst_86 : f32 to vector<1x256xf32>
    %457 = arith.select %455, %453, %456 : vector<1x256xi1>, vector<1x256xf32>
    %cst_87 = arith.constant dense<0.000000e+00> : vector<1xf32>
    %458 = vector.multi_reduction <add>, %457, %cst_87 [1] : vector<1x256xf32> to vector<1xf32>
    %459 = vector.shape_cast %458 : vector<1xf32> to vector<1x1xf32>
    %c0_i32_88 = arith.constant 0 : i32
    %460 = arith.cmpi eq, %452, %c0_i32_88 : i32
    %cst_89 = arith.constant 0.000000e+00 : f32
    %cst_90 = arith.constant 1.000000e+00 : f32
    %461 = arith.select %460, %cst_89, %cst_90 : f32
    %462 = vector.broadcast %461 : f32 to vector<1x1xf32>
    %463 = arith.mulf %459, %462 : vector<1x1xf32>
    %464 = arith.addf %451, %463 : vector<1x1xf32>
    %cst_91 = arith.constant 0.000000e+00 : f32
    %465 = vector.broadcast %cst_91 : f32 to vector<1x1xf32>
    %466 = arith.subf %465, %464 : vector<1x1xf32>
    %c0_92 = arith.constant 0 : index
    %c0_93 = arith.constant 0 : index
    %467 = vector.load %arg14[%c0_92, %c0_93] : memref<1x2xf32, #tpu.memory_space<vmem>>, vector<1x1xf32>
    tpu.vector_store %arg14[%c0_92, %c0_93], %466 {strides = array<i32>} : memref<1x2xf32, #tpu.memory_space<vmem>>, vector<1x1xf32>,
    %468 = vector.extract_strided_slice %270 {offsets = [32, 0], sizes = [8, 256], strides = [1, 1]} : vector<64x256xf32> to vector<8x256xf32>
    %cst_94 = arith.constant dense<0xFF800000> : vector<8xf32>
    %469 = vector.multi_reduction <maximumf>, %468, %cst_94 [1] : vector<8x256xf32> to vector<8xf32>
    %470 = vector.shape_cast %469 : vector<8xf32> to vector<8x1xf32>
    %471 = vector.broadcast %470 : vector<8x1xf32> to vector<8x256xf32>
    %472 = arith.subf %468, %471 : vector<8x256xf32>
    %473 = math.exp %472 : vector<8x256xf32>
    %cst_95 = arith.constant dense<0.000000e+00> : vector<8xf32>
    %474 = vector.multi_reduction <add>, %473, %cst_95 [1] : vector<8x256xf32> to vector<8xf32>
    %475 = vector.shape_cast %474 : vector<8xf32> to vector<8x1xf32>
    %476 = math.log %475 : vector<8x1xf32>
    %477 = arith.addf %470, %476 : vector<8x1xf32>
    %478 = vector.broadcast %477 : vector<8x1xf32> to vector<8x256xf32>
    %479 = arith.subf %468, %478 : vector<8x256xf32>
    %480 = vector.extract_strided_slice %98 {offsets = [0, 0], sizes = [1, 1], strides = [1, 1]} : vector<1x4xf32> to vector<1x1xf32>
    %481 = vector.broadcast %480 : vector<1x1xf32> to vector<8x256xf32>
    %482 = arith.addf %479, %481 : vector<8x256xf32>
    %cst_96 = arith.constant 1.000000e+00 : f32
    %483 = vector.broadcast %cst_96 : f32 to vector<8x256xf32>
    %484 = vector.extract_strided_slice %270 {offsets = [40, 0], sizes = [8, 256], strides = [1, 1]} : vector<64x256xf32> to vector<8x256xf32>
    %cst_97 = arith.constant dense<0xFF800000> : vector<8xf32>
    %485 = vector.multi_reduction <maximumf>, %484, %cst_97 [1] : vector<8x256xf32> to vector<8xf32>
    %486 = vector.shape_cast %485 : vector<8xf32> to vector<8x1xf32>
    %487 = vector.broadcast %486 : vector<8x1xf32> to vector<8x256xf32>
    %488 = arith.subf %484, %487 : vector<8x256xf32>
    %489 = math.exp %488 : vector<8x256xf32>
    %cst_98 = arith.constant dense<0.000000e+00> : vector<8xf32>
    %490 = vector.multi_reduction <add>, %489, %cst_98 [1] : vector<8x256xf32> to vector<8xf32>
    %491 = vector.shape_cast %490 : vector<8xf32> to vector<8x1xf32>
    %492 = math.log %491 : vector<8x1xf32>
    %493 = arith.addf %486, %492 : vector<8x1xf32>
    %494 = vector.broadcast %493 : vector<8x1xf32> to vector<8x256xf32>
    %495 = arith.subf %484, %494 : vector<8x256xf32>
    %496 = vector.extract_strided_slice %98 {offsets = [0, 1], sizes = [1, 1], strides = [1, 1]} : vector<1x4xf32> to vector<1x1xf32>
    %497 = vector.broadcast %496 : vector<1x1xf32> to vector<8x256xf32>
    %498 = arith.addf %495, %497 : vector<8x256xf32>
    %499 = arith.maximumf %482, %498 : vector<8x256xf32>
    %500 = arith.subf %482, %499 : vector<8x256xf32>
    %501 = math.exp %500 : vector<8x256xf32>
    %502 = arith.mulf %483, %501 : vector<8x256xf32>
    %503 = arith.subf %498, %499 : vector<8x256xf32>
    %504 = math.exp %503 : vector<8x256xf32>
    %505 = arith.addf %502, %504 : vector<8x256xf32>
    %506 = vector.extract_strided_slice %270 {offsets = [48, 0], sizes = [8, 256], strides = [1, 1]} : vector<64x256xf32> to vector<8x256xf32>
    %cst_99 = arith.constant dense<0xFF800000> : vector<8xf32>
    %507 = vector.multi_reduction <maximumf>, %506, %cst_99 [1] : vector<8x256xf32> to vector<8xf32>
    %508 = vector.shape_cast %507 : vector<8xf32> to vector<8x1xf32>
    %509 = vector.broadcast %508 : vector<8x1xf32> to vector<8x256xf32>
    %510 = arith.subf %506, %509 : vector<8x256xf32>
    %511 = math.exp %510 : vector<8x256xf32>
    %cst_100 = arith.constant dense<0.000000e+00> : vector<8xf32>
    %512 = vector.multi_reduction <add>, %511, %cst_100 [1] : vector<8x256xf32> to vector<8xf32>
    %513 = vector.shape_cast %512 : vector<8xf32> to vector<8x1xf32>
    %514 = math.log %513 : vector<8x1xf32>
    %515 = arith.addf %508, %514 : vector<8x1xf32>
    %516 = vector.broadcast %515 : vector<8x1xf32> to vector<8x256xf32>
    %517 = arith.subf %506, %516 : vector<8x256xf32>
    %518 = vector.extract_strided_slice %98 {offsets = [0, 2], sizes = [1, 1], strides = [1, 1]} : vector<1x4xf32> to vector<1x1xf32>
    %519 = vector.broadcast %518 : vector<1x1xf32> to vector<8x256xf32>
    %520 = arith.addf %517, %519 : vector<8x256xf32>
    %521 = arith.maximumf %499, %520 : vector<8x256xf32>
    %522 = arith.subf %499, %521 : vector<8x256xf32>
    %523 = math.exp %522 : vector<8x256xf32>
    %524 = arith.mulf %505, %523 : vector<8x256xf32>
    %525 = arith.subf %520, %521 : vector<8x256xf32>
    %526 = math.exp %525 : vector<8x256xf32>
    %527 = arith.addf %524, %526 : vector<8x256xf32>
    %528 = vector.extract_strided_slice %270 {offsets = [56, 0], sizes = [8, 256], strides = [1, 1]} : vector<64x256xf32> to vector<8x256xf32>
    %cst_101 = arith.constant dense<0xFF800000> : vector<8xf32>
    %529 = vector.multi_reduction <maximumf>, %528, %cst_101 [1] : vector<8x256xf32> to vector<8xf32>
    %530 = vector.shape_cast %529 : vector<8xf32> to vector<8x1xf32>
    %531 = vector.broadcast %530 : vector<8x1xf32> to vector<8x256xf32>
    %532 = arith.subf %528, %531 : vector<8x256xf32>
    %533 = math.exp %532 : vector<8x256xf32>
    %cst_102 = arith.constant dense<0.000000e+00> : vector<8xf32>
    %534 = vector.multi_reduction <add>, %533, %cst_102 [1] : vector<8x256xf32> to vector<8xf32>
    %535 = vector.shape_cast %534 : vector<8xf32> to vector<8x1xf32>
    %536 = math.log %535 : vector<8x1xf32>
    %537 = arith.addf %530, %536 : vector<8x1xf32>
    %538 = vector.broadcast %537 : vector<8x1xf32> to vector<8x256xf32>
    %539 = arith.subf %528, %538 : vector<8x256xf32>
    %540 = vector.extract_strided_slice %98 {offsets = [0, 3], sizes = [1, 1], strides = [1, 1]} : vector<1x4xf32> to vector<1x1xf32>
    %541 = vector.broadcast %540 : vector<1x1xf32> to vector<8x256xf32>
    %542 = arith.addf %539, %541 : vector<8x256xf32>
    %543 = arith.maximumf %521, %542 : vector<8x256xf32>
    %544 = arith.subf %521, %543 : vector<8x256xf32>
    %545 = math.exp %544 : vector<8x256xf32>
    %546 = arith.mulf %527, %545 : vector<8x256xf32>
    %547 = arith.subf %542, %543 : vector<8x256xf32>
    %548 = math.exp %547 : vector<8x256xf32>
    %549 = arith.addf %546, %548 : vector<8x256xf32>
    %550 = math.log %549 : vector<8x256xf32>
    %551 = arith.addf %543, %550 : vector<8x256xf32>
    %c1_103 = arith.constant 1 : index
    %c0_104 = arith.constant 0 : index
    %c0_105 = arith.constant 0 : index
    %552 = vector.load %arg12[%c1_103, %c0_104, %c0_105] : memref<2x8x256xf32, #tpu.memory_space<vmem>>, vector<1x8x256xf32>
    %553 = vector.shape_cast %552 : vector<1x8x256xf32> to vector<8x256xf32>
    %554 = vector.shape_cast %551 : vector<8x256xf32> to vector<1x8x256xf32>
    tpu.vector_store %arg12[%c1_103, %c0_104, %c0_105], %554 {strides = array<i32>} : memref<2x8x256xf32, #tpu.memory_space<vmem>>, vector<1x8x256xf32>,
    %cst_106 = arith.constant 0.000000e+00 : f32
    %555 = vector.broadcast %cst_106 : f32 to vector<1x1xf32>
    %c8 = arith.constant 8 : index
    %556 = memref.load %arg10[%c8] : memref<16xi32, #tpu.memory_space<smem>>
    %557 = vector.extract_strided_slice %551 {offsets = [0, 0], sizes = [1, 256], strides = [1, 1]} : vector<8x256xf32> to vector<1x256xf32>
    %558 = vector.broadcast %556 : i32 to vector<1x256xi32>
    %559 = arith.cmpi eq, %272, %558 : vector<1x256xi32>
    %cst_107 = arith.constant 0.000000e+00 : f32
    %560 = vector.broadcast %cst_107 : f32 to vector<1x256xf32>
    %561 = arith.select %559, %557, %560 : vector<1x256xi1>, vector<1x256xf32>
    %cst_108 = arith.constant dense<0.000000e+00> : vector<1xf32>
    %562 = vector.multi_reduction <add>, %561, %cst_108 [1] : vector<1x256xf32> to vector<1xf32>
    %563 = vector.shape_cast %562 : vector<1xf32> to vector<1x1xf32>
    %c0_i32_109 = arith.constant 0 : i32
    %564 = arith.cmpi eq, %556, %c0_i32_109 : i32
    %cst_110 = arith.constant 0.000000e+00 : f32
    %cst_111 = arith.constant 1.000000e+00 : f32
    %565 = arith.select %564, %cst_110, %cst_111 : f32
    %566 = vector.broadcast %565 : f32 to vector<1x1xf32>
    %567 = arith.mulf %563, %566 : vector<1x1xf32>
    %568 = arith.addf %555, %567 : vector<1x1xf32>
    %c9 = arith.constant 9 : index
    %569 = memref.load %arg10[%c9] : memref<16xi32, #tpu.memory_space<smem>>
    %570 = vector.extract_strided_slice %551 {offsets = [1, 0], sizes = [1, 256], strides = [1, 1]} : vector<8x256xf32> to vector<1x256xf32>
    %571 = vector.broadcast %569 : i32 to vector<1x256xi32>
    %572 = arith.cmpi eq, %272, %571 : vector<1x256xi32>
    %cst_112 = arith.constant 0.000000e+00 : f32
    %573 = vector.broadcast %cst_112 : f32 to vector<1x256xf32>
    %574 = arith.select %572, %570, %573 : vector<1x256xi1>, vector<1x256xf32>
    %cst_113 = arith.constant dense<0.000000e+00> : vector<1xf32>
    %575 = vector.multi_reduction <add>, %574, %cst_113 [1] : vector<1x256xf32> to vector<1xf32>
    %576 = vector.shape_cast %575 : vector<1xf32> to vector<1x1xf32>
    %c0_i32_114 = arith.constant 0 : i32
    %577 = arith.cmpi eq, %569, %c0_i32_114 : i32
    %cst_115 = arith.constant 0.000000e+00 : f32
    %cst_116 = arith.constant 1.000000e+00 : f32
    %578 = arith.select %577, %cst_115, %cst_116 : f32
    %579 = vector.broadcast %578 : f32 to vector<1x1xf32>
    %580 = arith.mulf %576, %579 : vector<1x1xf32>
    %581 = arith.addf %568, %580 : vector<1x1xf32>
    %c10 = arith.constant 10 : index
    %582 = memref.load %arg10[%c10] : memref<16xi32, #tpu.memory_space<smem>>
    %583 = vector.extract_strided_slice %551 {offsets = [2, 0], sizes = [1, 256], strides = [1, 1]} : vector<8x256xf32> to vector<1x256xf32>
    %584 = vector.broadcast %582 : i32 to vector<1x256xi32>
    %585 = arith.cmpi eq, %272, %584 : vector<1x256xi32>
    %cst_117 = arith.constant 0.000000e+00 : f32
    %586 = vector.broadcast %cst_117 : f32 to vector<1x256xf32>
    %587 = arith.select %585, %583, %586 : vector<1x256xi1>, vector<1x256xf32>
    %cst_118 = arith.constant dense<0.000000e+00> : vector<1xf32>
    %588 = vector.multi_reduction <add>, %587, %cst_118 [1] : vector<1x256xf32> to vector<1xf32>
    %589 = vector.shape_cast %588 : vector<1xf32> to vector<1x1xf32>
    %c0_i32_119 = arith.constant 0 : i32
    %590 = arith.cmpi eq, %582, %c0_i32_119 : i32
    %cst_120 = arith.constant 0.000000e+00 : f32
    %cst_121 = arith.constant 1.000000e+00 : f32
    %591 = arith.select %590, %cst_120, %cst_121 : f32
    %592 = vector.broadcast %591 : f32 to vector<1x1xf32>
    %593 = arith.mulf %589, %592 : vector<1x1xf32>
    %594 = arith.addf %581, %593 : vector<1x1xf32>
    %c11 = arith.constant 11 : index
    %595 = memref.load %arg10[%c11] : memref<16xi32, #tpu.memory_space<smem>>
    %596 = vector.extract_strided_slice %551 {offsets = [3, 0], sizes = [1, 256], strides = [1, 1]} : vector<8x256xf32> to vector<1x256xf32>
    %597 = vector.broadcast %595 : i32 to vector<1x256xi32>
    %598 = arith.cmpi eq, %272, %597 : vector<1x256xi32>
    %cst_122 = arith.constant 0.000000e+00 : f32
    %599 = vector.broadcast %cst_122 : f32 to vector<1x256xf32>
    %600 = arith.select %598, %596, %599 : vector<1x256xi1>, vector<1x256xf32>
    %cst_123 = arith.constant dense<0.000000e+00> : vector<1xf32>
    %601 = vector.multi_reduction <add>, %600, %cst_123 [1] : vector<1x256xf32> to vector<1xf32>
    %602 = vector.shape_cast %601 : vector<1xf32> to vector<1x1xf32>
    %c0_i32_124 = arith.constant 0 : i32
    %603 = arith.cmpi eq, %595, %c0_i32_124 : i32
    %cst_125 = arith.constant 0.000000e+00 : f32
    %cst_126 = arith.constant 1.000000e+00 : f32
    %604 = arith.select %603, %cst_125, %cst_126 : f32
    %605 = vector.broadcast %604 : f32 to vector<1x1xf32>
    %606 = arith.mulf %602, %605 : vector<1x1xf32>
    %607 = arith.addf %594, %606 : vector<1x1xf32>
    %c12 = arith.constant 12 : index
    %608 = memref.load %arg10[%c12] : memref<16xi32, #tpu.memory_space<smem>>
    %609 = vector.extract_strided_slice %551 {offsets = [4, 0], sizes = [1, 256], strides = [1, 1]} : vector<8x256xf32> to vector<1x256xf32>
    %610 = vector.broadcast %608 : i32 to vector<1x256xi32>
    %611 = arith.cmpi eq, %272, %610 : vector<1x256xi32>
    %cst_127 = arith.constant 0.000000e+00 : f32
    %612 = vector.broadcast %cst_127 : f32 to vector<1x256xf32>
    %613 = arith.select %611, %609, %612 : vector<1x256xi1>, vector<1x256xf32>
    %cst_128 = arith.constant dense<0.000000e+00> : vector<1xf32>
    %614 = vector.multi_reduction <add>, %613, %cst_128 [1] : vector<1x256xf32> to vector<1xf32>
    %615 = vector.shape_cast %614 : vector<1xf32> to vector<1x1xf32>
    %c0_i32_129 = arith.constant 0 : i32
    %616 = arith.cmpi eq, %608, %c0_i32_129 : i32
    %cst_130 = arith.constant 0.000000e+00 : f32
    %cst_131 = arith.constant 1.000000e+00 : f32
    %617 = arith.select %616, %cst_130, %cst_131 : f32
    %618 = vector.broadcast %617 : f32 to vector<1x1xf32>
    %619 = arith.mulf %615, %618 : vector<1x1xf32>
    %620 = arith.addf %607, %619 : vector<1x1xf32>
    %c13 = arith.constant 13 : index
    %621 = memref.load %arg10[%c13] : memref<16xi32, #tpu.memory_space<smem>>
    %622 = vector.extract_strided_slice %551 {offsets = [5, 0], sizes = [1, 256], strides = [1, 1]} : vector<8x256xf32> to vector<1x256xf32>
    %623 = vector.broadcast %621 : i32 to vector<1x256xi32>
    %624 = arith.cmpi eq, %272, %623 : vector<1x256xi32>
    %cst_132 = arith.constant 0.000000e+00 : f32
    %625 = vector.broadcast %cst_132 : f32 to vector<1x256xf32>
    %626 = arith.select %624, %622, %625 : vector<1x256xi1>, vector<1x256xf32>
    %cst_133 = arith.constant dense<0.000000e+00> : vector<1xf32>
    %627 = vector.multi_reduction <add>, %626, %cst_133 [1] : vector<1x256xf32> to vector<1xf32>
    %628 = vector.shape_cast %627 : vector<1xf32> to vector<1x1xf32>
    %c0_i32_134 = arith.constant 0 : i32
    %629 = arith.cmpi eq, %621, %c0_i32_134 : i32
    %cst_135 = arith.constant 0.000000e+00 : f32
    %cst_136 = arith.constant 1.000000e+00 : f32
    %630 = arith.select %629, %cst_135, %cst_136 : f32
    %631 = vector.broadcast %630 : f32 to vector<1x1xf32>
    %632 = arith.mulf %628, %631 : vector<1x1xf32>
    %633 = arith.addf %620, %632 : vector<1x1xf32>
    %c14 = arith.constant 14 : index
    %634 = memref.load %arg10[%c14] : memref<16xi32, #tpu.memory_space<smem>>
    %635 = vector.extract_strided_slice %551 {offsets = [6, 0], sizes = [1, 256], strides = [1, 1]} : vector<8x256xf32> to vector<1x256xf32>
    %636 = vector.broadcast %634 : i32 to vector<1x256xi32>
    %637 = arith.cmpi eq, %272, %636 : vector<1x256xi32>
    %cst_137 = arith.constant 0.000000e+00 : f32
    %638 = vector.broadcast %cst_137 : f32 to vector<1x256xf32>
    %639 = arith.select %637, %635, %638 : vector<1x256xi1>, vector<1x256xf32>
    %cst_138 = arith.constant dense<0.000000e+00> : vector<1xf32>
    %640 = vector.multi_reduction <add>, %639, %cst_138 [1] : vector<1x256xf32> to vector<1xf32>
    %641 = vector.shape_cast %640 : vector<1xf32> to vector<1x1xf32>
    %c0_i32_139 = arith.constant 0 : i32
    %642 = arith.cmpi eq, %634, %c0_i32_139 : i32
    %cst_140 = arith.constant 0.000000e+00 : f32
    %cst_141 = arith.constant 1.000000e+00 : f32
    %643 = arith.select %642, %cst_140, %cst_141 : f32
    %644 = vector.broadcast %643 : f32 to vector<1x1xf32>
    %645 = arith.mulf %641, %644 : vector<1x1xf32>
    %646 = arith.addf %633, %645 : vector<1x1xf32>
    %c15 = arith.constant 15 : index
    %647 = memref.load %arg10[%c15] : memref<16xi32, #tpu.memory_space<smem>>
    %648 = vector.extract_strided_slice %551 {offsets = [7, 0], sizes = [1, 256], strides = [1, 1]} : vector<8x256xf32> to vector<1x256xf32>
    %649 = vector.broadcast %647 : i32 to vector<1x256xi32>
    %650 = arith.cmpi eq, %272, %649 : vector<1x256xi32>
    %cst_142 = arith.constant 0.000000e+00 : f32
    %651 = vector.broadcast %cst_142 : f32 to vector<1x256xf32>
    %652 = arith.select %650, %648, %651 : vector<1x256xi1>, vector<1x256xf32>
    %cst_143 = arith.constant dense<0.000000e+00> : vector<1xf32>
    %653 = vector.multi_reduction <add>, %652, %cst_143 [1] : vector<1x256xf32> to vector<1xf32>
    %654 = vector.shape_cast %653 : vector<1xf32> to vector<1x1xf32>
    %c0_i32_144 = arith.constant 0 : i32
    %655 = arith.cmpi eq, %647, %c0_i32_144 : i32
    %cst_145 = arith.constant 0.000000e+00 : f32
    %cst_146 = arith.constant 1.000000e+00 : f32
    %656 = arith.select %655, %cst_145, %cst_146 : f32
    %657 = vector.broadcast %656 : f32 to vector<1x1xf32>
    %658 = arith.mulf %654, %657 : vector<1x1xf32>
    %659 = arith.addf %646, %658 : vector<1x1xf32>
    %cst_147 = arith.constant 0.000000e+00 : f32
    %660 = vector.broadcast %cst_147 : f32 to vector<1x1xf32>
    %661 = arith.subf %660, %659 : vector<1x1xf32>
    %c0_148 = arith.constant 0 : index
    %c1_149 = arith.constant 1 : index
    %662 = vector.load %arg14[%c0_148, %c1_149] : memref<1x2xf32, #tpu.memory_space<vmem>>, vector<1x1xf32>
    tpu.vector_store %arg14[%c0_148, %c1_149], %661 {strides = array<i32>} : memref<1x2xf32, #tpu.memory_space<vmem>>, vector<1x1xf32>,
    return
  }
}

</mosaic_0001>

<llo_original>
// kernel: tpu_custom_call.1
$region0: #{tpu_custom_call.1}
  #allocation0 [shape = 'u32[]', space=smem, size = 0x4, offset = 0x4, fixed_abs, tag = 'smem constant byte address 0x4 - core index']
  #allocation1 [shape = 'u32[144,128]{1,0:T(1,128)}', space=vmem, size = 0x12000, scoped, tag = 'internal scratch']
  %s0 = inlined_call_operand.vmem [shape: f32[128,64], index: 0, kind: input, shape index: {}]
  %s1 = inlined_call_operand.vmem [shape: s32[8,8], index: 1, kind: input, shape index: {}]
  %s2 = inlined_call_operand.vmem [shape: f32[2,128], index: 2, kind: input, shape index: {}]
  %s3 = inlined_call_operand.vmem [shape: f32[2], index: 3, kind: input, shape index: {}]
  %s4 = inlined_call_operand.hbm [shape: f32[256,128], index: 4, kind: input, shape index: {}]
  %s5 = inlined_call_operand.vmem [shape: s32[8,16], index: 5, kind: input, shape index: {}]
  %s6 = inlined_call_operand.vmem [shape: f32[8,16], index: 6, kind: input, shape index: {}]
  %s7 = inlined_call_operand.vmem [shape: f32[2,8,128], index: 7, kind: input, shape index: {}]
  %s8 = inlined_call_operand.vmem [shape: bf16[128,256], index: 8, kind: input, shape index: {}]
  %s9 = inlined_call_operand.vmem [shape: f32[1,256], index: 9, kind: input, shape index: {}]
  %s10 = inlined_call_operand.vmem [shape: s32[16], index: 10, kind: input, shape index: {}]
  %s11 = inlined_call_operand.hbm [shape: f32[64,256], index: 11, kind: output, shape index: {0}]
  %s12 = inlined_call_operand.hbm [shape: f32[2,8,256], index: 12, kind: output, shape index: {1}]
  %s13 = inlined_call_operand.hbm [shape: f32[2,4], index: 13, kind: output, shape index: {2}]
  %s14 = inlined_call_operand.hbm [shape: f32[1,2], index: 14, kind: output, shape index: {3}]
  %15 = xla_tuple %s11, %s12, %s13, %s14
  %s16 = sld [smem:[#allocation0]]
  $region90: #{tpu_custom_call.1} parent=0
    _
  %s18 = ssub.s32 1, %s16
  %s19 = scalar_select 0, %s18, %s16
  $region1: #{tpu_custom_call.1} parent=0
    #allocation2 [shape = 'u8[512]{0}', space=smem, size = 0x200, scoped, tag = 'input window, operand 3, single buffered']
    #allocation3 [shape = 's32[1]{0}', space=sflag, size = 0x4, scoped, tag = 'scoped memory for tpu_custom_call.1']
    #allocation4 [shape = 's32[1]{0}', space=sflag, size = 0x4, scoped, tag = 'scoped memory for tpu_custom_call.1']
    #allocation5 [shape = 's32[1]{0}', space=sflag, size = 0x4, scoped, tag = 'scoped memory for tpu_custom_call.1']
    #allocation6 [shape = 'u8[131072]{0}', space=vmem, size = 0x20000, scoped, tag = 'input window, operand 4, single buffered']
    #allocation7 [shape = 'u8[512]{0}', space=smem, size = 0x200, scoped, tag = 'input window, operand 10, single buffered']
    #allocation8 [shape = 's32[1]{0}', space=sflag, size = 0x4, scoped, tag = 'scoped memory for tpu_custom_call.1']
    #allocation9 [shape = 'u8[65536]{0}', space=vmem, size = 0x10000, scoped, tag = 'output window, operand 0, single buffered']
    #allocation10 [shape = 'u8[16384]{0}', space=vmem, size = 0x4000, scoped, tag = 'output window, operand 1, single buffered']
    #allocation11 [shape = 's32[1]{0}', space=sflag, size = 0x4, scoped, tag = 'scoped memory for tpu_custom_call.1']
    #allocation12 [shape = 'u8[1024]{0}', space=vmem, size = 0x400, scoped, tag = 'output window, operand 2, single buffered']
    #allocation13 [shape = 'u8[512]{0}', space=vmem, size = 0x400, scoped, tag = 'output window, operand 3, single buffered']
    #allocation14 [shape = 's32[1]{0}', space=sflag, size = 0x4, scoped, tag = 'scoped memory for tpu_custom_call.1']
    %20 = vsyncpa [#allocation5], 0
    %21 = vsyncpa [#allocation3], 0
    %22 = vsyncpa [#allocation8], 0
    %23 = vsyncpa [#allocation4], 0
    %24 = vsyncpa [#allocation11], 0
    %25 = vsyncpa [#allocation14], 0
    // Predicated region
    $region2: #{tpu_custom_call.1} parent=1 // pred_check
      _
    $region3: #{tpu_custom_call.1} parent=1 // pred_check_branch
      %27 = sbr.rel (0) target = $region5
    $region4: #{tpu_custom_call.1} parent=1 // pred_region
      _
    $region5: #{tpu_custom_call.1} parent=1 // pred_fallthru
      _
    // Predicated region
    $region6: #{tpu_custom_call.1} parent=1 // pred_check
      _
    $region7: #{tpu_custom_call.1} parent=1 // pred_check_branch
      %29 = sbr.rel (0) target = $region9
    $region8: #{tpu_custom_call.1} parent=1 // pred_region
      _
    $region9: #{tpu_custom_call.1} parent=1 // pred_fallthru
      _
    // Predicated region
    $region10: #{tpu_custom_call.1} parent=1 // pred_check
      _
    $region11: #{tpu_custom_call.1} parent=1 // pred_check_branch
      %31 = sbr.rel (0) target = $region13
    $region12: #{tpu_custom_call.1} parent=1 // pred_region
      _
    $region13: #{tpu_custom_call.1} parent=1 // pred_fallthru
      _
    // Predicated region
    $region14: #{tpu_custom_call.1} parent=1 // pred_check
      _
    $region15: #{tpu_custom_call.1} parent=1 // pred_check_branch
      %33 = sbr.rel (0) target = $region17
    $region16: #{tpu_custom_call.1} parent=1 // pred_region
      %s35 = ssub.s32 16, 16
      %36 = vsyncadd [#allocation5], %s35
      %s38 = sshll.u32 %s3, 4
      %s39 = int_to_ptr.vmem [resolvable:$true] %s38
      %41 = dma.vmem_to_smem %s39, 16, [#allocation2], [#allocation5]
    $region17: #{tpu_custom_call.1} parent=1 // pred_fallthru
      _
    // Predicated region
    $region18: #{tpu_custom_call.1} parent=1 // pred_check
      _
    $region19: #{tpu_custom_call.1} parent=1 // pred_check_branch
      %43 = sbr.rel (0) target = $region21
    $region20: #{tpu_custom_call.1} parent=1 // pred_region
      %s45 = ssub.s32 4096, 4096
      %46 = vsyncadd [#allocation3], %s45
      %s47 = sshll.u32 [#allocation6], 4
      %s48 = int_to_ptr.vmem [resolvable:$true] %s47
      %53 = dma.hbm_to_vmem [thread:$0]  %s4, 4096, %s48, [#allocation3], 128, 128, 8
    $region21: #{tpu_custom_call.1} parent=1 // pred_fallthru
      _
    // Predicated region
    $region22: #{tpu_custom_call.1} parent=1 // pred_check
      _
    $region23: #{tpu_custom_call.1} parent=1 // pred_check_branch
      %55 = sbr.rel (0) target = $region25
    $region24: #{tpu_custom_call.1} parent=1 // pred_region
      _
    $region25: #{tpu_custom_call.1} parent=1 // pred_fallthru
      _
    // Predicated region
    $region26: #{tpu_custom_call.1} parent=1 // pred_check
      _
    $region27: #{tpu_custom_call.1} parent=1 // pred_check_branch
      %57 = sbr.rel (0) target = $region29
    $region28: #{tpu_custom_call.1} parent=1 // pred_region
      _
    $region29: #{tpu_custom_call.1} parent=1 // pred_fallthru
      _
    // Predicated region
    $region30: #{tpu_custom_call.1} parent=1 // pred_check
      _
    $region31: #{tpu_custom_call.1} parent=1 // pred_check_branch
      %59 = sbr.rel (0) target = $region33
    $region32: #{tpu_custom_call.1} parent=1 // pred_region
      _
    $region33: #{tpu_custom_call.1} parent=1 // pred_fallthru
      _
    // Predicated region
    $region34: #{tpu_custom_call.1} parent=1 // pred_check
      _
    $region35: #{tpu_custom_call.1} parent=1 // pred_check_branch
      %61 = sbr.rel (0) target = $region37
    $region36: #{tpu_custom_call.1} parent=1 // pred_region
      _
    $region37: #{tpu_custom_call.1} parent=1 // pred_fallthru
      _
    // Predicated region
    $region38: #{tpu_custom_call.1} parent=1 // pred_check
      _
    $region39: #{tpu_custom_call.1} parent=1 // pred_check_branch
      %63 = sbr.rel (0) target = $region41
    $region40: #{tpu_custom_call.1} parent=1 // pred_region
      _
    $region41: #{tpu_custom_call.1} parent=1 // pred_fallthru
      _
    // Predicated region
    $region42: #{tpu_custom_call.1} parent=1 // pred_check
      _
    $region43: #{tpu_custom_call.1} parent=1 // pred_check_branch
      %65 = sbr.rel (0) target = $region45
    $region44: #{tpu_custom_call.1} parent=1 // pred_region
      %s67 = ssub.s32 16, 16
      %68 = vsyncadd [#allocation8], %s67
      %s70 = sshll.u32 %s10, 4
      %s71 = int_to_ptr.vmem [resolvable:$true] %s70
      %73 = dma.vmem_to_smem %s71, 16, [#allocation7], [#allocation8]
    $region45: #{tpu_custom_call.1} parent=1 // pred_fallthru
      _
    // Predicated region
    $region46: #{tpu_custom_call.1} parent=1 // pred_check
      _
    $region47: #{tpu_custom_call.1} parent=1 // pred_check_branch
      %75 = sbr.rel (0) target = $region49
    $region48: #{tpu_custom_call.1} parent=1 // pred_region
      %76 = dma.done [#allocation5], 16
    $region49: #{tpu_custom_call.1} parent=1 // pred_fallthru
      _
    // Predicated region
    $region50: #{tpu_custom_call.1} parent=1 // pred_check
      _
    $region51: #{tpu_custom_call.1} parent=1 // pred_check_branch
      %78 = sbr.rel (0) target = $region53
    $region52: #{tpu_custom_call.1} parent=1 // pred_region
      %79 = dma.done [#allocation3], 4096
    $region53: #{tpu_custom_call.1} parent=1 // pred_fallthru
      _
    // Predicated region
    $region54: #{tpu_custom_call.1} parent=1 // pred_check
      _
    $region55: #{tpu_custom_call.1} parent=1 // pred_check_branch
      %81 = sbr.rel (0) target = $region57
    $region56: #{tpu_custom_call.1} parent=1 // pred_region
      %82 = dma.done [#allocation8], 16
    $region57: #{tpu_custom_call.1} parent=1 // pred_fallthru
      _
    %83 = sfence
    %v85 = vld [vmem:[%s1] sm:$0xff]
    %v86 = vlaneseq
    %v87 = vshrl.u32 %v86, 7
    %v88 = vadd.s32 %v87, 8
    %v89 = vadd.s32 %v87, 16
    %v90 = vadd.s32 %v87, 24
    %v91 = vadd.s32 %v87, 32
    %v92 = vadd.s32 %v87, 40
    %v93 = vadd.s32 %v87, 48
    %v94 = vadd.s32 %v87, 56
    %v95 = vlaneseq
    %v96 = vshrl.u32 %v95, 7
    %v97 = vsub.s32 0, %v96
    %v98 = vrot.slane %v85, %v97
    %vm99 = vcmp.eq.s32.totalorder %v87, %v98
    %vm100 = vcmp.eq.s32.totalorder %v88, %v98
    %vm101 = vcmp.eq.s32.totalorder %v89, %v98
    %vm102 = vcmp.eq.s32.totalorder %v90, %v98
    %vm103 = vcmp.eq.s32.totalorder %v91, %v98
    %vm104 = vcmp.eq.s32.totalorder %v92, %v98
    %vm105 = vcmp.eq.s32.totalorder %v93, %v98
    %vm106 = vcmp.eq.s32.totalorder %v94, %v98
    %v107 = vsel %vm99, 1, 0
    %v108 = vsel %vm100, 1, 0
    %v109 = vsel %vm101, 1, 0
    %v110 = vsel %vm102, 1, 0
    %v111 = vsel %vm103, 1, 0
    %v112 = vsel %vm104, 1, 0
    %v113 = vsel %vm105, 1, 0
    %v114 = vsel %vm106, 1, 0
    %v115 = vcvt.s32.f32 %v107
    %v116 = vcvt.s32.f32 %v108
    %v117 = vcvt.s32.f32 %v109
    %v118 = vcvt.s32.f32 %v110
    %v119 = vcvt.s32.f32 %v111
    %v120 = vcvt.s32.f32 %v112
    %v121 = vcvt.s32.f32 %v113
    %v122 = vcvt.s32.f32 %v114
    %v123 = vadd.f32 %v115, 0.0
    %v124 = vadd.f32 %v116, 0.0
    %v125 = vadd.f32 %v117, 0.0
    %v126 = vadd.f32 %v118, 0.0
    %v127 = vadd.f32 %v119, 0.0
    %v128 = vadd.f32 %v120, 0.0
    %v129 = vadd.f32 %v121, 0.0
    %v130 = vadd.f32 %v122, 0.0
    %v131 = vlaneseq
    %v132 = vshrl.u32 %v131, 7
    %v133 = vsub.s32 1, %v132
    %v134 = vrot.slane %v85, %v133
    %vm135 = vcmp.eq.s32.totalorder %v87, %v134
    %vm136 = vcmp.eq.s32.totalorder %v88, %v134
    %vm137 = vcmp.eq.s32.totalorder %v89, %v134
    %vm138 = vcmp.eq.s32.totalorder %v90, %v134
    %vm139 = vcmp.eq.s32.totalorder %v91, %v134
    %vm140 = vcmp.eq.s32.totalorder %v92, %v134
    %vm141 = vcmp.eq.s32.totalorder %v93, %v134
    %vm142 = vcmp.eq.s32.totalorder %v94, %v134
    %v143 = vsel %vm135, 1, 0
    %v144 = vsel %vm136, 1, 0
    %v145 = vsel %vm137, 1, 0
    %v146 = vsel %vm138, 1, 0
    %v147 = vsel %vm139, 1, 0
    %v148 = vsel %vm140, 1, 0
    %v149 = vsel %vm141, 1, 0
    %v150 = vsel %vm142, 1, 0
    %v151 = vcvt.s32.f32 %v143
    %v152 = vcvt.s32.f32 %v144
    %v153 = vcvt.s32.f32 %v145
    %v154 = vcvt.s32.f32 %v146
    %v155 = vcvt.s32.f32 %v147
    %v156 = vcvt.s32.f32 %v148
    %v157 = vcvt.s32.f32 %v149
    %v158 = vcvt.s32.f32 %v150
    %v159 = vadd.f32 %v123, %v151
    %v160 = vadd.f32 %v124, %v152
    %v161 = vadd.f32 %v125, %v153
    %v162 = vadd.f32 %v126, %v154
    %v163 = vadd.f32 %v127, %v155
    %v164 = vadd.f32 %v128, %v156
    %v165 = vadd.f32 %v129, %v157
    %v166 = vadd.f32 %v130, %v158
    %v167 = vlaneseq
    %v168 = vshrl.u32 %v167, 7
    %v169 = vsub.s32 2, %v168
    %v170 = vrot.slane %v85, %v169
    %vm171 = vcmp.eq.s32.totalorder %v87, %v170
    %vm172 = vcmp.eq.s32.totalorder %v88, %v170
    %vm173 = vcmp.eq.s32.totalorder %v89, %v170
    %vm174 = vcmp.eq.s32.totalorder %v90, %v170
    %vm175 = vcmp.eq.s32.totalorder %v91, %v170
    %vm176 = vcmp.eq.s32.totalorder %v92, %v170
    %vm177 = vcmp.eq.s32.totalorder %v93, %v170
    %vm178 = vcmp.eq.s32.totalorder %v94, %v170
    %v179 = vsel %vm171, 1, 0
    %v180 = vsel %vm172, 1, 0
    %v181 = vsel %vm173, 1, 0
    %v182 = vsel %vm174, 1, 0
    %v183 = vsel %vm175, 1, 0
    %v184 = vsel %vm176, 1, 0
    %v185 = vsel %vm177, 1, 0
    %v186 = vsel %vm178, 1, 0
    %v187 = vcvt.s32.f32 %v179
    %v188 = vcvt.s32.f32 %v180
    %v189 = vcvt.s32.f32 %v181
    %v190 = vcvt.s32.f32 %v182
    %v191 = vcvt.s32.f32 %v183
    %v192 = vcvt.s32.f32 %v184
    %v193 = vcvt.s32.f32 %v185
    %v194 = vcvt.s32.f32 %v186
    %v195 = vadd.f32 %v159, %v187
    %v196 = vadd.f32 %v160, %v188
    %v197 = vadd.f32 %v161, %v189
    %v198 = vadd.f32 %v162, %v190
    %v199 = vadd.f32 %v163, %v191
    %v200 = vadd.f32 %v164, %v192
    %v201 = vadd.f32 %v165, %v193
    %v202 = vadd.f32 %v166, %v194
    %v203 = vlaneseq
    %v204 = vshrl.u32 %v203, 7
    %v205 = vsub.s32 3, %v204
    %v206 = vrot.slane %v85, %v205
    %vm207 = vcmp.eq.s32.totalorder %v87, %v206
    %vm208 = vcmp.eq.s32.totalorder %v88, %v206
    %vm209 = vcmp.eq.s32.totalorder %v89, %v206
    %vm210 = vcmp.eq.s32.totalorder %v90, %v206
    %vm211 = vcmp.eq.s32.totalorder %v91, %v206
    %vm212 = vcmp.eq.s32.totalorder %v92, %v206
    %vm213 = vcmp.eq.s32.totalorder %v93, %v206
    %vm214 = vcmp.eq.s32.totalorder %v94, %v206
    %v215 = vsel %vm207, 1, 0
    %v216 = vsel %vm208, 1, 0
    %v217 = vsel %vm209, 1, 0
    %v218 = vsel %vm210, 1, 0
    %v219 = vsel %vm211, 1, 0
    %v220 = vsel %vm212, 1, 0
    %v221 = vsel %vm213, 1, 0
    %v222 = vsel %vm214, 1, 0
    %v223 = vcvt.s32.f32 %v215
    %v224 = vcvt.s32.f32 %v216
    %v225 = vcvt.s32.f32 %v217
    %v226 = vcvt.s32.f32 %v218
    %v227 = vcvt.s32.f32 %v219
    %v228 = vcvt.s32.f32 %v220
    %v229 = vcvt.s32.f32 %v221
    %v230 = vcvt.s32.f32 %v222
    %v231 = vadd.f32 %v195, %v223
    %v232 = vadd.f32 %v196, %v224
    %v233 = vadd.f32 %v197, %v225
    %v234 = vadd.f32 %v198, %v226
    %v235 = vadd.f32 %v199, %v227
    %v236 = vadd.f32 %v200, %v228
    %v237 = vadd.f32 %v201, %v229
    %v238 = vadd.f32 %v202, %v230
    %v239 = vlaneseq
    %v240 = vshrl.u32 %v239, 7
    %v241 = vsub.s32 4, %v240
    %v242 = vrot.slane %v85, %v241
    %vm243 = vcmp.eq.s32.totalorder %v87, %v242
    %vm244 = vcmp.eq.s32.totalorder %v88, %v242
    %vm245 = vcmp.eq.s32.totalorder %v89, %v242
    %vm246 = vcmp.eq.s32.totalorder %v90, %v242
    %vm247 = vcmp.eq.s32.totalorder %v91, %v242
    %vm248 = vcmp.eq.s32.totalorder %v92, %v242
    %vm249 = vcmp.eq.s32.totalorder %v93, %v242
    %vm250 = vcmp.eq.s32.totalorder %v94, %v242
    %v251 = vsel %vm243, 1, 0
    %v252 = vsel %vm244, 1, 0
    %v253 = vsel %vm245, 1, 0
    %v254 = vsel %vm246, 1, 0
    %v255 = vsel %vm247, 1, 0
    %v256 = vsel %vm248, 1, 0
    %v257 = vsel %vm249, 1, 0
    %v258 = vsel %vm250, 1, 0
    %v259 = vcvt.s32.f32 %v251
    %v260 = vcvt.s32.f32 %v252
    %v261 = vcvt.s32.f32 %v253
    %v262 = vcvt.s32.f32 %v254
    %v263 = vcvt.s32.f32 %v255
    %v264 = vcvt.s32.f32 %v256
    %v265 = vcvt.s32.f32 %v257
    %v266 = vcvt.s32.f32 %v258
    %v267 = vadd.f32 %v231, %v259
    %v268 = vadd.f32 %v232, %v260
    %v269 = vadd.f32 %v233, %v261
    %v270 = vadd.f32 %v234, %v262
    %v271 = vadd.f32 %v235, %v263
    %v272 = vadd.f32 %v236, %v264
    %v273 = vadd.f32 %v237, %v265
    %v274 = vadd.f32 %v238, %v266
    %v275 = vlaneseq
    %v276 = vshrl.u32 %v275, 7
    %v277 = vsub.s32 5, %v276
    %v278 = vrot.slane %v85, %v277
    %vm279 = vcmp.eq.s32.totalorder %v87, %v278
    %vm280 = vcmp.eq.s32.totalorder %v88, %v278
    %vm281 = vcmp.eq.s32.totalorder %v89, %v278
    %vm282 = vcmp.eq.s32.totalorder %v90, %v278
    %vm283 = vcmp.eq.s32.totalorder %v91, %v278
    %vm284 = vcmp.eq.s32.totalorder %v92, %v278
    %vm285 = vcmp.eq.s32.totalorder %v93, %v278
    %vm286 = vcmp.eq.s32.totalorder %v94, %v278
    %v287 = vsel %vm279, 1, 0
    %v288 = vsel %vm280, 1, 0
    %v289 = vsel %vm281, 1, 0
    %v290 = vsel %vm282, 1, 0
    %v291 = vsel %vm283, 1, 0
    %v292 = vsel %vm284, 1, 0
    %v293 = vsel %vm285, 1, 0
    %v294 = vsel %vm286, 1, 0
    %v295 = vcvt.s32.f32 %v287
    %v296 = vcvt.s32.f32 %v288
    %v297 = vcvt.s32.f32 %v289
    %v298 = vcvt.s32.f32 %v290
    %v299 = vcvt.s32.f32 %v291
    %v300 = vcvt.s32.f32 %v292
    %v301 = vcvt.s32.f32 %v293
    %v302 = vcvt.s32.f32 %v294
    %v303 = vadd.f32 %v267, %v295
    %v304 = vadd.f32 %v268, %v296
    %v305 = vadd.f32 %v269, %v297
    %v306 = vadd.f32 %v270, %v298
    %v307 = vadd.f32 %v271, %v299
    %v308 = vadd.f32 %v272, %v300
    %v309 = vadd.f32 %v273, %v301
    %v310 = vadd.f32 %v274, %v302
    %v311 = vlaneseq
    %v312 = vshrl.u32 %v311, 7
    %v313 = vsub.s32 6, %v312
    %v314 = vrot.slane %v85, %v313
    %vm315 = vcmp.eq.s32.totalorder %v87, %v314
    %vm316 = vcmp.eq.s32.totalorder %v88, %v314
    %vm317 = vcmp.eq.s32.totalorder %v89, %v314
    %vm318 = vcmp.eq.s32.totalorder %v90, %v314
    %vm319 = vcmp.eq.s32.totalorder %v91, %v314
    %vm320 = vcmp.eq.s32.totalorder %v92, %v314
    %vm321 = vcmp.eq.s32.totalorder %v93, %v314
    %vm322 = vcmp.eq.s32.totalorder %v94, %v314
    %v323 = vsel %vm315, 1, 0
    %v324 = vsel %vm316, 1, 0
    %v325 = vsel %vm317, 1, 0
    %v326 = vsel %vm318, 1, 0
    %v327 = vsel %vm319, 1, 0
    %v328 = vsel %vm320, 1, 0
    %v329 = vsel %vm321, 1, 0
    %v330 = vsel %vm322, 1, 0
    %v331 = vcvt.s32.f32 %v323
    %v332 = vcvt.s32.f32 %v324
    %v333 = vcvt.s32.f32 %v325
    %v334 = vcvt.s32.f32 %v326
    %v335 = vcvt.s32.f32 %v327
    %v336 = vcvt.s32.f32 %v328
    %v337 = vcvt.s32.f32 %v329
    %v338 = vcvt.s32.f32 %v330
    %v339 = vadd.f32 %v303, %v331
    %v340 = vadd.f32 %v304, %v332
    %v341 = vadd.f32 %v305, %v333
    %v342 = vadd.f32 %v306, %v334
    %v343 = vadd.f32 %v307, %v335
    %v344 = vadd.f32 %v308, %v336
    %v345 = vadd.f32 %v309, %v337
    %v346 = vadd.f32 %v310, %v338
    %v347 = vlaneseq
    %v348 = vshrl.u32 %v347, 7
    %v349 = vsub.s32 7, %v348
    %v350 = vrot.slane %v85, %v349
    %vm351 = vcmp.eq.s32.totalorder %v87, %v350
    %vm352 = vcmp.eq.s32.totalorder %v88, %v350
    %vm353 = vcmp.eq.s32.totalorder %v89, %v350
    %vm354 = vcmp.eq.s32.totalorder %v90, %v350
    %vm355 = vcmp.eq.s32.totalorder %v91, %v350
    %vm356 = vcmp.eq.s32.totalorder %v92, %v350
    %vm357 = vcmp.eq.s32.totalorder %v93, %v350
    %vm358 = vcmp.eq.s32.totalorder %v94, %v350
    %v359 = vsel %vm351, 1, 0
    %v360 = vsel %vm352, 1, 0
    %v361 = vsel %vm353, 1, 0
    %v362 = vsel %vm354, 1, 0
    %v363 = vsel %vm355, 1, 0
    %v364 = vsel %vm356, 1, 0
    %v365 = vsel %vm357, 1, 0
    %v366 = vsel %vm358, 1, 0
    %v367 = vcvt.s32.f32 %v359
    %v368 = vcvt.s32.f32 %v360
    %v369 = vcvt.s32.f32 %v361
    %v370 = vcvt.s32.f32 %v362
    %v371 = vcvt.s32.f32 %v363
    %v372 = vcvt.s32.f32 %v364
    %v373 = vcvt.s32.f32 %v365
    %v374 = vcvt.s32.f32 %v366
    %v375 = vadd.f32 %v339, %v367
    %v376 = vadd.f32 %v340, %v368
    %v377 = vadd.f32 %v341, %v369
    %v378 = vadd.f32 %v342, %v370
    %v379 = vadd.f32 %v343, %v371
    %v380 = vadd.f32 %v344, %v372
    %v381 = vadd.f32 %v345, %v373
    %v382 = vadd.f32 %v346, %v374
    %v383 = vld [vmem:[%s0] sm:$0xff]
    %v384 = vld [vmem:[%s0 + $0x8] sm:$0xff]
    %v385 = vld [vmem:[%s0 + $0x10] sm:$0xff]
    %v386 = vld [vmem:[%s0 + $0x18] sm:$0xff]
    %v387 = vld [vmem:[%s0 + $0x20] sm:$0xff]
    %v388 = vld [vmem:[%s0 + $0x28] sm:$0xff]
    %v389 = vld [vmem:[%s0 + $0x30] sm:$0xff]
    %v390 = vld [vmem:[%s0 + $0x38] sm:$0xff]
    %v391 = vld [vmem:[%s0 + $0x40] sm:$0xff]
    %v392 = vld [vmem:[%s0 + $0x48] sm:$0xff]
    %v393 = vld [vmem:[%s0 + $0x50] sm:$0xff]
    %v394 = vld [vmem:[%s0 + $0x58] sm:$0xff]
    %v395 = vld [vmem:[%s0 + $0x60] sm:$0xff]
    %v396 = vld [vmem:[%s0 + $0x68] sm:$0xff]
    %v397 = vld [vmem:[%s0 + $0x70] sm:$0xff]
    %v398 = vld [vmem:[%s0 + $0x78] sm:$0xff]
    %vm399 = vcmask 523264
    %v401 = vsel %vm399, %v383, 0
    %v404 = vsel %vm399, %v384, 0
    %v407 = vsel %vm399, %v385, 0
    %v410 = vsel %vm399, %v386, 0
    %v413 = vsel %vm399, %v387, 0
    %v416 = vsel %vm399, %v388, 0
    %v419 = vsel %vm399, %v389, 0
    %v422 = vsel %vm399, %v390, 0
    %v425 = vsel %vm399, %v391, 0
    %v428 = vsel %vm399, %v392, 0
    %v431 = vsel %vm399, %v393, 0
    %v434 = vsel %vm399, %v394, 0
    %v437 = vsel %vm399, %v395, 0
    %v440 = vsel %vm399, %v396, 0
    %v443 = vsel %vm399, %v397, 0
    %v446 = vsel %vm399, %v398, 0
    %448 = vmatprep.subr.mxu0 0.0
    %449 = vmatpush1.msra.mxu0 %v375
    %450 = vmatprep.subr.mxu0 0.0
    %451 = vmatpush1.msra.mxu0 %v376
    %452 = vmatprep.subr.mxu0 0.0
    %453 = vmatpush1.msra.mxu0 %v377
    %454 = vmatprep.subr.mxu0 0.0
    %455 = vmatpush1.msra.mxu0 %v378
    %456 = vmatprep.subr.mxu0 0.0
    %457 = vmatpush1.msra.mxu0 %v379
    %458 = vmatprep.subr.mxu0 0.0
    %459 = vmatpush1.msra.mxu0 %v380
    %460 = vmatprep.subr.mxu0 0.0
    %461 = vmatpush1.msra.mxu0 %v381
    %462 = vmatprep.subr.mxu0 0.0
    %463 = vmatpush1.msra.mxu0 %v382
    %464 = vmatprep.subr.mxu0 0.0
    %465 = vmatpush1.msra.mxu0 0.0
    %466 = vmatprep.subr.mxu0 0.0
    %467 = vmatpush1.msra.mxu0 0.0
    %468 = vmatprep.subr.mxu0 0.0
    %469 = vmatpush1.msra.mxu0 0.0
    %470 = vmatprep.subr.mxu0 0.0
    %471 = vmatpush1.msra.mxu0 0.0
    %472 = vmatprep.subr.mxu0 0.0
    %473 = vmatpush1.msra.mxu0 0.0
    %474 = vmatprep.subr.mxu0 0.0
    %475 = vmatpush1.msra.mxu0 0.0
    %476 = vmatprep.subr.mxu0 0.0
    %477 = vmatpush1.msra.mxu0 0.0
    %478 = vmatprep.subr.mxu0 0.0
    %479 = vmatpush1.msra.mxu0 0.0
    %480 = vmatprep.subr.mxu0 0.0
    %481 = vmatpush1.msra.mxu0 0.0
    %482 = vmatprep.subr.mxu0 0.0
    %483 = vmatpush1.msra.mxu0 0.0
    %484 = vmatprep.subr.mxu0 0.0
    %485 = vmatpush1.msra.mxu0 0.0
    %486 = vmatprep.subr.mxu0 0.0
    %487 = vmatpush1.msra.mxu0 0.0
    %488 = vmatprep.subr.mxu0 0.0
    %489 = vmatpush1.msra.mxu0 0.0
    %490 = vmatprep.subr.mxu0 0.0
    %491 = vmatpush1.msra.mxu0 0.0
    %492 = vmatprep.subr.mxu0 0.0
    %493 = vmatpush1.msra.mxu0 0.0
    %494 = vmatprep.subr.mxu0 0.0
    %495 = vmatpush1.msra.mxu0 0.0
    %496 = vmatprep.subr.mxu0 0.0
    %497 = vmatpush1.msra.mxu0 0.0
    %498 = vmatprep.subr.mxu0 0.0
    %499 = vmatpush1.msra.mxu0 0.0
    %500 = vmatprep.subr.mxu0 0.0
    %501 = vmatpush1.msra.mxu0 0.0
    %502 = vmatprep.subr.mxu0 0.0
    %503 = vmatpush1.msra.mxu0 0.0
    %504 = vmatprep.subr.mxu0 0.0
    %505 = vmatpush1.msra.mxu0 0.0
    %506 = vmatprep.subr.mxu0 0.0
    %507 = vmatpush1.msra.mxu0 0.0
    %508 = vmatprep.subr.mxu0 0.0
    %509 = vmatpush1.msra.mxu0 0.0
    %510 = vmatprep.subr.mxu0 0.0
    %511 = vmatpush1.msra.mxu0 0.0
    %512 = vmatprep.mubr.f32.mxu0 0.0
    %513 = vmatmul.mubr.f32.gmra.mrb[0].mxu0 %v401
    %v514 = vpop.f32.mrb[0].mxu0
    %v515 = vadd.f32 0.0, %v514
    %v516 = vpop.f32.mrb[0].mxu0
    %517 = vmatprep.mubr.f32.mxu0 0.0
    %518 = vmatmul.mubr.f32.gmra.mrb[0].mxu0 %v404
    %v519 = vpop.f32.mrb[0].mxu0
    %v520 = vadd.f32 0.0, %v519
    %v521 = vpop.f32.mrb[0].mxu0
    %522 = vmatprep.mubr.f32.mxu0 0.0
    %523 = vmatmul.mubr.f32.gmra.mrb[0].mxu0 %v407
    %v524 = vpop.f32.mrb[0].mxu0
    %v525 = vadd.f32 0.0, %v524
    %v526 = vpop.f32.mrb[0].mxu0
    %527 = vmatprep.mubr.f32.mxu0 0.0
    %528 = vmatmul.mubr.f32.gmra.mrb[0].mxu0 %v410
    %v529 = vpop.f32.mrb[0].mxu0
    %v530 = vadd.f32 0.0, %v529
    %v531 = vpop.f32.mrb[0].mxu0
    %532 = vmatprep.mubr.f32.mxu0 0.0
    %533 = vmatmul.mubr.f32.gmra.mrb[0].mxu0 %v413
    %v534 = vpop.f32.mrb[0].mxu0
    %v535 = vadd.f32 0.0, %v534
    %v536 = vpop.f32.mrb[0].mxu0
    %537 = vmatprep.mubr.f32.mxu0 0.0
    %538 = vmatmul.mubr.f32.gmra.mrb[0].mxu0 %v416
    %v539 = vpop.f32.mrb[0].mxu0
    %v540 = vadd.f32 0.0, %v539
    %v541 = vpop.f32.mrb[0].mxu0
    %542 = vmatprep.mubr.f32.mxu0 0.0
    %543 = vmatmul.mubr.f32.gmra.mrb[0].mxu0 %v419
    %v544 = vpop.f32.mrb[0].mxu0
    %v545 = vadd.f32 0.0, %v544
    %v546 = vpop.f32.mrb[0].mxu0
    %547 = vmatprep.mubr.f32.mxu0 0.0
    %548 = vmatmul.mubr.f32.gmra.mrb[0].mxu0 %v422
    %v549 = vpop.f32.mrb[0].mxu0
    %v550 = vadd.f32 0.0, %v549
    %v551 = vpop.f32.mrb[0].mxu0
    %552 = vmatprep.mubr.f32.mxu0 0.0
    %553 = vmatmul.mubr.f32.gmra.mrb[0].mxu0 %v425
    %v554 = vpop.f32.mrb[0].mxu0
    %v555 = vadd.f32 0.0, %v554
    %v556 = vpop.f32.mrb[0].mxu0
    %557 = vmatprep.mubr.f32.mxu0 0.0
    %558 = vmatmul.mubr.f32.gmra.mrb[0].mxu0 %v428
    %v559 = vpop.f32.mrb[0].mxu0
    %v560 = vadd.f32 0.0, %v559
    %v561 = vpop.f32.mrb[0].mxu0
    %562 = vmatprep.mubr.f32.mxu0 0.0
    %563 = vmatmul.mubr.f32.gmra.mrb[0].mxu0 %v431
    %v564 = vpop.f32.mrb[0].mxu0
    %v565 = vadd.f32 0.0, %v564
    %v566 = vpop.f32.mrb[0].mxu0
    %567 = vmatprep.mubr.f32.mxu0 0.0
    %568 = vmatmul.mubr.f32.gmra.mrb[0].mxu0 %v434
    %v569 = vpop.f32.mrb[0].mxu0
    %v570 = vadd.f32 0.0, %v569
    %v571 = vpop.f32.mrb[0].mxu0
    %572 = vmatprep.mubr.f32.mxu0 0.0
    %573 = vmatmul.mubr.f32.gmra.mrb[0].mxu0 %v437
    %v574 = vpop.f32.mrb[0].mxu0
    %v575 = vadd.f32 0.0, %v574
    %v576 = vpop.f32.mrb[0].mxu0
    %577 = vmatprep.mubr.f32.mxu0 0.0
    %578 = vmatmul.mubr.f32.gmra.mrb[0].mxu0 %v440
    %v579 = vpop.f32.mrb[0].mxu0
    %v580 = vadd.f32 0.0, %v579
    %v581 = vpop.f32.mrb[0].mxu0
    %582 = vmatprep.mubr.f32.mxu0 0.0
    %583 = vmatmul.mubr.f32.gmra.mrb[0].mxu0 %v443
    %v584 = vpop.f32.mrb[0].mxu0
    %v585 = vadd.f32 0.0, %v584
    %v586 = vpop.f32.mrb[0].mxu0
    %587 = vmatprep.mubr.f32.mxu0 0.0
    %588 = vmatmul.mubr.f32.gmra.mrb[0].mxu0 %v446
    %v589 = vpop.f32.mrb[0].mxu0
    %v590 = vadd.f32 0.0, %v589
    %v591 = vpop.f32.mrb[0].mxu0
    %592 = vdwg.mxu0
    %v593 = vmul.f32 %v515, 0.125
    %v594 = vmul.f32 %v520, 0.125
    %v595 = vmul.f32 %v525, 0.125
    %v596 = vmul.f32 %v530, 0.125
    %v597 = vmul.f32 %v535, 0.125
    %v598 = vmul.f32 %v540, 0.125
    %v599 = vmul.f32 %v545, 0.125
    %v600 = vmul.f32 %v550, 0.125
    %v601 = vmul.f32 %v555, 0.125
    %v602 = vmul.f32 %v560, 0.125
    %v603 = vmul.f32 %v565, 0.125
    %v604 = vmul.f32 %v570, 0.125
    %v605 = vmul.f32 %v575, 0.125
    %v606 = vmul.f32 %v580, 0.125
    %v607 = vmul.f32 %v585, 0.125
    %v608 = vmul.f32 %v590, 0.125
    %v609 = vld [vmem:[%s2] sm:$0x3]
    %610 = vmatprep.subr.mxu0 0.0
    %611 = vmatpush1.msra.mxu0 %v593
    %612 = vmatprep.subr.mxu0 0.0
    %613 = vmatpush1.msra.mxu0 %v594
    %614 = vmatprep.subr.mxu0 0.0
    %615 = vmatpush1.msra.mxu0 %v595
    %616 = vmatprep.subr.mxu0 0.0
    %617 = vmatpush1.msra.mxu0 %v596
    %618 = vmatprep.subr.mxu0 0.0
    %619 = vmatpush1.msra.mxu0 %v597
    %620 = vmatprep.subr.mxu0 0.0
    %621 = vmatpush1.msra.mxu0 %v598
    %622 = vmatprep.subr.mxu0 0.0
    %623 = vmatpush1.msra.mxu0 %v599
    %624 = vmatprep.subr.mxu0 0.0
    %625 = vmatpush1.msra.mxu0 %v600
    %626 = vmatprep.subr.mxu0 0.0
    %627 = vmatpush1.msra.mxu0 %v601
    %628 = vmatprep.subr.mxu0 0.0
    %629 = vmatpush1.msra.mxu0 %v602
    %630 = vmatprep.subr.mxu0 0.0
    %631 = vmatpush1.msra.mxu0 %v603
    %632 = vmatprep.subr.mxu0 0.0
    %633 = vmatpush1.msra.mxu0 %v604
    %634 = vmatprep.subr.mxu0 0.0
    %635 = vmatpush1.msra.mxu0 %v605
    %636 = vmatprep.subr.mxu0 0.0
    %637 = vmatpush1.msra.mxu0 %v606
    %638 = vmatprep.subr.mxu0 0.0
    %639 = vmatpush1.msra.mxu0 %v607
    %640 = vmatprep.subr.mxu0 0.0
    %641 = vmatpush1.msra.mxu0 %v608
    %642 = vmatprep.subr.mxu0 0.0
    %643 = vmatpush1.msra.mxu0 0.0
    %644 = vmatprep.subr.mxu0 0.0
    %645 = vmatpush1.msra.mxu0 0.0
    %646 = vmatprep.subr.mxu0 0.0
    %647 = vmatpush1.msra.mxu0 0.0
    %648 = vmatprep.subr.mxu0 0.0
    %649 = vmatpush1.msra.mxu0 0.0
    %650 = vmatprep.subr.mxu0 0.0
    %651 = vmatpush1.msra.mxu0 0.0
    %652 = vmatprep.subr.mxu0 0.0
    %653 = vmatpush1.msra.mxu0 0.0
    %654 = vmatprep.subr.mxu0 0.0
    %655 = vmatpush1.msra.mxu0 0.0
    %656 = vmatprep.subr.mxu0 0.0
    %657 = vmatpush1.msra.mxu0 0.0
    %658 = vmatprep.subr.mxu0 0.0
    %659 = vmatpush1.msra.mxu0 0.0
    %660 = vmatprep.subr.mxu0 0.0
    %661 = vmatpush1.msra.mxu0 0.0
    %662 = vmatprep.subr.mxu0 0.0
    %663 = vmatpush1.msra.mxu0 0.0
    %664 = vmatprep.subr.mxu0 0.0
    %665 = vmatpush1.msra.mxu0 0.0
    %666 = vmatprep.subr.mxu0 0.0
    %667 = vmatpush1.msra.mxu0 0.0
    %668 = vmatprep.subr.mxu0 0.0
    %669 = vmatpush1.msra.mxu0 0.0
    %670 = vmatprep.subr.mxu0 0.0
    %671 = vmatpush1.msra.mxu0 0.0
    %672 = vmatprep.subr.mxu0 0.0
    %673 = vmatpush1.msra.mxu0 0.0
    %674 = vmatprep.mubr.f32.mxu0 0.0
    %675 = vmatmul.mubr.f32.gmra.mrb[0].mxu0 %v609
    %v676 = vpop.f32.mrb[0].mxu0
    %v677 = vadd.f32 0.0, %v676
    %v678 = vpop.f32.mrb[0].mxu0
    %679 = vdwg.mxu0
    %s680 = sld [smem:[#allocation2]]
    %v681 = vstv %s680
    %v682 = vadd.f32 %v677, %v681
    %s683 = sld [smem:[#allocation2 + $0x1]]
    %v684 = vstv %s683
    %v685 = vadd.f32 %v677, %v684
    %v687 = vrot.slane %v685, 1
    %v689 = vmax.f32 %v682, %v687
    %v690 = vsub.f32 %v682, %v689
    %v691 = vmul.f32 %v690, 1.442695
    %v692 = vpow.pop %v691
    %v694 = vrot.slane %v689, 7
    %v696 = vsub.f32 %v685, %v694
    %v697 = vmul.f32 %v696, 1.442695
    %v698 = vpow.pop %v697
    %v700 = vrot.slane %v698, 1
    %v702 = vadd.f32 %v692, %v700
    %v703 = vlog2.pop %v702
    %v704 = vmul.f32 %v703, 0.6931472
    %v705 = vadd.f32 %v689, %v704
    %v707 = vrot.slane %v705, 7
    %v709 = vsub.f32 %v685, %v707
    %vm710 = vcmask 25601
    %v711 = vsel %vm710, %v709, -inf
    %712 = vmax.xlane.f32.xlu0 %v711
    %v713 = vpop.xlane.xlu0 %712
    %v714 = vsub.f32 %v709, %v713
    %v715 = vmul.f32 %v714, 1.442695
    %v716 = vpow.pop %v715
    %v717 = vsel %vm710, %v716, 0.0
    %718 = vadd.xlane.f32.xlu0 %v717
    %v719 = vpop.xlane.xlu0 %718
    %v720 = vlog2.pop %v719
    %v721 = vmul.f32 %v720, 0.6931472
    %v722 = vadd.f32 %v713, %v721
    %v723 = vsub.f32 %v709, %v722
    %724 = vst.msk [vmem:[#allocation12 - $0x1] sm:$0x2] %vm710, %v723
    %vm725 = vcmask 58401
    %v726 = vsel %vm725, %v709, -inf
    %727 = vmax.xlane.f32.xlu0 %v726
    %v728 = vpop.xlane.xlu0 %727
    %v729 = vsub.f32 %v709, %v728
    %v730 = vmul.f32 %v729, 1.442695
    %v731 = vpow.pop %v730
    %733 = vrot.lane.b32.xlu0 %v731, 124
    %v734 = vpop.permute.xlu0 %733
    %v736 = vsel %vm710, %v734, 0.0
    %737 = vadd.xlane.f32.xlu0 %v736
    %v738 = vpop.xlane.xlu0 %737
    %v739 = vlog2.pop %v738
    %v740 = vmul.f32 %v739, 0.6931472
    %v741 = vadd.f32 %v728, %v740
    %v742 = vsub.f32 %v709, %v741
    %744 = vrot.lane.b32.xlu0 %v742, 124
    %v745 = vpop.permute.xlu0 %744
    %747 = vst.msk [vmem:[#allocation12] sm:$0x2] %vm710, %v745
    %v748 = vld [vmem:[%s5] sm:$0xff]
    %v749 = vld [vmem:[%s6] sm:$0xff]
    %v750 = vlaneseq
    %v751 = vand.u32 %v750, 127
    %v752 = vadd.s32 %v751, 128
    %753 = vset.pattern.permute.xlu0 0
    %754 = vperm.xlu0 %753, %v748
    %v755 = vpop.permute.xlu0 %754
    %vm756 = vcmp.eq.s32.totalorder %v755, %v751
    %vm757 = vcmp.eq.s32.totalorder %v755, %v752
    %v758 = vsel %vm756, 1, 0
    %v759 = vsel %vm757, 1, 0
    %v760 = vcvt.s32.f32 %v758
    %v761 = vcvt.s32.f32 %v759
    %763 = vset.pattern.permute.xlu0 0
    %764 = vperm.xlu0 %763, %v749
    %v765 = vpop.permute.xlu0 %764
    %v767 = vmul.f32 %v760, %v765
    %v768 = vmul.f32 %v761, %v765
    %v769 = vadd.f32 %v767, 0.0
    %v770 = vadd.f32 %v768, 0.0
    %771 = vset.pattern.permute.xlu0 1
    %772 = vperm.xlu0 %771, %v748
    %v773 = vpop.permute.xlu0 %772
    %vm774 = vcmp.eq.s32.totalorder %v773, %v751
    %vm775 = vcmp.eq.s32.totalorder %v773, %v752
    %v776 = vsel %vm774, 1, 0
    %v777 = vsel %vm775, 1, 0
    %v778 = vcvt.s32.f32 %v776
    %v779 = vcvt.s32.f32 %v777
    %780 = vset.pattern.permute.xlu0 1
    %781 = vperm.xlu0 %780, %v749
    %v782 = vpop.permute.xlu0 %781
    %v784 = vmul.f32 %v778, %v782
    %v785 = vmul.f32 %v779, %v782
    %v786 = vadd.f32 %v769, %v784
    %v787 = vadd.f32 %v770, %v785
    %788 = vset.pattern.permute.xlu0 2
    %789 = vperm.xlu0 %788, %v748
    %v790 = vpop.permute.xlu0 %789
    %vm791 = vcmp.eq.s32.totalorder %v790, %v751
    %vm792 = vcmp.eq.s32.totalorder %v790, %v752
    %v793 = vsel %vm791, 1, 0
    %v794 = vsel %vm792, 1, 0
    %v795 = vcvt.s32.f32 %v793
    %v796 = vcvt.s32.f32 %v794
    %797 = vset.pattern.permute.xlu0 2
    %798 = vperm.xlu0 %797, %v749
    %v799 = vpop.permute.xlu0 %798
    %v801 = vmul.f32 %v795, %v799
    %v802 = vmul.f32 %v796, %v799
    %v803 = vadd.f32 %v786, %v801
    %v804 = vadd.f32 %v787, %v802
    %805 = vset.pattern.permute.xlu0 3
    %806 = vperm.xlu0 %805, %v748
    %v807 = vpop.permute.xlu0 %806
    %vm808 = vcmp.eq.s32.totalorder %v807, %v751
    %vm809 = vcmp.eq.s32.totalorder %v807, %v752
    %v810 = vsel %vm808, 1, 0
    %v811 = vsel %vm809, 1, 0
    %v812 = vcvt.s32.f32 %v810
    %v813 = vcvt.s32.f32 %v811
    %814 = vset.pattern.permute.xlu0 3
    %815 = vperm.xlu0 %814, %v749
    %v816 = vpop.permute.xlu0 %815
    %v818 = vmul.f32 %v812, %v816
    %v819 = vmul.f32 %v813, %v816
    %v820 = vadd.f32 %v803, %v818
    %v821 = vadd.f32 %v804, %v819
    %822 = vset.pattern.permute.xlu0 4
    %823 = vperm.xlu0 %822, %v748
    %v824 = vpop.permute.xlu0 %823
    %vm825 = vcmp.eq.s32.totalorder %v824, %v751
    %vm826 = vcmp.eq.s32.totalorder %v824, %v752
    %v827 = vsel %vm825, 1, 0
    %v828 = vsel %vm826, 1, 0
    %v829 = vcvt.s32.f32 %v827
    %v830 = vcvt.s32.f32 %v828
    %831 = vset.pattern.permute.xlu0 4
    %832 = vperm.xlu0 %831, %v749
    %v833 = vpop.permute.xlu0 %832
    %v835 = vmul.f32 %v829, %v833
    %v836 = vmul.f32 %v830, %v833
    %v837 = vadd.f32 %v820, %v835
    %v838 = vadd.f32 %v821, %v836
    %839 = vset.pattern.permute.xlu0 5
    %840 = vperm.xlu0 %839, %v748
    %v841 = vpop.permute.xlu0 %840
    %vm842 = vcmp.eq.s32.totalorder %v841, %v751
    %vm843 = vcmp.eq.s32.totalorder %v841, %v752
    %v844 = vsel %vm842, 1, 0
    %v845 = vsel %vm843, 1, 0
    %v846 = vcvt.s32.f32 %v844
    %v847 = vcvt.s32.f32 %v845
    %848 = vset.pattern.permute.xlu0 5
    %849 = vperm.xlu0 %848, %v749
    %v850 = vpop.permute.xlu0 %849
    %v852 = vmul.f32 %v846, %v850
    %v853 = vmul.f32 %v847, %v850
    %v854 = vadd.f32 %v837, %v852
    %v855 = vadd.f32 %v838, %v853
    %856 = vset.pattern.permute.xlu0 6
    %857 = vperm.xlu0 %856, %v748
    %v858 = vpop.permute.xlu0 %857
    %vm859 = vcmp.eq.s32.totalorder %v858, %v751
    %vm860 = vcmp.eq.s32.totalorder %v858, %v752
    %v861 = vsel %vm859, 1, 0
    %v862 = vsel %vm860, 1, 0
    %v863 = vcvt.s32.f32 %v861
    %v864 = vcvt.s32.f32 %v862
    %865 = vset.pattern.permute.xlu0 6
    %866 = vperm.xlu0 %865, %v749
    %v867 = vpop.permute.xlu0 %866
    %v869 = vmul.f32 %v863, %v867
    %v870 = vmul.f32 %v864, %v867
    %v871 = vadd.f32 %v854, %v869
    %v872 = vadd.f32 %v855, %v870
    %873 = vset.pattern.permute.xlu0 7
    %874 = vperm.xlu0 %873, %v748
    %v875 = vpop.permute.xlu0 %874
    %vm876 = vcmp.eq.s32.totalorder %v875, %v751
    %vm877 = vcmp.eq.s32.totalorder %v875, %v752
    %v878 = vsel %vm876, 1, 0
    %v879 = vsel %vm877, 1, 0
    %v880 = vcvt.s32.f32 %v878
    %v881 = vcvt.s32.f32 %v879
    %882 = vset.pattern.permute.xlu0 7
    %883 = vperm.xlu0 %882, %v749
    %v884 = vpop.permute.xlu0 %883
    %v886 = vmul.f32 %v880, %v884
    %v887 = vmul.f32 %v881, %v884
    %v888 = vadd.f32 %v871, %v886
    %v889 = vadd.f32 %v872, %v887
    %890 = vset.pattern.permute.xlu0 8
    %891 = vperm.xlu0 %890, %v748
    %v892 = vpop.permute.xlu0 %891
    %vm893 = vcmp.eq.s32.totalorder %v892, %v751
    %vm894 = vcmp.eq.s32.totalorder %v892, %v752
    %v895 = vsel %vm893, 1, 0
    %v896 = vsel %vm894, 1, 0
    %v897 = vcvt.s32.f32 %v895
    %v898 = vcvt.s32.f32 %v896
    %899 = vset.pattern.permute.xlu0 8
    %900 = vperm.xlu0 %899, %v749
    %v901 = vpop.permute.xlu0 %900
    %v903 = vmul.f32 %v897, %v901
    %v904 = vmul.f32 %v898, %v901
    %v905 = vadd.f32 %v888, %v903
    %v906 = vadd.f32 %v889, %v904
    %907 = vset.pattern.permute.xlu0 9
    %908 = vperm.xlu0 %907, %v748
    %v909 = vpop.permute.xlu0 %908
    %vm910 = vcmp.eq.s32.totalorder %v909, %v751
    %vm911 = vcmp.eq.s32.totalorder %v909, %v752
    %v912 = vsel %vm910, 1, 0
    %v913 = vsel %vm911, 1, 0
    %v914 = vcvt.s32.f32 %v912
    %v915 = vcvt.s32.f32 %v913
    %916 = vset.pattern.permute.xlu0 9
    %917 = vperm.xlu0 %916, %v749
    %v918 = vpop.permute.xlu0 %917
    %v920 = vmul.f32 %v914, %v918
    %v921 = vmul.f32 %v915, %v918
    %v922 = vadd.f32 %v905, %v920
    %v923 = vadd.f32 %v906, %v921
    %924 = vset.pattern.permute.xlu0 10
    %925 = vperm.xlu0 %924, %v748
    %v926 = vpop.permute.xlu0 %925
    %vm927 = vcmp.eq.s32.totalorder %v926, %v751
    %vm928 = vcmp.eq.s32.totalorder %v926, %v752
    %v929 = vsel %vm927, 1, 0
    %v930 = vsel %vm928, 1, 0
    %v931 = vcvt.s32.f32 %v929
    %v932 = vcvt.s32.f32 %v930
    %933 = vset.pattern.permute.xlu0 10
    %934 = vperm.xlu0 %933, %v749
    %v935 = vpop.permute.xlu0 %934
    %v937 = vmul.f32 %v931, %v935
    %v938 = vmul.f32 %v932, %v935
    %v939 = vadd.f32 %v922, %v937
    %v940 = vadd.f32 %v923, %v938
    %941 = vset.pattern.permute.xlu0 11
    %942 = vperm.xlu0 %941, %v748
    %v943 = vpop.permute.xlu0 %942
    %vm944 = vcmp.eq.s32.totalorder %v943, %v751
    %vm945 = vcmp.eq.s32.totalorder %v943, %v752
    %v946 = vsel %vm944, 1, 0
    %v947 = vsel %vm945, 1, 0
    %v948 = vcvt.s32.f32 %v946
    %v949 = vcvt.s32.f32 %v947
    %950 = vset.pattern.permute.xlu0 11
    %951 = vperm.xlu0 %950, %v749
    %v952 = vpop.permute.xlu0 %951
    %v954 = vmul.f32 %v948, %v952
    %v955 = vmul.f32 %v949, %v952
    %v956 = vadd.f32 %v939, %v954
    %v957 = vadd.f32 %v940, %v955
    %958 = vset.pattern.permute.xlu0 12
    %959 = vperm.xlu0 %958, %v748
    %v960 = vpop.permute.xlu0 %959
    %vm961 = vcmp.eq.s32.totalorder %v960, %v751
    %vm962 = vcmp.eq.s32.totalorder %v960, %v752
    %v963 = vsel %vm961, 1, 0
    %v964 = vsel %vm962, 1, 0
    %v965 = vcvt.s32.f32 %v963
    %v966 = vcvt.s32.f32 %v964
    %967 = vset.pattern.permute.xlu0 12
    %968 = vperm.xlu0 %967, %v749
    %v969 = vpop.permute.xlu0 %968
    %v971 = vmul.f32 %v965, %v969
    %v972 = vmul.f32 %v966, %v969
    %v973 = vadd.f32 %v956, %v971
    %v974 = vadd.f32 %v957, %v972
    %975 = vset.pattern.permute.xlu0 13
    %976 = vperm.xlu0 %975, %v748
    %v977 = vpop.permute.xlu0 %976
    %vm978 = vcmp.eq.s32.totalorder %v977, %v751
    %vm979 = vcmp.eq.s32.totalorder %v977, %v752
    %v980 = vsel %vm978, 1, 0
    %v981 = vsel %vm979, 1, 0
    %v982 = vcvt.s32.f32 %v980
    %v983 = vcvt.s32.f32 %v981
    %984 = vset.pattern.permute.xlu0 13
    %985 = vperm.xlu0 %984, %v749
    %v986 = vpop.permute.xlu0 %985
    %v988 = vmul.f32 %v982, %v986
    %v989 = vmul.f32 %v983, %v986
    %v990 = vadd.f32 %v973, %v988
    %v991 = vadd.f32 %v974, %v989
    %992 = vset.pattern.permute.xlu0 14
    %993 = vperm.xlu0 %992, %v748
    %v994 = vpop.permute.xlu0 %993
    %vm995 = vcmp.eq.s32.totalorder %v994, %v751
    %vm996 = vcmp.eq.s32.totalorder %v994, %v752
    %v997 = vsel %vm995, 1, 0
    %v998 = vsel %vm996, 1, 0
    %v999 = vcvt.s32.f32 %v997
    %v1000 = vcvt.s32.f32 %v998
    %1001 = vset.pattern.permute.xlu0 14
    %1002 = vperm.xlu0 %1001, %v749
    %v1003 = vpop.permute.xlu0 %1002
    %v1005 = vmul.f32 %v999, %v1003
    %v1006 = vmul.f32 %v1000, %v1003
    %v1007 = vadd.f32 %v990, %v1005
    %v1008 = vadd.f32 %v991, %v1006
    %1009 = vset.pattern.permute.xlu0 15
    %1010 = vperm.xlu0 %1009, %v748
    %v1011 = vpop.permute.xlu0 %1010
    %vm1012 = vcmp.eq.s32.totalorder %v1011, %v751
    %vm1013 = vcmp.eq.s32.totalorder %v1011, %v752
    %v1014 = vsel %vm1012, 1, 0
    %v1015 = vsel %vm1013, 1, 0
    %v1016 = vcvt.s32.f32 %v1014
    %v1017 = vcvt.s32.f32 %v1015
    %1018 = vset.pattern.permute.xlu0 15
    %1019 = vperm.xlu0 %1018, %v749
    %v1020 = vpop.permute.xlu0 %1019
    %v1022 = vmul.f32 %v1016, %v1020
    %v1023 = vmul.f32 %v1017, %v1020
    %v1024 = vadd.f32 %v1007, %v1022
    %v1025 = vadd.f32 %v1008, %v1023
    %vm1026 = vcmask 130048
    %v1027 = vsel %vm1026, %v749, 0.0
    %1028 = vadd.xlane.f32.xlu0 %v1027
    %v1029 = vpop.xlane.xlu0 %1028
    %v1030 = vmax.f32 %v1029, 1.0
    %v1031 = vld [vmem:[#allocation6] sm:$0xff]
    %v1032 = vld [vmem:[#allocation6 + $0x8] sm:$0xff]
    %v1033 = vld [vmem:[#allocation6 + $0x10] sm:$0xff]
    %v1034 = vld [vmem:[#allocation6 + $0x18] sm:$0xff]
    %v1035 = vld [vmem:[#allocation6 + $0x20] sm:$0xff]
    %v1036 = vld [vmem:[#allocation6 + $0x28] sm:$0xff]
    %v1037 = vld [vmem:[#allocation6 + $0x30] sm:$0xff]
    %v1038 = vld [vmem:[#allocation6 + $0x38] sm:$0xff]
    %v1039 = vld [vmem:[#allocation6 + $0x40] sm:$0xff]
    %v1040 = vld [vmem:[#allocation6 + $0x48] sm:$0xff]
    %v1041 = vld [vmem:[#allocation6 + $0x50] sm:$0xff]
    %v1042 = vld [vmem:[#allocation6 + $0x58] sm:$0xff]
    %v1043 = vld [vmem:[#allocation6 + $0x60] sm:$0xff]
    %v1044 = vld [vmem:[#allocation6 + $0x68] sm:$0xff]
    %v1045 = vld [vmem:[#allocation6 + $0x70] sm:$0xff]
    %v1046 = vld [vmem:[#allocation6 + $0x78] sm:$0xff]
    %v1047 = vld [vmem:[#allocation6 + $0x80] sm:$0xff]
    %v1048 = vld [vmem:[#allocation6 + $0x88] sm:$0xff]
    %v1049 = vld [vmem:[#allocation6 + $0x90] sm:$0xff]
    %v1050 = vld [vmem:[#allocation6 + $0x98] sm:$0xff]
    %v1051 = vld [vmem:[#allocation6 + $0xa0] sm:$0xff]
    %v1052 = vld [vmem:[#allocation6 + $0xa8] sm:$0xff]
    %v1053 = vld [vmem:[#allocation6 + $0xb0] sm:$0xff]
    %v1054 = vld [vmem:[#allocation6 + $0xb8] sm:$0xff]
    %v1055 = vld [vmem:[#allocation6 + $0xc0] sm:$0xff]
    %v1056 = vld [vmem:[#allocation6 + $0xc8] sm:$0xff]
    %v1057 = vld [vmem:[#allocation6 + $0xd0] sm:$0xff]
    %v1058 = vld [vmem:[#allocation6 + $0xd8] sm:$0xff]
    %v1059 = vld [vmem:[#allocation6 + $0xe0] sm:$0xff]
    %v1060 = vld [vmem:[#allocation6 + $0xe8] sm:$0xff]
    %v1061 = vld [vmem:[#allocation6 + $0xf0] sm:$0xff]
    %v1062 = vld [vmem:[#allocation6 + $0xf8] sm:$0xff]
    %1063 = vmatprep.subr.mxu0 0.0
    %1064 = vmatpush1.msra.mxu0 %v1031
    %1065 = vmatprep.subr.mxu0 0.0
    %1066 = vmatpush1.msra.mxu0 %v1032
    %1067 = vmatprep.subr.mxu0 0.0
    %1068 = vmatpush1.msra.mxu0 %v1033
    %1069 = vmatprep.subr.mxu0 0.0
    %1070 = vmatpush1.msra.mxu0 %v1034
    %1071 = vmatprep.subr.mxu0 0.0
    %1072 = vmatpush1.msra.mxu0 %v1035
    %1073 = vmatprep.subr.mxu0 0.0
    %1074 = vmatpush1.msra.mxu0 %v1036
    %1075 = vmatprep.subr.mxu0 0.0
    %1076 = vmatpush1.msra.mxu0 %v1037
    %1077 = vmatprep.subr.mxu0 0.0
    %1078 = vmatpush1.msra.mxu0 %v1038
    %1079 = vmatprep.subr.mxu0 0.0
    %1080 = vmatpush1.msra.mxu0 %v1039
    %1081 = vmatprep.subr.mxu0 0.0
    %1082 = vmatpush1.msra.mxu0 %v1040
    %1083 = vmatprep.subr.mxu0 0.0
    %1084 = vmatpush1.msra.mxu0 %v1041
    %1085 = vmatprep.subr.mxu0 0.0
    %1086 = vmatpush1.msra.mxu0 %v1042
    %1087 = vmatprep.subr.mxu0 0.0
    %1088 = vmatpush1.msra.mxu0 %v1043
    %1089 = vmatprep.subr.mxu0 0.0
    %1090 = vmatpush1.msra.mxu0 %v1044
    %1091 = vmatprep.subr.mxu0 0.0
    %1092 = vmatpush1.msra.mxu0 %v1045
    %1093 = vmatprep.subr.mxu0 0.0
    %1094 = vmatpush1.msra.mxu0 %v1046
    %1095 = vmatprep.subr.mxu0 0.0
    %1096 = vmatpush1.msra.mxu0 %v1047
    %1097 = vmatprep.subr.mxu0 0.0
    %1098 = vmatpush1.msra.mxu0 %v1048
    %1099 = vmatprep.subr.mxu0 0.0
    %1100 = vmatpush1.msra.mxu0 %v1049
    %1101 = vmatprep.subr.mxu0 0.0
    %1102 = vmatpush1.msra.mxu0 %v1050
    %1103 = vmatprep.subr.mxu0 0.0
    %1104 = vmatpush1.msra.mxu0 %v1051
    %1105 = vmatprep.subr.mxu0 0.0
    %1106 = vmatpush1.msra.mxu0 %v1052
    %1107 = vmatprep.subr.mxu0 0.0
    %1108 = vmatpush1.msra.mxu0 %v1053
    %1109 = vmatprep.subr.mxu0 0.0
    %1110 = vmatpush1.msra.mxu0 %v1054
    %1111 = vmatprep.subr.mxu0 0.0
    %1112 = vmatpush1.msra.mxu0 %v1055
    %1113 = vmatprep.subr.mxu0 0.0
    %1114 = vmatpush1.msra.mxu0 %v1056
    %1115 = vmatprep.subr.mxu0 0.0
    %1116 = vmatpush1.msra.mxu0 %v1057
    %1117 = vmatprep.subr.mxu0 0.0
    %1118 = vmatpush1.msra.mxu0 %v1058
    %1119 = vmatprep.subr.mxu0 0.0
    %1120 = vmatpush1.msra.mxu0 %v1059
    %1121 = vmatprep.subr.mxu0 0.0
    %1122 = vmatpush1.msra.mxu0 %v1060
    %1123 = vmatprep.subr.mxu0 0.0
    %1124 = vmatpush1.msra.mxu0 %v1061
    %1125 = vmatprep.subr.mxu0 0.0
    %1126 = vmatpush1.msra.mxu0 %v1062
    %1127 = vmatprep.mubr.f32.mxu0 %v1025
    %1128 = vmatmul.mubr.f32.gmra.mrb[0].mxu0 %v1024
    %v1129 = vpop.f32.mrb[0].mxu0
    %v1130 = vadd.f32 0.0, %v1129
    %v1131 = vpop.f32.mrb[0].mxu0
    %1132 = vdwg.mxu0
    %v1133 = vrcp.pop %v1030
    %v1134 = vmul.f32 %v1130, %v1133
    %v1135 = vld [vmem:[%s7] sm:$0xff]
    %v1136 = vld [vmem:[%s7 + $0x8] sm:$0xff]
    %v1138 = vcombine.high %v1134, %v1134
    %v1140 = vunpack.c.l.s4 1966171168
    %v1141 = vunpack.c.0.s8 %v1140
    %v1142 = vlaneseq
    %v1143 = vshrl.u32 %v1142, 7
    %v1144 = vsub.s32 %v1141, %v1143
    %v1145 = vrot.slane %v1134, %v1144
    %v1147 = vunpack.c.l.s4 1966171168
    %v1148 = vunpack.c.0.s8 %v1147
    %v1149 = vlaneseq
    %v1150 = vshrl.u32 %v1149, 7
    %v1151 = vsub.s32 %v1148, %v1150
    %v1152 = vrot.slane %v1138, %v1151
    %v1153 = vcombine.high %v1145, %v1145
    %v1154 = vcombine.high %v1152, %v1152
    %v1156 = vunpack.c.l.s4 1966171168
    %v1157 = vunpack.c.0.s8 %v1156
    %v1158 = vlaneseq
    %v1159 = vshrl.u32 %v1158, 7
    %v1160 = vsub.s32 %v1157, %v1159
    %v1161 = vrot.slane %v1145, %v1160
    %v1163 = vunpack.c.l.s4 1966171168
    %v1164 = vunpack.c.0.s8 %v1163
    %v1165 = vlaneseq
    %v1166 = vshrl.u32 %v1165, 7
    %v1167 = vsub.s32 %v1164, %v1166
    %v1168 = vrot.slane %v1152, %v1167
    %v1170 = vunpack.c.l.s4 1966171168
    %v1171 = vunpack.c.0.s8 %v1170
    %v1172 = vlaneseq
    %v1173 = vshrl.u32 %v1172, 7
    %v1174 = vsub.s32 %v1171, %v1173
    %v1175 = vrot.slane %v1153, %v1174
    %v1177 = vunpack.c.l.s4 1966171168
    %v1178 = vunpack.c.0.s8 %v1177
    %v1179 = vlaneseq
    %v1180 = vshrl.u32 %v1179, 7
    %v1181 = vsub.s32 %v1178, %v1180
    %v1182 = vrot.slane %v1154, %v1181
    %v1183 = vcombine.high %v1161, %v1161
    %v1184 = vcombine.high %v1168, %v1168
    %v1185 = vcombine.high %v1175, %v1175
    %v1186 = vcombine.high %v1182, %v1182
    %v1187 = vlaneseq
    %v1188 = vshrl.u32 %v1187, 7
    %v1189 = vsub.s32 0, %v1188
    %v1190 = vrot.slane %v1161, %v1189
    %v1191 = vlaneseq
    %v1192 = vshrl.u32 %v1191, 7
    %v1193 = vsub.s32 0, %v1192
    %v1194 = vrot.slane %v1175, %v1193
    %v1195 = vlaneseq
    %v1196 = vshrl.u32 %v1195, 7
    %v1197 = vsub.s32 0, %v1196
    %v1198 = vrot.slane %v1183, %v1197
    %v1199 = vlaneseq
    %v1200 = vshrl.u32 %v1199, 7
    %v1201 = vsub.s32 0, %v1200
    %v1202 = vrot.slane %v1185, %v1201
    %v1203 = vlaneseq
    %v1204 = vshrl.u32 %v1203, 7
    %v1205 = vsub.s32 0, %v1204
    %v1206 = vrot.slane %v1168, %v1205
    %v1207 = vlaneseq
    %v1208 = vshrl.u32 %v1207, 7
    %v1209 = vsub.s32 0, %v1208
    %v1210 = vrot.slane %v1182, %v1209
    %v1211 = vlaneseq
    %v1212 = vshrl.u32 %v1211, 7
    %v1213 = vsub.s32 0, %v1212
    %v1214 = vrot.slane %v1184, %v1213
    %v1215 = vlaneseq
    %v1216 = vshrl.u32 %v1215, 7
    %v1217 = vsub.s32 0, %v1216
    %v1218 = vrot.slane %v1186, %v1217
    %v1227 = vadd.f32 %v1135, %v1190
    %v1228 = vadd.f32 %v1135, %v1194
    %v1229 = vadd.f32 %v1135, %v1198
    %v1230 = vadd.f32 %v1135, %v1202
    %v1231 = vadd.f32 %v1136, %v1206
    %v1232 = vadd.f32 %v1136, %v1210
    %v1233 = vadd.f32 %v1136, %v1214
    %v1234 = vadd.f32 %v1136, %v1218
    %v1235 = vtanh.pop %v1227
    %v1236 = vtanh.pop %v1228
    %v1237 = vtanh.pop %v1229
    %v1238 = vtanh.pop %v1230
    %v1239 = vtanh.pop %v1231
    %v1240 = vtanh.pop %v1232
    %v1241 = vtanh.pop %v1233
    %v1242 = vtanh.pop %v1234
    %v1243 = vpack.c.bf16 %v1236, %v1235
    %v1244 = vpack.c.bf16 %v1238, %v1237
    %v1245 = vpack.c.bf16 %v1240, %v1239
    %v1246 = vpack.c.bf16 %v1242, %v1241
    %v1247 = vld [vmem:[%s8] sm:$0xff]
    %v1248 = vld [vmem:[%s8 + $0x8] sm:$0xff]
    %v1249 = vld [vmem:[%s8 + $0x10] sm:$0xff]
    %v1250 = vld [vmem:[%s8 + $0x18] sm:$0xff]
    %v1251 = vld [vmem:[%s8 + $0x20] sm:$0xff]
    %v1252 = vld [vmem:[%s8 + $0x28] sm:$0xff]
    %v1253 = vld [vmem:[%s8 + $0x30] sm:$0xff]
    %v1254 = vld [vmem:[%s8 + $0x38] sm:$0xff]
    %v1255 = vld [vmem:[%s8 + $0x40] sm:$0xff]
    %v1256 = vld [vmem:[%s8 + $0x48] sm:$0xff]
    %v1257 = vld [vmem:[%s8 + $0x50] sm:$0xff]
    %v1258 = vld [vmem:[%s8 + $0x58] sm:$0xff]
    %v1259 = vld [vmem:[%s8 + $0x60] sm:$0xff]
    %v1260 = vld [vmem:[%s8 + $0x68] sm:$0xff]
    %v1261 = vld [vmem:[%s8 + $0x70] sm:$0xff]
    %v1262 = vld [vmem:[%s8 + $0x78] sm:$0xff]
    %v1263 = vld [vmem:[%s9] sm:$0x3]
    %v1265 = vlaneseq
    %v1266 = vshrl.u32 %v1265, 7
    %v1267 = vsub.s32 0, %v1266
    %v1268 = vrot.slane %v1263, %v1267
    %v1269 = vlaneseq
    %v1270 = vshrl.u32 %v1269, 7
    %v1271 = vsub.s32 1, %v1270
    %v1272 = vrot.slane %v1263, %v1271
    %v1291 = vunpack.c.l.b16 %v1247
    %v1292 = vunpack.c.h.b16 %v1247
    %v1293 = vunpack.c.l.b16 %v1248
    %v1294 = vunpack.c.h.b16 %v1248
    %v1295 = vunpack.c.l.b16 %v1249
    %v1296 = vunpack.c.h.b16 %v1249
    %v1297 = vunpack.c.l.b16 %v1250
    %v1298 = vunpack.c.h.b16 %v1250
    %v1299 = vunpack.c.l.b16 %v1251
    %v1300 = vunpack.c.h.b16 %v1251
    %v1301 = vunpack.c.l.b16 %v1252
    %v1302 = vunpack.c.h.b16 %v1252
    %v1303 = vunpack.c.l.b16 %v1253
    %v1304 = vunpack.c.h.b16 %v1253
    %v1305 = vunpack.c.l.b16 %v1254
    %v1306 = vunpack.c.h.b16 %v1254
    %v1307 = vunpack.c.l.b16 %v1255
    %v1308 = vunpack.c.h.b16 %v1255
    %v1309 = vunpack.c.l.b16 %v1256
    %v1310 = vunpack.c.h.b16 %v1256
    %v1311 = vunpack.c.l.b16 %v1257
    %v1312 = vunpack.c.h.b16 %v1257
    %v1313 = vunpack.c.l.b16 %v1258
    %v1314 = vunpack.c.h.b16 %v1258
    %v1315 = vunpack.c.l.b16 %v1259
    %v1316 = vunpack.c.h.b16 %v1259
    %v1317 = vunpack.c.l.b16 %v1260
    %v1318 = vunpack.c.h.b16 %v1260
    %v1319 = vunpack.c.l.b16 %v1261
    %v1320 = vunpack.c.h.b16 %v1261
    %v1321 = vunpack.c.l.b16 %v1262
    %v1322 = vunpack.c.h.b16 %v1262
    %v1323 = vpack.c.b16 %v1293, %v1291
    %v1324 = vpack.c.b16 %v1294, %v1292
    %v1325 = vpack.c.b16 %v1297, %v1295
    %v1326 = vpack.c.b16 %v1298, %v1296
    %v1327 = vpack.c.b16 %v1301, %v1299
    %v1328 = vpack.c.b16 %v1302, %v1300
    %v1329 = vpack.c.b16 %v1305, %v1303
    %v1330 = vpack.c.b16 %v1306, %v1304
    %v1331 = vpack.c.b16 %v1309, %v1307
    %v1332 = vpack.c.b16 %v1310, %v1308
    %v1333 = vpack.c.b16 %v1313, %v1311
    %v1334 = vpack.c.b16 %v1314, %v1312
    %v1335 = vpack.c.b16 %v1317, %v1315
    %v1336 = vpack.c.b16 %v1318, %v1316
    %v1337 = vpack.c.b16 %v1321, %v1319
    %v1338 = vpack.c.b16 %v1322, %v1320
    %1355 = vmatprep.subr.bf16.mxu0 %v1324
    %1356 = vmatpush1.bf16.msra.mxu0 %v1323
    %1357 = vmatprep.subr.bf16.mxu0 %v1326
    %1358 = vmatpush1.bf16.msra.mxu0 %v1325
    %1359 = vmatprep.subr.bf16.mxu0 %v1328
    %1360 = vmatpush1.bf16.msra.mxu0 %v1327
    %1361 = vmatprep.subr.bf16.mxu0 %v1330
    %1362 = vmatpush1.bf16.msra.mxu0 %v1329
    %1363 = vmatprep.subr.bf16.mxu0 %v1332
    %1364 = vmatpush1.bf16.msra.mxu0 %v1331
    %1365 = vmatprep.subr.bf16.mxu0 %v1334
    %1366 = vmatpush1.bf16.msra.mxu0 %v1333
    %1367 = vmatprep.subr.bf16.mxu0 %v1336
    %1368 = vmatpush1.bf16.msra.mxu0 %v1335
    %1369 = vmatprep.subr.bf16.mxu0 %v1338
    %1370 = vmatpush1.bf16.msra.mxu0 %v1337
    %1371 = vmatprep.subr.bf16.mxu0 0
    %1372 = vmatpush1.bf16.msra.mxu0 0
    %1373 = vmatprep.subr.bf16.mxu0 0
    %1374 = vmatpush1.bf16.msra.mxu0 0
    %1375 = vmatprep.subr.bf16.mxu0 0
    %1376 = vmatpush1.bf16.msra.mxu0 0
    %1377 = vmatprep.subr.bf16.mxu0 0
    %1378 = vmatpush1.bf16.msra.mxu0 0
    %1379 = vmatprep.subr.bf16.mxu0 0
    %1380 = vmatpush1.bf16.msra.mxu0 0
    %1381 = vmatprep.subr.bf16.mxu0 0
    %1382 = vmatpush1.bf16.msra.mxu0 0
    %1383 = vmatprep.subr.bf16.mxu0 0
    %1384 = vmatpush1.bf16.msra.mxu0 0
    %1385 = vmatprep.subr.bf16.mxu0 0
    %1386 = vmatpush1.bf16.msra.mxu0 0
    %1387 = vmatprep.mubr.bf16.mxu0 0
    %1388 = vmatmul.mubr.bf16.gmra.mrb[0].mxu0 %v1243
    %v1389 = vpop.f32.mrb[0].mxu0
    %v1390 = vadd.f32 %v1268, %v1389
    %v1391 = vpop.f32.mrb[0].mxu0
    %v1392 = vadd.f32 %v1272, %v1391
    %v1393 = vpop.f32.mrb[0].mxu0
    %v1394 = vadd.f32 %v1268, %v1393
    %v1395 = vpop.f32.mrb[0].mxu0
    %v1396 = vadd.f32 %v1272, %v1395
    %1397 = vmatprep.mubr.bf16.mxu0 0
    %1398 = vmatmul.mubr.bf16.gmra.mrb[0].mxu0 %v1244
    %v1399 = vpop.f32.mrb[0].mxu0
    %v1400 = vadd.f32 %v1268, %v1399
    %v1401 = vpop.f32.mrb[0].mxu0
    %v1402 = vadd.f32 %v1272, %v1401
    %v1403 = vpop.f32.mrb[0].mxu0
    %v1404 = vadd.f32 %v1268, %v1403
    %v1405 = vpop.f32.mrb[0].mxu0
    %v1406 = vadd.f32 %v1272, %v1405
    %1407 = vmatprep.mubr.bf16.mxu0 0
    %1408 = vmatmul.mubr.bf16.gmra.mrb[0].mxu0 %v1245
    %v1409 = vpop.f32.mrb[0].mxu0
    %v1410 = vadd.f32 %v1268, %v1409
    %v1411 = vpop.f32.mrb[0].mxu0
    %v1412 = vadd.f32 %v1272, %v1411
    %v1413 = vpop.f32.mrb[0].mxu0
    %v1414 = vadd.f32 %v1268, %v1413
    %v1415 = vpop.f32.mrb[0].mxu0
    %v1416 = vadd.f32 %v1272, %v1415
    %1417 = vmatprep.mubr.bf16.mxu0 0
    %1418 = vmatmul.mubr.bf16.gmra.mrb[0].mxu0 %v1246
    %v1419 = vpop.f32.mrb[0].mxu0
    %v1420 = vadd.f32 %v1268, %v1419
    %v1421 = vpop.f32.mrb[0].mxu0
    %v1422 = vadd.f32 %v1272, %v1421
    %v1423 = vpop.f32.mrb[0].mxu0
    %v1424 = vadd.f32 %v1268, %v1423
    %v1425 = vpop.f32.mrb[0].mxu0
    %v1426 = vadd.f32 %v1272, %v1425
    %1427 = vdwg.mxu0
    %1428 = vst [vmem:[#allocation9] sm:$0xff] %v1390
    %1429 = vst [vmem:[#allocation9 + $0x8] sm:$0xff] %v1392
    %1430 = vst [vmem:[#allocation9 + $0x10] sm:$0xff] %v1394
    %1431 = vst [vmem:[#allocation9 + $0x18] sm:$0xff] %v1396
    %1432 = vst [vmem:[#allocation9 + $0x20] sm:$0xff] %v1400
    %1433 = vst [vmem:[#allocation9 + $0x28] sm:$0xff] %v1402
    %1434 = vst [vmem:[#allocation9 + $0x30] sm:$0xff] %v1404
    %1435 = vst [vmem:[#allocation9 + $0x38] sm:$0xff] %v1406
    %1436 = vst [vmem:[#allocation9 + $0x40] sm:$0xff] %v1410
    %1437 = vst [vmem:[#allocation9 + $0x48] sm:$0xff] %v1412
    %1438 = vst [vmem:[#allocation9 + $0x50] sm:$0xff] %v1414
    %1439 = vst [vmem:[#allocation9 + $0x58] sm:$0xff] %v1416
    %1440 = vst [vmem:[#allocation9 + $0x60] sm:$0xff] %v1420
    %1441 = vst [vmem:[#allocation9 + $0x68] sm:$0xff] %v1422
    %1442 = vst [vmem:[#allocation9 + $0x70] sm:$0xff] %v1424
    %1443 = vst [vmem:[#allocation9 + $0x78] sm:$0xff] %v1426
    %v1444 = vmax.f32 %v1390, %v1392
    %1445 = vmax.xlane.f32.xlu0 %v1444
    %v1446 = vpop.xlane.xlu0 %1445
    %v1447 = vsub.f32 %v1390, %v1446
    %v1448 = vsub.f32 %v1392, %v1446
    %v1449 = vmul.f32 %v1447, 1.442695
    %v1450 = vpow.pop %v1449
    %v1451 = vmul.f32 %v1448, 1.442695
    %v1452 = vpow.pop %v1451
    %v1453 = vadd.f32 %v1450, %v1452
    %1454 = vadd.xlane.f32.xlu0 %v1453
    %v1455 = vpop.xlane.xlu0 %1454
    %v1456 = vlog2.pop %v1455
    %v1457 = vmul.f32 %v1456, 0.6931472
    %v1458 = vadd.f32 %v1446, %v1457
    %v1459 = vsub.f32 %v1390, %v1458
    %v1460 = vsub.f32 %v1392, %v1458
    %v1462 = vrot.slane %v723, 1
    %s1463 = vtos %v1462
    %v1464 = vstv %s1463
    %v1466 = vadd.f32 %v1459, %v1464
    %v1467 = vadd.f32 %v1460, %v1464
    %v1468 = vmax.f32 %v1394, %v1396
    %1469 = vmax.xlane.f32.xlu0 %v1468
    %v1470 = vpop.xlane.xlu0 %1469
    %v1471 = vsub.f32 %v1394, %v1470
    %v1472 = vsub.f32 %v1396, %v1470
    %v1473 = vmul.f32 %v1471, 1.442695
    %v1474 = vpow.pop %v1473
    %v1475 = vmul.f32 %v1472, 1.442695
    %v1476 = vpow.pop %v1475
    %v1477 = vadd.f32 %v1474, %v1476
    %1478 = vadd.xlane.f32.xlu0 %v1477
    %v1479 = vpop.xlane.xlu0 %1478
    %v1480 = vlog2.pop %v1479
    %v1481 = vmul.f32 %v1480, 0.6931472
    %v1482 = vadd.f32 %v1470, %v1481
    %v1483 = vsub.f32 %v1394, %v1482
    %v1484 = vsub.f32 %v1396, %v1482
    %1485 = vrot.lane.b32.xlu0 %v1462, 127
    %v1486 = vpop.permute.xlu0 %1485
    %s1487 = vtos %v1486
    %v1488 = vstv %s1487
    %v1490 = vadd.f32 %v1483, %v1488
    %v1491 = vadd.f32 %v1484, %v1488
    %v1492 = vmax.f32 %v1466, %v1490
    %v1493 = vmax.f32 %v1467, %v1491
    %v1494 = vsub.f32 %v1466, %v1492
    %v1495 = vsub.f32 %v1467, %v1493
    %v1496 = vmul.f32 %v1494, 1.442695
    %v1497 = vpow.pop %v1496
    %v1498 = vmul.f32 %v1495, 1.442695
    %v1499 = vpow.pop %v1498
    %v1500 = vsub.f32 %v1490, %v1492
    %v1501 = vsub.f32 %v1491, %v1493
    %v1502 = vmul.f32 %v1500, 1.442695
    %v1503 = vpow.pop %v1502
    %v1504 = vmul.f32 %v1501, 1.442695
    %v1505 = vpow.pop %v1504
    %v1506 = vadd.f32 %v1497, %v1503
    %v1507 = vadd.f32 %v1499, %v1505
    %v1508 = vmax.f32 %v1400, %v1402
    %1509 = vmax.xlane.f32.xlu0 %v1508
    %v1510 = vpop.xlane.xlu0 %1509
    %v1511 = vsub.f32 %v1400, %v1510
    %v1512 = vsub.f32 %v1402, %v1510
    %v1513 = vmul.f32 %v1511, 1.442695
    %v1514 = vpow.pop %v1513
    %v1515 = vmul.f32 %v1512, 1.442695
    %v1516 = vpow.pop %v1515
    %v1517 = vadd.f32 %v1514, %v1516
    %1518 = vadd.xlane.f32.xlu0 %v1517
    %v1519 = vpop.xlane.xlu0 %1518
    %v1520 = vlog2.pop %v1519
    %v1521 = vmul.f32 %v1520, 0.6931472
    %v1522 = vadd.f32 %v1510, %v1521
    %v1523 = vsub.f32 %v1400, %v1522
    %v1524 = vsub.f32 %v1402, %v1522
    %1525 = vrot.lane.b32.xlu0 %v1462, 126
    %v1526 = vpop.permute.xlu0 %1525
    %s1527 = vtos %v1526
    %v1528 = vstv %s1527
    %v1530 = vadd.f32 %v1523, %v1528
    %v1531 = vadd.f32 %v1524, %v1528
    %v1532 = vmax.f32 %v1492, %v1530
    %v1533 = vmax.f32 %v1493, %v1531
    %v1534 = vsub.f32 %v1492, %v1532
    %v1535 = vsub.f32 %v1493, %v1533
    %v1536 = vmul.f32 %v1534, 1.442695
    %v1537 = vpow.pop %v1536
    %v1538 = vmul.f32 %v1535, 1.442695
    %v1539 = vpow.pop %v1538
    %v1540 = vmul.f32 %v1506, %v1537
    %v1541 = vmul.f32 %v1507, %v1539
    %v1542 = vsub.f32 %v1530, %v1532
    %v1543 = vsub.f32 %v1531, %v1533
    %v1544 = vmul.f32 %v1542, 1.442695
    %v1545 = vpow.pop %v1544
    %v1546 = vmul.f32 %v1543, 1.442695
    %v1547 = vpow.pop %v1546
    %v1548 = vadd.f32 %v1540, %v1545
    %v1549 = vadd.f32 %v1541, %v1547
    %v1550 = vmax.f32 %v1404, %v1406
    %1551 = vmax.xlane.f32.xlu0 %v1550
    %v1552 = vpop.xlane.xlu0 %1551
    %v1553 = vsub.f32 %v1404, %v1552
    %v1554 = vsub.f32 %v1406, %v1552
    %v1555 = vmul.f32 %v1553, 1.442695
    %v1556 = vpow.pop %v1555
    %v1557 = vmul.f32 %v1554, 1.442695
    %v1558 = vpow.pop %v1557
    %v1559 = vadd.f32 %v1556, %v1558
    %1560 = vadd.xlane.f32.xlu0 %v1559
    %v1561 = vpop.xlane.xlu0 %1560
    %v1562 = vlog2.pop %v1561
    %v1563 = vmul.f32 %v1562, 0.6931472
    %v1564 = vadd.f32 %v1552, %v1563
    %v1565 = vsub.f32 %v1404, %v1564
    %v1566 = vsub.f32 %v1406, %v1564
    %1567 = vrot.lane.b32.xlu0 %v1462, 125
    %v1568 = vpop.permute.xlu0 %1567
    %s1569 = vtos %v1568
    %v1570 = vstv %s1569
    %v1572 = vadd.f32 %v1565, %v1570
    %v1573 = vadd.f32 %v1566, %v1570
    %v1574 = vmax.f32 %v1532, %v1572
    %v1575 = vmax.f32 %v1533, %v1573
    %v1576 = vsub.f32 %v1532, %v1574
    %v1577 = vsub.f32 %v1533, %v1575
    %v1578 = vmul.f32 %v1576, 1.442695
    %v1579 = vpow.pop %v1578
    %v1580 = vmul.f32 %v1577, 1.442695
    %v1581 = vpow.pop %v1580
    %v1582 = vmul.f32 %v1548, %v1579
    %v1583 = vmul.f32 %v1549, %v1581
    %v1584 = vsub.f32 %v1572, %v1574
    %v1585 = vsub.f32 %v1573, %v1575
    %v1586 = vmul.f32 %v1584, 1.442695
    %v1587 = vpow.pop %v1586
    %v1588 = vmul.f32 %v1585, 1.442695
    %v1589 = vpow.pop %v1588
    %v1590 = vadd.f32 %v1582, %v1587
    %v1591 = vadd.f32 %v1583, %v1589
    %v1592 = vlog2.pop %v1590
    %v1593 = vmul.f32 %v1592, 0.6931472
    %v1594 = vlog2.pop %v1591
    %v1595 = vmul.f32 %v1594, 0.6931472
    %v1596 = vadd.f32 %v1574, %v1593
    %v1597 = vadd.f32 %v1575, %v1595
    %1598 = vst [vmem:[#allocation10] sm:$0xff] %v1596
    %1599 = vst [vmem:[#allocation10 + $0x8] sm:$0xff] %v1597
    %s1600 = sld [smem:[#allocation7]]
    %v1601 = vstv %s1600
    %vm1602 = vcmp.eq.s32.totalorder %v751, %v1601
    %vm1603 = vcmp.eq.s32.totalorder %v752, %v1601
    %v1604 = vsel %vm1602, %v1596, 0.0
    %v1605 = vsel %vm1603, %v1597, 0.0
    %vm1606 = vcmask 1040384
    %v1607 = vsel %vm1606, %v1604, 0.0
    %v1608 = vsel %vm1606, %v1605, 0.0
    %v1609 = vadd.f32 %v1607, %v1608
    %1610 = vadd.xlane.f32.xlu0 %v1609
    %v1611 = vpop.xlane.xlu0 %1610
    %p1612 = scmp.eq.s32.totalorder %s1600, 0
    %s1613 = scalar_select %p1612, 0.0, 1.0
    %v1614 = vstv %s1613
    %v1615 = vmul.f32 %v1611, %v1614
    %v1616 = vadd.f32 %v1615, 0.0
    %s1617 = sld [smem:[#allocation7 + $0x1]]
    %v1618 = vstv %s1617
    %vm1619 = vcmp.eq.s32.totalorder %v751, %v1618
    %vm1620 = vcmp.eq.s32.totalorder %v752, %v1618
    %v1621 = vsel %vm1619, %v1596, 0.0
    %v1622 = vsel %vm1620, %v1597, 0.0
    %vm1623 = vcmask 1041409
    %v1624 = vsel %vm1623, %v1621, 0.0
    %v1625 = vsel %vm1623, %v1622, 0.0
    %v1626 = vadd.f32 %v1624, %v1625
    %1627 = vadd.xlane.f32.xlu0 %v1626
    %v1628 = vpop.xlane.xlu0 %1627
    %p1629 = scmp.eq.s32.totalorder %s1617, 0
    %s1630 = scalar_select %p1629, 0.0, 1.0
    %v1631 = vstv %s1630
    %v1632 = vmul.f32 %v1628, %v1631
    %v1634 = vrot.slane %v1632, 1
    %v1636 = vadd.f32 %v1616, %v1634
    %s1637 = sld [smem:[#allocation7 + $0x2]]
    %v1638 = vstv %s1637
    %vm1639 = vcmp.eq.s32.totalorder %v751, %v1638
    %vm1640 = vcmp.eq.s32.totalorder %v752, %v1638
    %v1641 = vsel %vm1639, %v1596, 0.0
    %v1642 = vsel %vm1640, %v1597, 0.0
    %vm1643 = vcmask 1042434
    %v1644 = vsel %vm1643, %v1641, 0.0
    %v1645 = vsel %vm1643, %v1642, 0.0
    %v1646 = vadd.f32 %v1644, %v1645
    %1647 = vadd.xlane.f32.xlu0 %v1646
    %v1648 = vpop.xlane.xlu0 %1647
    %p1649 = scmp.eq.s32.totalorder %s1637, 0
    %s1650 = scalar_select %p1649, 0.0, 1.0
    %v1651 = vstv %s1650
    %v1652 = vmul.f32 %v1648, %v1651
    %v1654 = vrot.slane %v1652, 2
    %v1656 = vadd.f32 %v1636, %v1654
    %s1657 = sld [smem:[#allocation7 + $0x3]]
    %v1658 = vstv %s1657
    %vm1659 = vcmp.eq.s32.totalorder %v751, %v1658
    %vm1660 = vcmp.eq.s32.totalorder %v752, %v1658
    %v1661 = vsel %vm1659, %v1596, 0.0
    %v1662 = vsel %vm1660, %v1597, 0.0
    %vm1663 = vcmask 1043459
    %v1664 = vsel %vm1663, %v1661, 0.0
    %v1665 = vsel %vm1663, %v1662, 0.0
    %v1666 = vadd.f32 %v1664, %v1665
    %1667 = vadd.xlane.f32.xlu0 %v1666
    %v1668 = vpop.xlane.xlu0 %1667
    %p1669 = scmp.eq.s32.totalorder %s1657, 0
    %s1670 = scalar_select %p1669, 0.0, 1.0
    %v1671 = vstv %s1670
    %v1672 = vmul.f32 %v1668, %v1671
    %v1674 = vrot.slane %v1672, 3
    %v1676 = vadd.f32 %v1656, %v1674
    %s1677 = sld [smem:[#allocation7 + $0x4]]
    %v1678 = vstv %s1677
    %vm1679 = vcmp.eq.s32.totalorder %v751, %v1678
    %vm1680 = vcmp.eq.s32.totalorder %v752, %v1678
    %v1681 = vsel %vm1679, %v1596, 0.0
    %v1682 = vsel %vm1680, %v1597, 0.0
    %vm1683 = vcmask 1044484
    %v1684 = vsel %vm1683, %v1681, 0.0
    %v1685 = vsel %vm1683, %v1682, 0.0
    %v1686 = vadd.f32 %v1684, %v1685
    %1687 = vadd.xlane.f32.xlu0 %v1686
    %v1688 = vpop.xlane.xlu0 %1687
    %p1689 = scmp.eq.s32.totalorder %s1677, 0
    %s1690 = scalar_select %p1689, 0.0, 1.0
    %v1691 = vstv %s1690
    %v1692 = vmul.f32 %v1688, %v1691
    %v1694 = vrot.slane %v1692, 4
    %v1696 = vadd.f32 %v1676, %v1694
    %s1697 = sld [smem:[#allocation7 + $0x5]]
    %v1698 = vstv %s1697
    %vm1699 = vcmp.eq.s32.totalorder %v751, %v1698
    %vm1700 = vcmp.eq.s32.totalorder %v752, %v1698
    %v1701 = vsel %vm1699, %v1596, 0.0
    %v1702 = vsel %vm1700, %v1597, 0.0
    %vm1703 = vcmask 1045509
    %v1704 = vsel %vm1703, %v1701, 0.0
    %v1705 = vsel %vm1703, %v1702, 0.0
    %v1706 = vadd.f32 %v1704, %v1705
    %1707 = vadd.xlane.f32.xlu0 %v1706
    %v1708 = vpop.xlane.xlu0 %1707
    %p1709 = scmp.eq.s32.totalorder %s1697, 0
    %s1710 = scalar_select %p1709, 0.0, 1.0
    %v1711 = vstv %s1710
    %v1712 = vmul.f32 %v1708, %v1711
    %v1714 = vrot.slane %v1712, 5
    %v1716 = vadd.f32 %v1696, %v1714
    %s1717 = sld [smem:[#allocation7 + $0x6]]
    %v1718 = vstv %s1717
    %vm1719 = vcmp.eq.s32.totalorder %v751, %v1718
    %vm1720 = vcmp.eq.s32.totalorder %v752, %v1718
    %v1721 = vsel %vm1719, %v1596, 0.0
    %v1722 = vsel %vm1720, %v1597, 0.0
    %vm1723 = vcmask 1046534
    %v1724 = vsel %vm1723, %v1721, 0.0
    %v1725 = vsel %vm1723, %v1722, 0.0
    %v1726 = vadd.f32 %v1724, %v1725
    %1727 = vadd.xlane.f32.xlu0 %v1726
    %v1728 = vpop.xlane.xlu0 %1727
    %p1729 = scmp.eq.s32.totalorder %s1717, 0
    %s1730 = scalar_select %p1729, 0.0, 1.0
    %v1731 = vstv %s1730
    %v1732 = vmul.f32 %v1728, %v1731
    %v1734 = vrot.slane %v1732, 6
    %v1736 = vadd.f32 %v1716, %v1734
    %s1737 = sld [smem:[#allocation7 + $0x7]]
    %v1738 = vstv %s1737
    %vm1739 = vcmp.eq.s32.totalorder %v751, %v1738
    %vm1740 = vcmp.eq.s32.totalorder %v752, %v1738
    %v1741 = vsel %vm1739, %v1596, 0.0
    %v1742 = vsel %vm1740, %v1597, 0.0
    %vm1743 = vcmask 1047559
    %v1744 = vsel %vm1743, %v1741, 0.0
    %v1745 = vsel %vm1743, %v1742, 0.0
    %v1746 = vadd.f32 %v1744, %v1745
    %1747 = vadd.xlane.f32.xlu0 %v1746
    %v1748 = vpop.xlane.xlu0 %1747
    %p1749 = scmp.eq.s32.totalorder %s1737, 0
    %s1750 = scalar_select %p1749, 0.0, 1.0
    %v1751 = vstv %s1750
    %v1752 = vmul.f32 %v1748, %v1751
    %v1754 = vrot.slane %v1752, 7
    %v1756 = vadd.f32 %v1736, %v1754
    %v1757 = vsub.f32 0.0, %v1756
    %vm1758 = vcmask 0
    %1759 = vst.msk [vmem:[#allocation13] sm:$0x1] %vm1758, %v1757
    %v1760 = vmax.f32 %v1410, %v1412
    %1761 = vmax.xlane.f32.xlu0 %v1760
    %v1762 = vpop.xlane.xlu0 %1761
    %v1763 = vsub.f32 %v1410, %v1762
    %v1764 = vsub.f32 %v1412, %v1762
    %v1765 = vmul.f32 %v1763, 1.442695
    %v1766 = vpow.pop %v1765
    %v1767 = vmul.f32 %v1764, 1.442695
    %v1768 = vpow.pop %v1767
    %v1769 = vadd.f32 %v1766, %v1768
    %1770 = vadd.xlane.f32.xlu0 %v1769
    %v1771 = vpop.xlane.xlu0 %1770
    %v1772 = vlog2.pop %v1771
    %v1773 = vmul.f32 %v1772, 0.6931472
    %v1774 = vadd.f32 %v1762, %v1773
    %v1775 = vsub.f32 %v1410, %v1774
    %v1776 = vsub.f32 %v1412, %v1774
    %v1777 = vrot.slane %v742, 1
    %1778 = vrot.lane.b32.xlu0 %v1777, 124
    %v1779 = vpop.permute.xlu0 %1778
    %s1780 = vtos %v1779
    %v1781 = vstv %s1780
    %v1783 = vadd.f32 %v1775, %v1781
    %v1784 = vadd.f32 %v1776, %v1781
    %v1785 = vmax.f32 %v1414, %v1416
    %1786 = vmax.xlane.f32.xlu0 %v1785
    %v1787 = vpop.xlane.xlu0 %1786
    %v1788 = vsub.f32 %v1414, %v1787
    %v1789 = vsub.f32 %v1416, %v1787
    %v1790 = vmul.f32 %v1788, 1.442695
    %v1791 = vpow.pop %v1790
    %v1792 = vmul.f32 %v1789, 1.442695
    %v1793 = vpow.pop %v1792
    %v1794 = vadd.f32 %v1791, %v1793
    %1795 = vadd.xlane.f32.xlu0 %v1794
    %v1796 = vpop.xlane.xlu0 %1795
    %v1797 = vlog2.pop %v1796
    %v1798 = vmul.f32 %v1797, 0.6931472
    %v1799 = vadd.f32 %v1787, %v1798
    %v1800 = vsub.f32 %v1414, %v1799
    %v1801 = vsub.f32 %v1416, %v1799
    %1802 = vrot.lane.b32.xlu0 %v1777, 123
    %v1803 = vpop.permute.xlu0 %1802
    %s1804 = vtos %v1803
    %v1805 = vstv %s1804
    %v1807 = vadd.f32 %v1800, %v1805
    %v1808 = vadd.f32 %v1801, %v1805
    %v1809 = vmax.f32 %v1783, %v1807
    %v1810 = vmax.f32 %v1784, %v1808
    %v1811 = vsub.f32 %v1783, %v1809
    %v1812 = vsub.f32 %v1784, %v1810
    %v1813 = vmul.f32 %v1811, 1.442695
    %v1814 = vpow.pop %v1813
    %v1815 = vmul.f32 %v1812, 1.442695
    %v1816 = vpow.pop %v1815
    %v1817 = vsub.f32 %v1807, %v1809
    %v1818 = vsub.f32 %v1808, %v1810
    %v1819 = vmul.f32 %v1817, 1.442695
    %v1820 = vpow.pop %v1819
    %v1821 = vmul.f32 %v1818, 1.442695
    %v1822 = vpow.pop %v1821
    %v1823 = vadd.f32 %v1814, %v1820
    %v1824 = vadd.f32 %v1816, %v1822
    %v1825 = vmax.f32 %v1420, %v1422
    %1826 = vmax.xlane.f32.xlu0 %v1825
    %v1827 = vpop.xlane.xlu0 %1826
    %v1828 = vsub.f32 %v1420, %v1827
    %v1829 = vsub.f32 %v1422, %v1827
    %v1830 = vmul.f32 %v1828, 1.442695
    %v1831 = vpow.pop %v1830
    %v1832 = vmul.f32 %v1829, 1.442695
    %v1833 = vpow.pop %v1832
    %v1834 = vadd.f32 %v1831, %v1833
    %1835 = vadd.xlane.f32.xlu0 %v1834
    %v1836 = vpop.xlane.xlu0 %1835
    %v1837 = vlog2.pop %v1836
    %v1838 = vmul.f32 %v1837, 0.6931472
    %v1839 = vadd.f32 %v1827, %v1838
    %v1840 = vsub.f32 %v1420, %v1839
    %v1841 = vsub.f32 %v1422, %v1839
    %1842 = vrot.lane.b32.xlu0 %v1777, 122
    %v1843 = vpop.permute.xlu0 %1842
    %s1844 = vtos %v1843
    %v1845 = vstv %s1844
    %v1847 = vadd.f32 %v1840, %v1845
    %v1848 = vadd.f32 %v1841, %v1845
    %v1849 = vmax.f32 %v1809, %v1847
    %v1850 = vmax.f32 %v1810, %v1848
    %v1851 = vsub.f32 %v1809, %v1849
    %v1852 = vsub.f32 %v1810, %v1850
    %v1853 = vmul.f32 %v1851, 1.442695
    %v1854 = vpow.pop %v1853
    %v1855 = vmul.f32 %v1852, 1.442695
    %v1856 = vpow.pop %v1855
    %v1857 = vmul.f32 %v1823, %v1854
    %v1858 = vmul.f32 %v1824, %v1856
    %v1859 = vsub.f32 %v1847, %v1849
    %v1860 = vsub.f32 %v1848, %v1850
    %v1861 = vmul.f32 %v1859, 1.442695
    %v1862 = vpow.pop %v1861
    %v1863 = vmul.f32 %v1860, 1.442695
    %v1864 = vpow.pop %v1863
    %v1865 = vadd.f32 %v1857, %v1862
    %v1866 = vadd.f32 %v1858, %v1864
    %v1867 = vmax.f32 %v1424, %v1426
    %1868 = vmax.xlane.f32.xlu0 %v1867
    %v1869 = vpop.xlane.xlu0 %1868
    %v1870 = vsub.f32 %v1424, %v1869
    %v1871 = vsub.f32 %v1426, %v1869
    %v1872 = vmul.f32 %v1870, 1.442695
    %v1873 = vpow.pop %v1872
    %v1874 = vmul.f32 %v1871, 1.442695
    %v1875 = vpow.pop %v1874
    %v1876 = vadd.f32 %v1873, %v1875
    %1877 = vadd.xlane.f32.xlu0 %v1876
    %v1878 = vpop.xlane.xlu0 %1877
    %v1879 = vlog2.pop %v1878
    %v1880 = vmul.f32 %v1879, 0.6931472
    %v1881 = vadd.f32 %v1869, %v1880
    %v1882 = vsub.f32 %v1424, %v1881
    %v1883 = vsub.f32 %v1426, %v1881
    %1884 = vrot.lane.b32.xlu0 %v1777, 121
    %v1885 = vpop.permute.xlu0 %1884
    %s1886 = vtos %v1885
    %v1887 = vstv %s1886
    %v1889 = vadd.f32 %v1882, %v1887
    %v1890 = vadd.f32 %v1883, %v1887
    %v1891 = vmax.f32 %v1849, %v1889
    %v1892 = vmax.f32 %v1850, %v1890
    %v1893 = vsub.f32 %v1849, %v1891
    %v1894 = vsub.f32 %v1850, %v1892
    %v1895 = vmul.f32 %v1893, 1.442695
    %v1896 = vpow.pop %v1895
    %v1897 = vmul.f32 %v1894, 1.442695
    %v1898 = vpow.pop %v1897
    %v1899 = vmul.f32 %v1865, %v1896
    %v1900 = vmul.f32 %v1866, %v1898
    %v1901 = vsub.f32 %v1889, %v1891
    %v1902 = vsub.f32 %v1890, %v1892
    %v1903 = vmul.f32 %v1901, 1.442695
    %v1904 = vpow.pop %v1903
    %v1905 = vmul.f32 %v1902, 1.442695
    %v1906 = vpow.pop %v1905
    %v1907 = vadd.f32 %v1899, %v1904
    %v1908 = vadd.f32 %v1900, %v1906
    %v1909 = vlog2.pop %v1907
    %v1910 = vmul.f32 %v1909, 0.6931472
    %v1911 = vlog2.pop %v1908
    %v1912 = vmul.f32 %v1911, 0.6931472
    %v1913 = vadd.f32 %v1891, %v1910
    %v1914 = vadd.f32 %v1892, %v1912
    %s1915 = scalar_lea.vmem [#allocation10], 16
    %1916 = vst [vmem:[%s1915] sm:$0xff] %v1913
    %1917 = vst [vmem:[%s1915 + $0x8] sm:$0xff] %v1914
    %s1918 = sld [smem:[#allocation7 + $0x8]]
    %v1919 = vstv %s1918
    %vm1920 = vcmp.eq.s32.totalorder %v751, %v1919
    %vm1921 = vcmp.eq.s32.totalorder %v752, %v1919
    %v1922 = vsel %vm1920, %v1913, 0.0
    %v1923 = vsel %vm1921, %v1914, 0.0
    %v1924 = vsel %vm1606, %v1922, 0.0
    %v1925 = vsel %vm1606, %v1923, 0.0
    %v1926 = vadd.f32 %v1924, %v1925
    %1927 = vadd.xlane.f32.xlu0 %v1926
    %v1928 = vpop.xlane.xlu0 %1927
    %p1929 = scmp.eq.s32.totalorder %s1918, 0
    %s1930 = scalar_select %p1929, 0.0, 1.0
    %v1931 = vstv %s1930
    %v1932 = vmul.f32 %v1928, %v1931
    %v1933 = vadd.f32 %v1932, 0.0
    %s1934 = sld [smem:[#allocation7 + $0x9]]
    %v1935 = vstv %s1934
    %vm1936 = vcmp.eq.s32.totalorder %v751, %v1935
    %vm1937 = vcmp.eq.s32.totalorder %v752, %v1935
    %v1938 = vsel %vm1936, %v1913, 0.0
    %v1939 = vsel %vm1937, %v1914, 0.0
    %v1940 = vsel %vm1623, %v1938, 0.0
    %v1941 = vsel %vm1623, %v1939, 0.0
    %v1942 = vadd.f32 %v1940, %v1941
    %1943 = vadd.xlane.f32.xlu0 %v1942
    %v1944 = vpop.xlane.xlu0 %1943
    %p1945 = scmp.eq.s32.totalorder %s1934, 0
    %s1946 = scalar_select %p1945, 0.0, 1.0
    %v1947 = vstv %s1946
    %v1948 = vmul.f32 %v1944, %v1947
    %v1950 = vrot.slane %v1948, 1
    %v1952 = vadd.f32 %v1933, %v1950
    %s1953 = sld [smem:[#allocation7 + $0xa]]
    %v1954 = vstv %s1953
    %vm1955 = vcmp.eq.s32.totalorder %v751, %v1954
    %vm1956 = vcmp.eq.s32.totalorder %v752, %v1954
    %v1957 = vsel %vm1955, %v1913, 0.0
    %v1958 = vsel %vm1956, %v1914, 0.0
    %v1959 = vsel %vm1643, %v1957, 0.0
    %v1960 = vsel %vm1643, %v1958, 0.0
    %v1961 = vadd.f32 %v1959, %v1960
    %1962 = vadd.xlane.f32.xlu0 %v1961
    %v1963 = vpop.xlane.xlu0 %1962
    %p1964 = scmp.eq.s32.totalorder %s1953, 0
    %s1965 = scalar_select %p1964, 0.0, 1.0
    %v1966 = vstv %s1965
    %v1967 = vmul.f32 %v1963, %v1966
    %v1969 = vrot.slane %v1967, 2
    %v1971 = vadd.f32 %v1952, %v1969
    %s1972 = sld [smem:[#allocation7 + $0xb]]
    %v1973 = vstv %s1972
    %vm1974 = vcmp.eq.s32.totalorder %v751, %v1973
    %vm1975 = vcmp.eq.s32.totalorder %v752, %v1973
    %v1976 = vsel %vm1974, %v1913, 0.0
    %v1977 = vsel %vm1975, %v1914, 0.0
    %v1978 = vsel %vm1663, %v1976, 0.0
    %v1979 = vsel %vm1663, %v1977, 0.0
    %v1980 = vadd.f32 %v1978, %v1979
    %1981 = vadd.xlane.f32.xlu0 %v1980
    %v1982 = vpop.xlane.xlu0 %1981
    %p1983 = scmp.eq.s32.totalorder %s1972, 0
    %s1984 = scalar_select %p1983, 0.0, 1.0
    %v1985 = vstv %s1984
    %v1986 = vmul.f32 %v1982, %v1985
    %v1988 = vrot.slane %v1986, 3
    %v1990 = vadd.f32 %v1971, %v1988
    %s1991 = sld [smem:[#allocation7 + $0xc]]
    %v1992 = vstv %s1991
    %vm1993 = vcmp.eq.s32.totalorder %v751, %v1992
    %vm1994 = vcmp.eq.s32.totalorder %v752, %v1992
    %v1995 = vsel %vm1993, %v1913, 0.0
    %v1996 = vsel %vm1994, %v1914, 0.0
    %v1997 = vsel %vm1683, %v1995, 0.0
    %v1998 = vsel %vm1683, %v1996, 0.0
    %v1999 = vadd.f32 %v1997, %v1998
    %2000 = vadd.xlane.f32.xlu0 %v1999
    %v2001 = vpop.xlane.xlu0 %2000
    %p2002 = scmp.eq.s32.totalorder %s1991, 0
    %s2003 = scalar_select %p2002, 0.0, 1.0
    %v2004 = vstv %s2003
    %v2005 = vmul.f32 %v2001, %v2004
    %v2007 = vrot.slane %v2005, 4
    %v2009 = vadd.f32 %v1990, %v2007
    %s2010 = sld [smem:[#allocation7 + $0xd]]
    %v2011 = vstv %s2010
    %vm2012 = vcmp.eq.s32.totalorder %v751, %v2011
    %vm2013 = vcmp.eq.s32.totalorder %v752, %v2011
    %v2014 = vsel %vm2012, %v1913, 0.0
    %v2015 = vsel %vm2013, %v1914, 0.0
    %v2016 = vsel %vm1703, %v2014, 0.0
    %v2017 = vsel %vm1703, %v2015, 0.0
    %v2018 = vadd.f32 %v2016, %v2017
    %2019 = vadd.xlane.f32.xlu0 %v2018
    %v2020 = vpop.xlane.xlu0 %2019
    %p2021 = scmp.eq.s32.totalorder %s2010, 0
    %s2022 = scalar_select %p2021, 0.0, 1.0
    %v2023 = vstv %s2022
    %v2024 = vmul.f32 %v2020, %v2023
    %v2026 = vrot.slane %v2024, 5
    %v2028 = vadd.f32 %v2009, %v2026
    %s2029 = sld [smem:[#allocation7 + $0xe]]
    %v2030 = vstv %s2029
    %vm2031 = vcmp.eq.s32.totalorder %v751, %v2030
    %vm2032 = vcmp.eq.s32.totalorder %v752, %v2030
    %v2033 = vsel %vm2031, %v1913, 0.0
    %v2034 = vsel %vm2032, %v1914, 0.0
    %v2035 = vsel %vm1723, %v2033, 0.0
    %v2036 = vsel %vm1723, %v2034, 0.0
    %v2037 = vadd.f32 %v2035, %v2036
    %2038 = vadd.xlane.f32.xlu0 %v2037
    %v2039 = vpop.xlane.xlu0 %2038
    %p2040 = scmp.eq.s32.totalorder %s2029, 0
    %s2041 = scalar_select %p2040, 0.0, 1.0
    %v2042 = vstv %s2041
    %v2043 = vmul.f32 %v2039, %v2042
    %v2045 = vrot.slane %v2043, 6
    %v2047 = vadd.f32 %v2028, %v2045
    %s2048 = sld [smem:[#allocation7 + $0xf]]
    %v2049 = vstv %s2048
    %vm2050 = vcmp.eq.s32.totalorder %v751, %v2049
    %vm2051 = vcmp.eq.s32.totalorder %v752, %v2049
    %v2052 = vsel %vm2050, %v1913, 0.0
    %v2053 = vsel %vm2051, %v1914, 0.0
    %v2054 = vsel %vm1743, %v2052, 0.0
    %v2055 = vsel %vm1743, %v2053, 0.0
    %v2056 = vadd.f32 %v2054, %v2055
    %2057 = vadd.xlane.f32.xlu0 %v2056
    %v2058 = vpop.xlane.xlu0 %2057
    %p2059 = scmp.eq.s32.totalorder %s2048, 0
    %s2060 = scalar_select %p2059, 0.0, 1.0
    %v2061 = vstv %s2060
    %v2062 = vmul.f32 %v2058, %v2061
    %v2064 = vrot.slane %v2062, 7
    %v2066 = vadd.f32 %v2047, %v2064
    %v2067 = vsub.f32 0.0, %v2066
    %2069 = vrot.lane.b32.xlu0 %v2067, 1
    %v2070 = vpop.permute.xlu0 %2069
    %vm2072 = vcmask 8200
    %2073 = vst.msk [vmem:[#allocation13] sm:$0x1] %vm2072, %v2070
    // Predicated region
    $region58: #{tpu_custom_call.1} parent=1 // pred_check
      _
    $region59: #{tpu_custom_call.1} parent=1 // pred_check_branch
      %2075 = sbr.rel (0) target = $region61
    $region60: #{tpu_custom_call.1} parent=1 // pred_region
      %s2077 = ssub.s32 2048, 2048
      %2078 = vsyncadd [#allocation4], %s2077
      %s2079 = sshll.u32 [#allocation9], 4
      %s2080 = int_to_ptr.vmem [resolvable:$true] %s2079
      %2085 = dma.vmem_to_hbm [thread:$0]  %s2080, 2048, %s11, [#allocation4], 256, 256, 16
    $region61: #{tpu_custom_call.1} parent=1 // pred_fallthru
      _
    // Predicated region
    $region62: #{tpu_custom_call.1} parent=1 // pred_check
      _
    $region63: #{tpu_custom_call.1} parent=1 // pred_check_branch
      %2087 = sbr.rel (0) target = $region65
    $region64: #{tpu_custom_call.1} parent=1 // pred_region
      %s2089 = ssub.s32 512, 512
      %2090 = vsyncadd [#allocation11], %s2089
      %s2091 = sshll.u32 [#allocation10], 4
      %s2092 = int_to_ptr.vmem [resolvable:$true] %s2091
      %2097 = dma.vmem_to_hbm [thread:$0]  %s2092, 512, %s12, [#allocation11], 256, 256, 16
    $region65: #{tpu_custom_call.1} parent=1 // pred_fallthru
      _
    // Predicated region
    $region66: #{tpu_custom_call.1} parent=1 // pred_check
      _
    $region67: #{tpu_custom_call.1} parent=1 // pred_check_branch
      %2099 = sbr.rel (0) target = $region69
    $region68: #{tpu_custom_call.1} parent=1 // pred_region
      %s2101 = ssub.s32 32, 32
      %2102 = vsyncadd [#allocation11], %s2101
      %s2104 = sshll.u32 [#allocation12], 4
      %s2105 = int_to_ptr.vmem [resolvable:$true] %s2104
      %2107 = dma.vmem_to_hbm [thread:$0]  %s2105, 32, %s13, [#allocation11]
    $region69: #{tpu_custom_call.1} parent=1 // pred_fallthru
      _
    // Predicated region
    $region70: #{tpu_custom_call.1} parent=1 // pred_check
      _
    $region71: #{tpu_custom_call.1} parent=1 // pred_check_branch
      %2109 = sbr.rel (0) target = $region73
    $region72: #{tpu_custom_call.1} parent=1 // pred_region
      %s2111 = ssub.s32 16, 16
      %2112 = vsyncadd [#allocation14], %s2111
      %s2114 = sshll.u32 [#allocation13], 4
      %s2115 = int_to_ptr.vmem [resolvable:$true] %s2114
      %2117 = dma.vmem_to_hbm [thread:$0]  %s2115, 16, %s14, [#allocation14]
    $region73: #{tpu_custom_call.1} parent=1 // pred_fallthru
      _
    // Predicated region
    $region74: #{tpu_custom_call.1} parent=1 // pred_check
      _
    $region75: #{tpu_custom_call.1} parent=1 // pred_check_branch
      %2119 = sbr.rel (0) target = $region77
    $region76: #{tpu_custom_call.1} parent=1 // pred_region
      %2120 = dma.done [#allocation4], 2048
    $region77: #{tpu_custom_call.1} parent=1 // pred_fallthru
      _
    // Predicated region
    $region78: #{tpu_custom_call.1} parent=1 // pred_check
      _
    $region79: #{tpu_custom_call.1} parent=1 // pred_check_branch
      %2122 = sbr.rel (0) target = $region81
    $region80: #{tpu_custom_call.1} parent=1 // pred_region
      %2123 = dma.done [#allocation11], 512
    $region81: #{tpu_custom_call.1} parent=1 // pred_fallthru
      _
    // Predicated region
    $region82: #{tpu_custom_call.1} parent=1 // pred_check
      _
    $region83: #{tpu_custom_call.1} parent=1 // pred_check_branch
      %2125 = sbr.rel (0) target = $region85
    $region84: #{tpu_custom_call.1} parent=1 // pred_region
      %2126 = dma.done [#allocation11], 32
    $region85: #{tpu_custom_call.1} parent=1 // pred_fallthru
      _
    // Predicated region
    $region86: #{tpu_custom_call.1} parent=1 // pred_check
      _
    $region87: #{tpu_custom_call.1} parent=1 // pred_check_branch
      %2128 = sbr.rel (0) target = $region89
    $region88: #{tpu_custom_call.1} parent=1 // pred_region
      %2129 = dma.done [#allocation14], 16
    $region89: #{tpu_custom_call.1} parent=1 // pred_fallthru
      _
    %2130 = vsyncpa [#allocation3], 1
    %2131 = vsyncpa [#allocation4], 1
    %2132 = vsyncpa [#allocation11], 1
    %2133 = vsyncpa [#allocation14], 1
    %2134 = vsyncpa [#allocation5], 1
    %2135 = vsyncpa [#allocation8], 1

</llo_original>
